<compile_context>
chip_gen: v7x
topology: tpu7x:2x2x1
jax: 0.10.0
libtpu: 0.0.40
codegen_flags: <defaults>
</compile_context>

<pallas_src>
import jax
import jax.numpy as jnp
from jax import lax
from jax.experimental import pallas as pl
from jax.experimental.pallas import tpu as pltpu

_LANE = 128


def _round_up(x, m):
    return (x + m - 1) // m * m


def _bottleneck_kernel(x_ref, w1_ref, s1_ref, b1_ref,
                       w2_ref, s2_ref, b2_ref,
                       w3_ref, s3_ref, b3_ref,
                       o_ref):
    # x_ref block: (Nb, H, W, Cin_p); channels are lane-dense (padded to 128).
    Nb, H, W, Cin = x_ref.shape
    Cmid = w1_ref.shape[1]
    Cout = w3_ref.shape[1]
    rows = Nb * H * W

    x = x_ref[...].astype(jnp.float32)
    x2d = x.reshape(rows, Cin)

    # --- conv1 (1x1) + bn1 + relu: bf16 MXU operands, f32 accumulate/elementwise
    h1 = jnp.dot(x2d.astype(jnp.bfloat16), w1_ref[...],
                 preferred_element_type=jnp.float32)
    h1 = jnp.maximum(h1 * s1_ref[...] + b1_ref[...], 0.0)          # (rows, Cmid)

    # --- conv2 (3x3, pad=1, stride=1) + bn2 + relu: single im2col matmul ---
    h1_nhwc = h1.reshape(Nb, H, W, Cmid)
    zrow = jnp.zeros((Nb, 1, W, Cmid), jnp.float32)
    h1_p = jnp.concatenate([zrow, h1_nhwc, zrow], axis=1)           # (Nb, H+2, W, C)
    zcol = jnp.zeros((Nb, H + 2, 1, Cmid), jnp.float32)
    h1_p = jnp.concatenate([zcol, h1_p, zcol], axis=2)              # (Nb, H+2, W+2, C)
    patches = jnp.concatenate(
        [h1_p[:, dy:dy + H, dx:dx + W, :]
         for dy in range(3) for dx in range(3)],
        axis=-1)                                                    # (Nb, H, W, 9*C)
    patches = patches.reshape(rows, 9 * Cmid).astype(jnp.bfloat16)
    h2 = jnp.dot(patches, w2_ref[...], preferred_element_type=jnp.float32)
    h2 = jnp.maximum(h2 * s2_ref[...] + b2_ref[...], 0.0)          # (rows, Cmid)

    # --- conv3 (1x1) + bn3 + residual (identity) + relu ---
    h3 = jnp.dot(h2.astype(jnp.bfloat16), w3_ref[...],
                 preferred_element_type=jnp.float32)
    h3 = h3 * s3_ref[...] + b3_ref[...]
    out = jnp.maximum(h3 + x2d, 0.0)          # identity add (Cin_p == Cout_p)
    o_ref[...] = out.reshape(Nb, H, W, Cout).astype(o_ref.dtype)


def bottleneck_forward(x_nhwc_p, w1, s1, b1, w2, s2, b2, w3, s3, b3,
                       *, block_n=None):
    """x_nhwc_p: (N, H, W, Cin_p) with channels padded to a multiple of 128."""
    N, H, W, Cin = x_nhwc_p.shape
    Cmid = w1.shape[1]
    Cout = w3.shape[1]
    assert Cin == Cout, "downsample=None requires inplanes == planes * 4"

    if block_n is None:
        # Conservative per-image VMEM estimate (double-buffered x/out blocks,
        # f32 activations, f32+bf16 im2col patches); budget sized for v7x 64 MiB.
        budget = 24 << 20
        per_img = H * W * (4 * Cin * 2 + 4 * Cout * 2
                           + 4 * Cmid * 3 + (4 + 2) * 9 * Cmid)
        block_n = max(1, min(N, budget // max(per_img, 1)))
        while N % block_n:
            block_n -= 1
    grid = (N // block_n,)

    def full_spec(a):
        return pl.BlockSpec(a.shape, lambda n, _nd=a.ndim: (0,) * _nd)

    return pl.pallas_call(
        _bottleneck_kernel,
        out_shape=jax.ShapeDtypeStruct((N, H, W, Cout), x_nhwc_p.dtype),
        grid_spec=pltpu.PrefetchScalarGridSpec(
            num_scalar_prefetch=0,
            grid=grid,
            in_specs=[
                pl.BlockSpec((block_n, H, W, Cin), lambda n: (n, 0, 0, 0)),
                full_spec(w1), full_spec(s1), full_spec(b1),
                full_spec(w2), full_spec(s2), full_spec(b2),
                full_spec(w3), full_spec(s3), full_spec(b3),
            ],
            out_specs=pl.BlockSpec((block_n, H, W, Cout), lambda n: (n, 0, 0, 0)),
        ),
        compiler_params=pltpu.CompilerParams(
            dimension_semantics=("parallel",),   # batch axis: no carried state
            vmem_limit_bytes=64 << 20),
    )(x_nhwc_p, w1, s1, b1, w2, s2, b2, w3, s3, b3)


def _pad_last(a, target):
    pad = [(0, 0)] * a.ndim
    pad[-1] = (0, target - a.shape[-1])
    return jnp.pad(a, pad)


def prepare_bottleneck_params(w1_t, w2_t, w3_t, bn1, bn2, bn3, eps=1e-5):
    """Fold BN, pad channels to 128, pack weights channels-last (bf16)."""
    planes = w1_t.shape[0]
    inplanes = w1_t.shape[1]
    outplanes = w3_t.shape[0]
    Cin_p = _round_up(inplanes, _LANE)
    Cmid_p = _round_up(planes, _LANE)
    Cout_p = _round_up(outplanes, _LANE)

    def fold(gamma, beta, mean, var):
        scale = (gamma / jnp.sqrt(var + eps)).astype(jnp.float32)
        bias = (beta - mean * scale).astype(jnp.float32)
        return scale.reshape(1, -1), bias.reshape(1, -1)

    s1, b1 = fold(*bn1)
    s2, b2 = fold(*bn2)
    s3, b3 = fold(*bn3)

    # conv1: (O=planes, I=inplanes, 1, 1) -> (Cin_p, Cmid_p), bf16
    w1k = jnp.zeros((Cin_p, Cmid_p), jnp.bfloat16)
    w1k = w1k.at[:inplanes, :planes].set(w1_t[:, :, 0, 0].T.astype(jnp.bfloat16))
    # conv2: (O, I, 3, 3) -> HWIO -> padded -> im2col (9*Cmid_p, Cmid_p), bf16
    w2_hwio = jnp.transpose(w2_t, (2, 3, 1, 0))
    w2k = jnp.zeros((3, 3, Cmid_p, Cmid_p), jnp.bfloat16)
    w2k = w2k.at[:, :, :planes, :planes].set(w2_hwio.astype(jnp.bfloat16))
    w2k = w2k.reshape(9 * Cmid_p, Cmid_p)
    # conv3: (O=planes*4, I=planes, 1, 1) -> (Cmid_p, Cout_p), bf16
    w3k = jnp.zeros((Cmid_p, Cout_p), jnp.bfloat16)
    w3k = w3k.at[:planes, :outplanes].set(w3_t[:, :, 0, 0].T.astype(jnp.bfloat16))

    params = (w1k, _pad_last(s1, Cmid_p), _pad_last(b1, Cmid_p),
              w2k, _pad_last(s2, Cmid_p), _pad_last(b2, Cmid_p),
              w3k, _pad_last(s3, Cout_p), _pad_last(b3, Cout_p))
    return params, (Cin_p, Cmid_p, Cout_p)


def bottleneck_nchw(x_nchw, params, dims, outplanes):
    """PyTorch-facing wrapper: NCHW in, NCHW out."""
    Cin_p, _, Cout_p = dims
    x_nhwc = jnp.transpose(x_nchw, (0, 2, 3, 1))
    x_nhwc_p = _pad_last(x_nhwc, Cin_p)
    out_p = bottleneck_forward(x_nhwc_p, *params)
    out_nhwc = out_p[..., :outplanes]
    return jnp.transpose(out_nhwc, (0, 3, 1, 2))


if __name__ == "__main__":
    # Small shapes consistent with the module: Bottleneck(inplanes=16, planes=4)
    N, inplanes, planes, H, W = 2, 16, 4, 16, 16
    expansion = 4
    outplanes = planes * expansion
    eps = 1e-5

    key = jax.random.PRNGKey(0)
    keys = jax.random.split(key, 8)

    def nrm(k, shape, scale=0.1):
        return (scale * jax.random.normal(k, shape)).astype(jnp.float32)

    # PyTorch-layout conv weights (O, I, kH, kW), bias=False.
    w1_t = nrm(keys[0], (planes, inplanes, 1, 1))
    w2_t = nrm(keys[1], (planes, planes, 3, 3))
    w3_t = nrm(keys[2], (outplanes, planes, 1, 1))

    def bn_params(k, c):
        k1, k2, k3, k4 = jax.random.split(k, 4)
        gamma = jax.random.uniform(k1, (c,), minval=0.5, maxval=1.5)
        beta = 0.1 * jax.random.normal(k2, (c,))
        mean = 0.1 * jax.random.normal(k3, (c,))
        var = jax.random.uniform(k4, (c,), minval=0.5, maxval=1.5)
        return gamma, beta, mean, var

    bn1 = bn_params(keys[3], planes)
    bn2 = bn_params(keys[4], planes)
    bn3 = bn_params(keys[5], outplanes)

    params, dims = prepare_bottleneck_params(w1_t, w2_t, w3_t, bn1, bn2, bn3, eps)

    # Input in PyTorch NCHW.
    x_nchw = jax.random.normal(keys[6], (N, inplanes, H, W), dtype=jnp.float32)

    out_nchw = bottleneck_nchw(x_nchw, params, dims, outplanes)
    out_nchw = jax.block_until_ready(out_nchw)

    # ---- pure-JAX reference (eval-mode folded BN, same bf16 operand rounding) ----
    def fold(gamma, beta, mean, var):
        scale = gamma / jnp.sqrt(var + eps)
        bias = beta - mean * scale
        return scale.reshape(1, 1, 1, -1).astype(jnp.float32), \
               bias.reshape(1, 1, 1, -1).astype(jnp.float32)

    s1r, b1r = fold(*bn1)
    s2r, b2r = fold(*bn2)
    s3r, b3r = fold(*bn3)
    w1_hwio = w1_t[:, :, 0, 0].T.reshape(1, 1, inplanes, planes)
    w2_hwio = jnp.transpose(w2_t, (2, 3, 1, 0))
    w3_hwio = w3_t[:, :, 0, 0].T.reshape(1, 1, planes, outplanes)

    def ref_forward(x_nhwc):
        dn = ("NHWC", "HWIO", "NHWC")

        def conv(h, w_hwio, pad):
            return lax.conv_general_dilated(
                h.astype(jnp.bfloat16), w_hwio.astype(jnp.bfloat16),
                (1, 1), pad, dimension_numbers=dn,
                preferred_element_type=jnp.float32)

        h = conv(x_nhwc, w1_hwio, "VALID")
        h = jnp.maximum(h * s1r + b1r, 0.0)
        h = conv(h, w2_hwio, ((1, 1), (1, 1)))
        h = jnp.maximum(h * s2r + b2r, 0.0)
        h = conv(h, w3_hwio, "VALID")
        h = h * s3r + b3r
        return jnp.maximum(h + x_nhwc, 0.0)

    x_nhwc = jnp.transpose(x_nchw, (0, 2, 3, 1))
    ref_nchw = jnp.transpose(jax.block_until_ready(ref_forward(x_nhwc)),
                             (0, 3, 1, 2))

    assert out_nchw.shape == (N, outplanes, H, W)
    assert jnp.allclose(out_nchw, ref_nchw, rtol=1e-3, atol=1e-3), \
        "mismatch vs reference"

    print("KERNEL_OK")
</pallas_src>

<mosaic_0001>
module attributes {stable_mosaic.version = 11 : i64} {
  func.func @_bottleneck_kernel(%arg0: i32, %arg1: memref<2x16x16x128xf32, #tpu.memory_space<vmem>>, %arg2: memref<128x128xbf16, #tpu.memory_space<vmem>>, %arg3: memref<1x128xf32, #tpu.memory_space<vmem>>, %arg4: memref<1x128xf32, #tpu.memory_space<vmem>>, %arg5: memref<1152x128xbf16, #tpu.memory_space<vmem>>, %arg6: memref<1x128xf32, #tpu.memory_space<vmem>>, %arg7: memref<1x128xf32, #tpu.memory_space<vmem>>, %arg8: memref<128x128xbf16, #tpu.memory_space<vmem>>, %arg9: memref<1x128xf32, #tpu.memory_space<vmem>>, %arg10: memref<1x128xf32, #tpu.memory_space<vmem>>, %arg11: memref<2x16x16x128xf32, #tpu.memory_space<vmem>>) attributes {dimension_semantics = [#tpu.dimension_semantics<parallel>], iteration_bounds = array<i64: 1>, scalar_prefetch = 0 : i64, scratch_operands = 0 : i64, tpu.core_type = #tpu.core_type<tc>, window_params = [{transform_indices = @transform_0, window_bounds = array<i64: 2, 16, 16, 128>}, {pipeline_mode = #tpu.pipeline_mode<synchronous>, transform_indices = @transform_1, window_bounds = array<i64: 128, 128>}, {pipeline_mode = #tpu.pipeline_mode<synchronous>, transform_indices = @transform_2, window_bounds = array<i64: 1, 128>}, {pipeline_mode = #tpu.pipeline_mode<synchronous>, transform_indices = @transform_3, window_bounds = array<i64: 1, 128>}, {pipeline_mode = #tpu.pipeline_mode<synchronous>, transform_indices = @transform_4, window_bounds = array<i64: 1152, 128>}, {pipeline_mode = #tpu.pipeline_mode<synchronous>, transform_indices = @transform_5, window_bounds = array<i64: 1, 128>}, {pipeline_mode = #tpu.pipeline_mode<synchronous>, transform_indices = @transform_6, window_bounds = array<i64: 1, 128>}, {pipeline_mode = #tpu.pipeline_mode<synchronous>, transform_indices = @transform_7, window_bounds = array<i64: 128, 128>}, {pipeline_mode = #tpu.pipeline_mode<synchronous>, transform_indices = @transform_8, window_bounds = array<i64: 1, 128>}, {pipeline_mode = #tpu.pipeline_mode<synchronous>, transform_indices = @transform_9, window_bounds = array<i64: 1, 128>}, {transform_indices = @transform_10, window_bounds = array<i64: 2, 16, 16, 128>}]} {
    %c0 = arith.constant 0 : index
    %c0_0 = arith.constant 0 : index
    %c0_1 = arith.constant 0 : index
    %c0_2 = arith.constant 0 : index
    %0 = vector.load %arg1[%c0, %c0_0, %c0_1, %c0_2] : memref<2x16x16x128xf32, #tpu.memory_space<vmem>>, vector<2x16x16x128xf32>
    %1 = vector.shape_cast %0 : vector<2x16x16x128xf32> to vector<512x128xf32>
    %2 = arith.truncf %1 : vector<512x128xf32> to vector<512x128xbf16>
    %c0_3 = arith.constant 0 : index
    %c0_4 = arith.constant 0 : index
    %3 = vector.load %arg2[%c0_3, %c0_4] : memref<128x128xbf16, #tpu.memory_space<vmem>>, vector<128x128xbf16>
    %cst = arith.constant dense<0.000000e+00> : vector<512x128xf32>
    %4 = tpu.matmul %2, %3, %cst {dimension_numbers = #tpu.dot_dimension_numbers<[1], [0], [0], [1], [0, 0, 1, 1], [], []>} : vector<512x128xbf16>, vector<128x128xbf16>, vector<512x128xf32> -> vector<512x128xf32>
    %c0_5 = arith.constant 0 : index
    %c0_6 = arith.constant 0 : index
    %5 = vector.load %arg3[%c0_5, %c0_6] : memref<1x128xf32, #tpu.memory_space<vmem>>, vector<1x128xf32>
    %6 = vector.broadcast %5 : vector<1x128xf32> to vector<512x128xf32>
    %7 = arith.mulf %4, %6 : vector<512x128xf32>
    %c0_7 = arith.constant 0 : index
    %c0_8 = arith.constant 0 : index
    %8 = vector.load %arg4[%c0_7, %c0_8] : memref<1x128xf32, #tpu.memory_space<vmem>>, vector<1x128xf32>
    %9 = vector.broadcast %8 : vector<1x128xf32> to vector<512x128xf32>
    %10 = arith.addf %7, %9 : vector<512x128xf32>
    %cst_9 = arith.constant 0.000000e+00 : f32
    %11 = vector.broadcast %cst_9 : f32 to vector<512x128xf32>
    %12 = arith.maximumf %10, %11 : vector<512x128xf32>
    %13 = vector.shape_cast %12 : vector<512x128xf32> to vector<2x16x16x128xf32>
    %cst_10 = arith.constant 0.000000e+00 : f32
    %14 = vector.broadcast %cst_10 : f32 to vector<2x1x16x128xf32>
    %15 = tpu.concatenate %14, %13, %14 in 1 : vector<2x1x16x128xf32>, vector<2x16x16x128xf32>, vector<2x1x16x128xf32> -> vector<2x18x16x128xf32>
    %cst_11 = arith.constant 0.000000e+00 : f32
    %16 = vector.broadcast %cst_11 : f32 to vector<2x18x1x128xf32>
    %17 = tpu.concatenate %16, %15, %16 in 2 : vector<2x18x1x128xf32>, vector<2x18x16x128xf32>, vector<2x18x1x128xf32> -> vector<2x18x18x128xf32>
    %18 = vector.extract_strided_slice %17 {offsets = [0, 0, 0, 0], sizes = [2, 16, 16, 128], strides = [1, 1, 1, 1]} : vector<2x18x18x128xf32> to vector<2x16x16x128xf32>
    %19 = vector.extract_strided_slice %17 {offsets = [0, 0, 1, 0], sizes = [2, 16, 16, 128], strides = [1, 1, 1, 1]} : vector<2x18x18x128xf32> to vector<2x16x16x128xf32>
    %20 = vector.extract_strided_slice %17 {offsets = [0, 0, 2, 0], sizes = [2, 16, 16, 128], strides = [1, 1, 1, 1]} : vector<2x18x18x128xf32> to vector<2x16x16x128xf32>
    %21 = vector.extract_strided_slice %17 {offsets = [0, 1, 0, 0], sizes = [2, 16, 16, 128], strides = [1, 1, 1, 1]} : vector<2x18x18x128xf32> to vector<2x16x16x128xf32>
    %22 = vector.extract_strided_slice %17 {offsets = [0, 1, 1, 0], sizes = [2, 16, 16, 128], strides = [1, 1, 1, 1]} : vector<2x18x18x128xf32> to vector<2x16x16x128xf32>
    %23 = vector.extract_strided_slice %17 {offsets = [0, 1, 2, 0], sizes = [2, 16, 16, 128], strides = [1, 1, 1, 1]} : vector<2x18x18x128xf32> to vector<2x16x16x128xf32>
    %24 = vector.extract_strided_slice %17 {offsets = [0, 2, 0, 0], sizes = [2, 16, 16, 128], strides = [1, 1, 1, 1]} : vector<2x18x18x128xf32> to vector<2x16x16x128xf32>
    %25 = vector.extract_strided_slice %17 {offsets = [0, 2, 1, 0], sizes = [2, 16, 16, 128], strides = [1, 1, 1, 1]} : vector<2x18x18x128xf32> to vector<2x16x16x128xf32>
    %26 = vector.extract_strided_slice %17 {offsets = [0, 2, 2, 0], sizes = [2, 16, 16, 128], strides = [1, 1, 1, 1]} : vector<2x18x18x128xf32> to vector<2x16x16x128xf32>
    %27 = tpu.concatenate %18, %19, %20, %21, %22, %23, %24, %25, %26 in 3 : vector<2x16x16x128xf32>, vector<2x16x16x128xf32>, vector<2x16x16x128xf32>, vector<2x16x16x128xf32>, vector<2x16x16x128xf32>, vector<2x16x16x128xf32>, vector<2x16x16x128xf32>, vector<2x16x16x128xf32>, vector<2x16x16x128xf32> -> vector<2x16x16x1152xf32>
    %28 = vector.shape_cast %27 : vector<2x16x16x1152xf32> to vector<512x1152xf32>
    %29 = arith.truncf %28 : vector<512x1152xf32> to vector<512x1152xbf16>
    %c0_12 = arith.constant 0 : index
    %c0_13 = arith.constant 0 : index
    %30 = vector.load %arg5[%c0_12, %c0_13] : memref<1152x128xbf16, #tpu.memory_space<vmem>>, vector<1152x128xbf16>
    %cst_14 = arith.constant dense<0.000000e+00> : vector<512x128xf32>
    %31 = tpu.matmul %29, %30, %cst_14 {dimension_numbers = #tpu.dot_dimension_numbers<[1], [0], [0], [1], [0, 0, 1, 1], [], []>} : vector<512x1152xbf16>, vector<1152x128xbf16>, vector<512x128xf32> -> vector<512x128xf32>
    %c0_15 = arith.constant 0 : index
    %c0_16 = arith.constant 0 : index
    %32 = vector.load %arg6[%c0_15, %c0_16] : memref<1x128xf32, #tpu.memory_space<vmem>>, vector<1x128xf32>
    %33 = vector.broadcast %32 : vector<1x128xf32> to vector<512x128xf32>
    %34 = arith.mulf %31, %33 : vector<512x128xf32>
    %c0_17 = arith.constant 0 : index
    %c0_18 = arith.constant 0 : index
    %35 = vector.load %arg7[%c0_17, %c0_18] : memref<1x128xf32, #tpu.memory_space<vmem>>, vector<1x128xf32>
    %36 = vector.broadcast %35 : vector<1x128xf32> to vector<512x128xf32>
    %37 = arith.addf %34, %36 : vector<512x128xf32>
    %cst_19 = arith.constant 0.000000e+00 : f32
    %38 = vector.broadcast %cst_19 : f32 to vector<512x128xf32>
    %39 = arith.maximumf %37, %38 : vector<512x128xf32>
    %40 = arith.truncf %39 : vector<512x128xf32> to vector<512x128xbf16>
    %c0_20 = arith.constant 0 : index
    %c0_21 = arith.constant 0 : index
    %41 = vector.load %arg8[%c0_20, %c0_21] : memref<128x128xbf16, #tpu.memory_space<vmem>>, vector<128x128xbf16>
    %cst_22 = arith.constant dense<0.000000e+00> : vector<512x128xf32>
    %42 = tpu.matmul %40, %41, %cst_22 {dimension_numbers = #tpu.dot_dimension_numbers<[1], [0], [0], [1], [0, 0, 1, 1], [], []>} : vector<512x128xbf16>, vector<128x128xbf16>, vector<512x128xf32> -> vector<512x128xf32>
    %c0_23 = arith.constant 0 : index
    %c0_24 = arith.constant 0 : index
    %43 = vector.load %arg9[%c0_23, %c0_24] : memref<1x128xf32, #tpu.memory_space<vmem>>, vector<1x128xf32>
    %44 = vector.broadcast %43 : vector<1x128xf32> to vector<512x128xf32>
    %45 = arith.mulf %42, %44 : vector<512x128xf32>
    %c0_25 = arith.constant 0 : index
    %c0_26 = arith.constant 0 : index
    %46 = vector.load %arg10[%c0_25, %c0_26] : memref<1x128xf32, #tpu.memory_space<vmem>>, vector<1x128xf32>
    %47 = vector.broadcast %46 : vector<1x128xf32> to vector<512x128xf32>
    %48 = arith.addf %45, %47 : vector<512x128xf32>
    %49 = arith.addf %48, %1 : vector<512x128xf32>
    %cst_27 = arith.constant 0.000000e+00 : f32
    %50 = vector.broadcast %cst_27 : f32 to vector<512x128xf32>
    %51 = arith.maximumf %49, %50 : vector<512x128xf32>
    %52 = vector.shape_cast %51 : vector<512x128xf32> to vector<2x16x16x128xf32>
    %c0_28 = arith.constant 0 : index
    %c0_29 = arith.constant 0 : index
    %c0_30 = arith.constant 0 : index
    %c0_31 = arith.constant 0 : index
    %53 = vector.load %arg11[%c0_28, %c0_29, %c0_30, %c0_31] : memref<2x16x16x128xf32, #tpu.memory_space<vmem>>, vector<2x16x16x128xf32>
    tpu.vector_store %arg11[%c0_28, %c0_29, %c0_30, %c0_31], %52 {strides = array<i32>} : memref<2x16x16x128xf32, #tpu.memory_space<vmem>>, vector<2x16x16x128xf32>,
    return
  }
  func.func @transform_0(%arg0: i32) -> (i32, i32, i32, i32) {
    %c0_i32 = arith.constant 0 : i32
    %c0_i32_0 = arith.constant 0 : i32
    %c0_i32_1 = arith.constant 0 : i32
    %c0_i32_2 = arith.constant 0 : i32
    return %arg0, %c0_i32, %c0_i32_0, %c0_i32_1 : i32, i32, i32, i32
  }
  func.func @transform_1(%arg0: i32) -> (i32, i32) {
    %c0_i32 = arith.constant 0 : i32
    %c0_i32_0 = arith.constant 0 : i32
    %c0_i32_1 = arith.constant 0 : i32
    return %c0_i32, %c0_i32_0 : i32, i32
  }
  func.func @transform_2(%arg0: i32) -> (i32, i32) {
    %c0_i32 = arith.constant 0 : i32
    %c0_i32_0 = arith.constant 0 : i32
    %c0_i32_1 = arith.constant 0 : i32
    return %c0_i32, %c0_i32_0 : i32, i32
  }
  func.func @transform_3(%arg0: i32) -> (i32, i32) {
    %c0_i32 = arith.constant 0 : i32
    %c0_i32_0 = arith.constant 0 : i32
    %c0_i32_1 = arith.constant 0 : i32
    return %c0_i32, %c0_i32_0 : i32, i32
  }
  func.func @transform_4(%arg0: i32) -> (i32, i32) {
    %c0_i32 = arith.constant 0 : i32
    %c0_i32_0 = arith.constant 0 : i32
    %c0_i32_1 = arith.constant 0 : i32
    return %c0_i32, %c0_i32_0 : i32, i32
  }
  func.func @transform_5(%arg0: i32) -> (i32, i32) {
    %c0_i32 = arith.constant 0 : i32
    %c0_i32_0 = arith.constant 0 : i32
    %c0_i32_1 = arith.constant 0 : i32
    return %c0_i32, %c0_i32_0 : i32, i32
  }
  func.func @transform_6(%arg0: i32) -> (i32, i32) {
    %c0_i32 = arith.constant 0 : i32
    %c0_i32_0 = arith.constant 0 : i32
    %c0_i32_1 = arith.constant 0 : i32
    return %c0_i32, %c0_i32_0 : i32, i32
  }
  func.func @transform_7(%arg0: i32) -> (i32, i32) {
    %c0_i32 = arith.constant 0 : i32
    %c0_i32_0 = arith.constant 0 : i32
    %c0_i32_1 = arith.constant 0 : i32
    return %c0_i32, %c0_i32_0 : i32, i32
  }
  func.func @transform_8(%arg0: i32) -> (i32, i32) {
    %c0_i32 = arith.constant 0 : i32
    %c0_i32_0 = arith.constant 0 : i32
    %c0_i32_1 = arith.constant 0 : i32
    return %c0_i32, %c0_i32_0 : i32, i32
  }
  func.func @transform_9(%arg0: i32) -> (i32, i32) {
    %c0_i32 = arith.constant 0 : i32
    %c0_i32_0 = arith.constant 0 : i32
    %c0_i32_1 = arith.constant 0 : i32
    return %c0_i32, %c0_i32_0 : i32, i32
  }
  func.func @transform_10(%arg0: i32) -> (i32, i32, i32, i32) {
    %c0_i32 = arith.constant 0 : i32
    %c0_i32_0 = arith.constant 0 : i32
    %c0_i32_1 = arith.constant 0 : i32
    %c0_i32_2 = arith.constant 0 : i32
    return %arg0, %c0_i32, %c0_i32_0, %c0_i32_1 : i32, i32, i32, i32
  }
}

</mosaic_0001>

<llo_original>
// kernel: tpu_custom_call.1
$region0: #{tpu_custom_call.1}
  #allocation0 [shape = 'u32[]', space=smem, size = 0x4, offset = 0x4, fixed_abs, tag = 'smem constant byte address 0x4 - core index']
  #allocation1 [shape = 'u32[144,128]{1,0:T(1,128)}', space=vmem, size = 0x12000, scoped, tag = 'internal scratch']
  %s0 = inlined_call_operand.hbm [shape: f32[2,16,16,128], index: 0, kind: input, shape index: {}]
  %s1 = inlined_call_operand.hbm [shape: bf16[128,128], index: 1, kind: input, shape index: {}]
  %s2 = inlined_call_operand.hbm [shape: f32[1,128], index: 2, kind: input, shape index: {}]
  %s3 = inlined_call_operand.hbm [shape: f32[1,128], index: 3, kind: input, shape index: {}]
  %s4 = inlined_call_operand.hbm [shape: bf16[1152,128], index: 4, kind: input, shape index: {}]
  %s5 = inlined_call_operand.hbm [shape: f32[1,128], index: 5, kind: input, shape index: {}]
  %s6 = inlined_call_operand.hbm [shape: f32[1,128], index: 6, kind: input, shape index: {}]
  %s7 = inlined_call_operand.hbm [shape: bf16[128,128], index: 7, kind: input, shape index: {}]
  %s8 = inlined_call_operand.hbm [shape: f32[1,128], index: 8, kind: input, shape index: {}]
  %s9 = inlined_call_operand.hbm [shape: f32[1,128], index: 9, kind: input, shape index: {}]
  %s10 = inlined_call_operand.hbm [shape: f32[2,16,16,128], index: 10, kind: output, shape index: {}]
  %s11 = sld [smem:[#allocation0]]
  $region90: #{tpu_custom_call.1} parent=0
    _
  %s13 = ssub.s32 1, %s11
  %s14 = scalar_select 0, %s13, %s11
  $region1: #{tpu_custom_call.1} parent=0
    #allocation2 [shape = 'u8[262144]{0}', space=vmem, size = 0x40000, scoped, tag = 'input window, operand 0, single buffered']
    #allocation3 [shape = 's32[1]{0}', space=sflag, size = 0x4, scoped, tag = 'scoped memory for tpu_custom_call.1']
    #allocation4 [shape = 's32[1]{0}', space=sflag, size = 0x4, scoped, tag = 'scoped memory for tpu_custom_call.1']
    #allocation5 [shape = 'u8[32768]{0}', space=vmem, size = 0x8000, scoped, tag = 'input window, operand 1, single buffered']
    #allocation6 [shape = 's32[1]{0}', space=sflag, size = 0x4, scoped, tag = 'scoped memory for tpu_custom_call.1']
    #allocation7 [shape = 'u8[512]{0}', space=vmem, size = 0x400, scoped, tag = 'input window, operand 2, single buffered']
    #allocation8 [shape = 'u8[512]{0}', space=vmem, size = 0x400, scoped, tag = 'input window, operand 3, single buffered']
    #allocation9 [shape = 's32[1]{0}', space=sflag, size = 0x4, scoped, tag = 'scoped memory for tpu_custom_call.1']
    #allocation10 [shape = 'u8[294912]{0}', space=vmem, size = 0x48000, scoped, tag = 'input window, operand 4, single buffered']
    #allocation11 [shape = 'u8[512]{0}', space=vmem, size = 0x400, scoped, tag = 'input window, operand 5, single buffered']
    #allocation12 [shape = 's32[1]{0}', space=sflag, size = 0x4, scoped, tag = 'scoped memory for tpu_custom_call.1']
    #allocation13 [shape = 'u8[512]{0}', space=vmem, size = 0x400, scoped, tag = 'input window, operand 6, single buffered']
    #allocation14 [shape = 'u8[32768]{0}', space=vmem, size = 0x8000, scoped, tag = 'input window, operand 7, single buffered']
    #allocation15 [shape = 's32[1]{0}', space=sflag, size = 0x4, scoped, tag = 'scoped memory for tpu_custom_call.1']
    #allocation16 [shape = 'u8[512]{0}', space=vmem, size = 0x400, scoped, tag = 'input window, operand 8, single buffered']
    #allocation17 [shape = 'u8[512]{0}', space=vmem, size = 0x400, scoped, tag = 'input window, operand 9, single buffered']
    #allocation18 [shape = 's32[1]{0}', space=sflag, size = 0x4, scoped, tag = 'scoped memory for tpu_custom_call.1']
    #allocation19 [shape = 'u8[262144]{0}', space=vmem, size = 0x40000, scoped, tag = 'output window, operand 0, single buffered']
    %15 = vsyncpa [#allocation3], 0
    %16 = vsyncpa [#allocation6], 0
    %17 = vsyncpa [#allocation9], 0
    %18 = vsyncpa [#allocation12], 0
    %19 = vsyncpa [#allocation15], 0
    %20 = vsyncpa [#allocation18], 0
    %21 = vsyncpa [#allocation4], 0
    // Predicated region
    $region2: #{tpu_custom_call.1} parent=1 // pred_check
      _
    $region3: #{tpu_custom_call.1} parent=1 // pred_check_branch
      %23 = sbr.rel (0) target = $region5
    $region4: #{tpu_custom_call.1} parent=1 // pred_region
      %s25 = ssub.s32 8192, 8192
      %26 = vsyncadd [#allocation3], %s25
      %s27 = sshll.u32 [#allocation2], 4
      %s28 = int_to_ptr.vmem [resolvable:$true] %s27
      %33 = dma.hbm_to_vmem [thread:$0]  %s0, 8192, %s28, [#allocation3], 128, 128, 8
    $region5: #{tpu_custom_call.1} parent=1 // pred_fallthru
      _
    // Predicated region
    $region6: #{tpu_custom_call.1} parent=1 // pred_check
      _
    $region7: #{tpu_custom_call.1} parent=1 // pred_check_branch
      %35 = sbr.rel (0) target = $region9
    $region8: #{tpu_custom_call.1} parent=1 // pred_region
      %s37 = ssub.s32 1024, 1024
      %38 = vsyncadd [#allocation6], %s37
      %s39 = sshll.u32 [#allocation5], 4
      %s40 = int_to_ptr.vmem [resolvable:$true] %s39
      %45 = dma.hbm_to_vmem [thread:$0]  %s1, 1024, %s40, [#allocation6], 64, 64, 4
    $region9: #{tpu_custom_call.1} parent=1 // pred_fallthru
      _
    // Predicated region
    $region10: #{tpu_custom_call.1} parent=1 // pred_check
      _
    $region11: #{tpu_custom_call.1} parent=1 // pred_check_branch
      %47 = sbr.rel (0) target = $region13
    $region12: #{tpu_custom_call.1} parent=1 // pred_region
      %s49 = ssub.s32 16, 16
      %50 = vsyncadd [#allocation6], %s49
      %s52 = sshll.u32 [#allocation7], 4
      %s53 = int_to_ptr.vmem [resolvable:$true] %s52
      %55 = dma.hbm_to_vmem [thread:$0]  %s2, 16, %s53, [#allocation6]
    $region13: #{tpu_custom_call.1} parent=1 // pred_fallthru
      _
    // Predicated region
    $region14: #{tpu_custom_call.1} parent=1 // pred_check
      _
    $region15: #{tpu_custom_call.1} parent=1 // pred_check_branch
      %57 = sbr.rel (0) target = $region17
    $region16: #{tpu_custom_call.1} parent=1 // pred_region
      %s59 = ssub.s32 16, 16
      %60 = vsyncadd [#allocation9], %s59
      %s62 = sshll.u32 [#allocation8], 4
      %s63 = int_to_ptr.vmem [resolvable:$true] %s62
      %65 = dma.hbm_to_vmem [thread:$0]  %s3, 16, %s63, [#allocation9]
    $region17: #{tpu_custom_call.1} parent=1 // pred_fallthru
      _
    // Predicated region
    $region18: #{tpu_custom_call.1} parent=1 // pred_check
      _
    $region19: #{tpu_custom_call.1} parent=1 // pred_check_branch
      %67 = sbr.rel (0) target = $region21
    $region20: #{tpu_custom_call.1} parent=1 // pred_region
      %s69 = ssub.s32 9216, 9216
      %70 = vsyncadd [#allocation9], %s69
      %s71 = sshll.u32 [#allocation10], 4
      %s72 = int_to_ptr.vmem [resolvable:$true] %s71
      %77 = dma.hbm_to_vmem [thread:$0]  %s4, 9216, %s72, [#allocation9], 64, 64, 4
    $region21: #{tpu_custom_call.1} parent=1 // pred_fallthru
      _
    // Predicated region
    $region22: #{tpu_custom_call.1} parent=1 // pred_check
      _
    $region23: #{tpu_custom_call.1} parent=1 // pred_check_branch
      %79 = sbr.rel (0) target = $region25
    $region24: #{tpu_custom_call.1} parent=1 // pred_region
      %s81 = ssub.s32 16, 16
      %82 = vsyncadd [#allocation12], %s81
      %s84 = sshll.u32 [#allocation11], 4
      %s85 = int_to_ptr.vmem [resolvable:$true] %s84
      %87 = dma.hbm_to_vmem [thread:$0]  %s5, 16, %s85, [#allocation12]
    $region25: #{tpu_custom_call.1} parent=1 // pred_fallthru
      _
    // Predicated region
    $region26: #{tpu_custom_call.1} parent=1 // pred_check
      _
    $region27: #{tpu_custom_call.1} parent=1 // pred_check_branch
      %89 = sbr.rel (0) target = $region29
    $region28: #{tpu_custom_call.1} parent=1 // pred_region
      %s91 = ssub.s32 16, 16
      %92 = vsyncadd [#allocation12], %s91
      %s94 = sshll.u32 [#allocation13], 4
      %s95 = int_to_ptr.vmem [resolvable:$true] %s94
      %97 = dma.hbm_to_vmem [thread:$0]  %s6, 16, %s95, [#allocation12]
    $region29: #{tpu_custom_call.1} parent=1 // pred_fallthru
      _
    // Predicated region
    $region30: #{tpu_custom_call.1} parent=1 // pred_check
      _
    $region31: #{tpu_custom_call.1} parent=1 // pred_check_branch
      %99 = sbr.rel (0) target = $region33
    $region32: #{tpu_custom_call.1} parent=1 // pred_region
      %s101 = ssub.s32 1024, 1024
      %102 = vsyncadd [#allocation15], %s101
      %s103 = sshll.u32 [#allocation14], 4
      %s104 = int_to_ptr.vmem [resolvable:$true] %s103
      %109 = dma.hbm_to_vmem [thread:$0]  %s7, 1024, %s104, [#allocation15], 64, 64, 4
    $region33: #{tpu_custom_call.1} parent=1 // pred_fallthru
      _
    // Predicated region
    $region34: #{tpu_custom_call.1} parent=1 // pred_check
      _
    $region35: #{tpu_custom_call.1} parent=1 // pred_check_branch
      %111 = sbr.rel (0) target = $region37
    $region36: #{tpu_custom_call.1} parent=1 // pred_region
      %s113 = ssub.s32 16, 16
      %114 = vsyncadd [#allocation15], %s113
      %s116 = sshll.u32 [#allocation16], 4
      %s117 = int_to_ptr.vmem [resolvable:$true] %s116
      %119 = dma.hbm_to_vmem [thread:$0]  %s8, 16, %s117, [#allocation15]
    $region37: #{tpu_custom_call.1} parent=1 // pred_fallthru
      _
    // Predicated region
    $region38: #{tpu_custom_call.1} parent=1 // pred_check
      _
    $region39: #{tpu_custom_call.1} parent=1 // pred_check_branch
      %121 = sbr.rel (0) target = $region41
    $region40: #{tpu_custom_call.1} parent=1 // pred_region
      %s123 = ssub.s32 16, 16
      %124 = vsyncadd [#allocation18], %s123
      %s126 = sshll.u32 [#allocation17], 4
      %s127 = int_to_ptr.vmem [resolvable:$true] %s126
      %129 = dma.hbm_to_vmem [thread:$0]  %s9, 16, %s127, [#allocation18]
    $region41: #{tpu_custom_call.1} parent=1 // pred_fallthru
      _
    // Predicated region
    $region42: #{tpu_custom_call.1} parent=1 // pred_check
      _
    $region43: #{tpu_custom_call.1} parent=1 // pred_check_branch
      %131 = sbr.rel (0) target = $region45
    $region44: #{tpu_custom_call.1} parent=1 // pred_region
      %132 = dma.done [#allocation3], 8192
    $region45: #{tpu_custom_call.1} parent=1 // pred_fallthru
      _
    // Predicated region
    $region46: #{tpu_custom_call.1} parent=1 // pred_check
      _
    $region47: #{tpu_custom_call.1} parent=1 // pred_check_branch
      %134 = sbr.rel (0) target = $region49
    $region48: #{tpu_custom_call.1} parent=1 // pred_region
      %135 = dma.done [#allocation6], 1024
    $region49: #{tpu_custom_call.1} parent=1 // pred_fallthru
      _
    // Predicated region
    $region50: #{tpu_custom_call.1} parent=1 // pred_check
      _
    $region51: #{tpu_custom_call.1} parent=1 // pred_check_branch
      %137 = sbr.rel (0) target = $region53
    $region52: #{tpu_custom_call.1} parent=1 // pred_region
      %138 = dma.done [#allocation6], 16
    $region53: #{tpu_custom_call.1} parent=1 // pred_fallthru
      _
    // Predicated region
    $region54: #{tpu_custom_call.1} parent=1 // pred_check
      _
    $region55: #{tpu_custom_call.1} parent=1 // pred_check_branch
      %140 = sbr.rel (0) target = $region57
    $region56: #{tpu_custom_call.1} parent=1 // pred_region
      %141 = dma.done [#allocation9], 16
    $region57: #{tpu_custom_call.1} parent=1 // pred_fallthru
      _
    // Predicated region
    $region58: #{tpu_custom_call.1} parent=1 // pred_check
      _
    $region59: #{tpu_custom_call.1} parent=1 // pred_check_branch
      %143 = sbr.rel (0) target = $region61
    $region60: #{tpu_custom_call.1} parent=1 // pred_region
      %144 = dma.done [#allocation9], 9216
    $region61: #{tpu_custom_call.1} parent=1 // pred_fallthru
      _
    // Predicated region
    $region62: #{tpu_custom_call.1} parent=1 // pred_check
      _
    $region63: #{tpu_custom_call.1} parent=1 // pred_check_branch
      %146 = sbr.rel (0) target = $region65
    $region64: #{tpu_custom_call.1} parent=1 // pred_region
      %147 = dma.done [#allocation12], 16
    $region65: #{tpu_custom_call.1} parent=1 // pred_fallthru
      _
    // Predicated region
    $region66: #{tpu_custom_call.1} parent=1 // pred_check
      _
    $region67: #{tpu_custom_call.1} parent=1 // pred_check_branch
      %149 = sbr.rel (0) target = $region69
    $region68: #{tpu_custom_call.1} parent=1 // pred_region
      %150 = dma.done [#allocation12], 16
    $region69: #{tpu_custom_call.1} parent=1 // pred_fallthru
      _
    // Predicated region
    $region70: #{tpu_custom_call.1} parent=1 // pred_check
      _
    $region71: #{tpu_custom_call.1} parent=1 // pred_check_branch
      %152 = sbr.rel (0) target = $region73
    $region72: #{tpu_custom_call.1} parent=1 // pred_region
      %153 = dma.done [#allocation15], 1024
    $region73: #{tpu_custom_call.1} parent=1 // pred_fallthru
      _
    // Predicated region
    $region74: #{tpu_custom_call.1} parent=1 // pred_check
      _
    $region75: #{tpu_custom_call.1} parent=1 // pred_check_branch
      %155 = sbr.rel (0) target = $region77
    $region76: #{tpu_custom_call.1} parent=1 // pred_region
      %156 = dma.done [#allocation15], 16
    $region77: #{tpu_custom_call.1} parent=1 // pred_fallthru
      _
    // Predicated region
    $region78: #{tpu_custom_call.1} parent=1 // pred_check
      _
    $region79: #{tpu_custom_call.1} parent=1 // pred_check_branch
      %158 = sbr.rel (0) target = $region81
    $region80: #{tpu_custom_call.1} parent=1 // pred_region
      %159 = dma.done [#allocation18], 16
    $region81: #{tpu_custom_call.1} parent=1 // pred_fallthru
      _
    %v161 = vld [vmem:[#allocation2] sm:$0xff]
    %v162 = vld [vmem:[#allocation2 + $0x8] sm:$0xff]
    %v163 = vld [vmem:[#allocation2 + $0x10] sm:$0xff]
    %v164 = vld [vmem:[#allocation2 + $0x18] sm:$0xff]
    %v165 = vld [vmem:[#allocation2 + $0x20] sm:$0xff]
    %v166 = vld [vmem:[#allocation2 + $0x28] sm:$0xff]
    %v167 = vld [vmem:[#allocation2 + $0x30] sm:$0xff]
    %v168 = vld [vmem:[#allocation2 + $0x38] sm:$0xff]
    %v169 = vld [vmem:[#allocation2 + $0x40] sm:$0xff]
    %v170 = vld [vmem:[#allocation2 + $0x48] sm:$0xff]
    %v171 = vld [vmem:[#allocation2 + $0x50] sm:$0xff]
    %v172 = vld [vmem:[#allocation2 + $0x58] sm:$0xff]
    %v173 = vld [vmem:[#allocation2 + $0x60] sm:$0xff]
    %v174 = vld [vmem:[#allocation2 + $0x68] sm:$0xff]
    %v175 = vld [vmem:[#allocation2 + $0x70] sm:$0xff]
    %v176 = vld [vmem:[#allocation2 + $0x78] sm:$0xff]
    %v177 = vld [vmem:[#allocation2 + $0x80] sm:$0xff]
    %v178 = vld [vmem:[#allocation2 + $0x88] sm:$0xff]
    %v179 = vld [vmem:[#allocation2 + $0x90] sm:$0xff]
    %v180 = vld [vmem:[#allocation2 + $0x98] sm:$0xff]
    %v181 = vld [vmem:[#allocation2 + $0xa0] sm:$0xff]
    %v182 = vld [vmem:[#allocation2 + $0xa8] sm:$0xff]
    %v183 = vld [vmem:[#allocation2 + $0xb0] sm:$0xff]
    %v184 = vld [vmem:[#allocation2 + $0xb8] sm:$0xff]
    %v185 = vld [vmem:[#allocation2 + $0xc0] sm:$0xff]
    %v186 = vld [vmem:[#allocation2 + $0xc8] sm:$0xff]
    %v187 = vld [vmem:[#allocation2 + $0xd0] sm:$0xff]
    %v188 = vld [vmem:[#allocation2 + $0xd8] sm:$0xff]
    %v189 = vld [vmem:[#allocation2 + $0xe0] sm:$0xff]
    %v190 = vld [vmem:[#allocation2 + $0xe8] sm:$0xff]
    %v191 = vld [vmem:[#allocation2 + $0xf0] sm:$0xff]
    %v192 = vld [vmem:[#allocation2 + $0xf8] sm:$0xff]
    %v193 = vld [vmem:[#allocation2 + $0x100] sm:$0xff]
    %v194 = vld [vmem:[#allocation2 + $0x108] sm:$0xff]
    %v195 = vld [vmem:[#allocation2 + $0x110] sm:$0xff]
    %v196 = vld [vmem:[#allocation2 + $0x118] sm:$0xff]
    %v197 = vld [vmem:[#allocation2 + $0x120] sm:$0xff]
    %v198 = vld [vmem:[#allocation2 + $0x128] sm:$0xff]
    %v199 = vld [vmem:[#allocation2 + $0x130] sm:$0xff]
    %v200 = vld [vmem:[#allocation2 + $0x138] sm:$0xff]
    %v201 = vld [vmem:[#allocation2 + $0x140] sm:$0xff]
    %v202 = vld [vmem:[#allocation2 + $0x148] sm:$0xff]
    %v203 = vld [vmem:[#allocation2 + $0x150] sm:$0xff]
    %v204 = vld [vmem:[#allocation2 + $0x158] sm:$0xff]
    %v205 = vld [vmem:[#allocation2 + $0x160] sm:$0xff]
    %v206 = vld [vmem:[#allocation2 + $0x168] sm:$0xff]
    %v207 = vld [vmem:[#allocation2 + $0x170] sm:$0xff]
    %v208 = vld [vmem:[#allocation2 + $0x178] sm:$0xff]
    %v209 = vld [vmem:[#allocation2 + $0x180] sm:$0xff]
    %v210 = vld [vmem:[#allocation2 + $0x188] sm:$0xff]
    %v211 = vld [vmem:[#allocation2 + $0x190] sm:$0xff]
    %v212 = vld [vmem:[#allocation2 + $0x198] sm:$0xff]
    %v213 = vld [vmem:[#allocation2 + $0x1a0] sm:$0xff]
    %v214 = vld [vmem:[#allocation2 + $0x1a8] sm:$0xff]
    %v215 = vld [vmem:[#allocation2 + $0x1b0] sm:$0xff]
    %v216 = vld [vmem:[#allocation2 + $0x1b8] sm:$0xff]
    %v217 = vld [vmem:[#allocation2 + $0x1c0] sm:$0xff]
    %v218 = vld [vmem:[#allocation2 + $0x1c8] sm:$0xff]
    %v219 = vld [vmem:[#allocation2 + $0x1d0] sm:$0xff]
    %v220 = vld [vmem:[#allocation2 + $0x1d8] sm:$0xff]
    %v221 = vld [vmem:[#allocation2 + $0x1e0] sm:$0xff]
    %v222 = vld [vmem:[#allocation2 + $0x1e8] sm:$0xff]
    %v223 = vld [vmem:[#allocation2 + $0x1f0] sm:$0xff]
    %v224 = vld [vmem:[#allocation2 + $0x1f8] sm:$0xff]
    %v225 = vpack.c.bf16 %v162, %v161
    %v226 = vpack.c.bf16 %v164, %v163
    %v227 = vpack.c.bf16 %v166, %v165
    %v228 = vpack.c.bf16 %v168, %v167
    %v229 = vpack.c.bf16 %v170, %v169
    %v230 = vpack.c.bf16 %v172, %v171
    %v231 = vpack.c.bf16 %v174, %v173
    %v232 = vpack.c.bf16 %v176, %v175
    %v233 = vpack.c.bf16 %v178, %v177
    %v234 = vpack.c.bf16 %v180, %v179
    %v235 = vpack.c.bf16 %v182, %v181
    %v236 = vpack.c.bf16 %v184, %v183
    %v237 = vpack.c.bf16 %v186, %v185
    %v238 = vpack.c.bf16 %v188, %v187
    %v239 = vpack.c.bf16 %v190, %v189
    %v240 = vpack.c.bf16 %v192, %v191
    %v241 = vpack.c.bf16 %v194, %v193
    %v242 = vpack.c.bf16 %v196, %v195
    %v243 = vpack.c.bf16 %v198, %v197
    %v244 = vpack.c.bf16 %v200, %v199
    %v245 = vpack.c.bf16 %v202, %v201
    %v246 = vpack.c.bf16 %v204, %v203
    %v247 = vpack.c.bf16 %v206, %v205
    %v248 = vpack.c.bf16 %v208, %v207
    %v249 = vpack.c.bf16 %v210, %v209
    %v250 = vpack.c.bf16 %v212, %v211
    %v251 = vpack.c.bf16 %v214, %v213
    %v252 = vpack.c.bf16 %v216, %v215
    %v253 = vpack.c.bf16 %v218, %v217
    %v254 = vpack.c.bf16 %v220, %v219
    %v255 = vpack.c.bf16 %v222, %v221
    %v256 = vpack.c.bf16 %v224, %v223
    %v257 = vld [vmem:[#allocation5] sm:$0xf]
    %v258 = vld [vmem:[#allocation5 + $0x4] sm:$0xf]
    %v259 = vld [vmem:[#allocation5 + $0x8] sm:$0xf]
    %v260 = vld [vmem:[#allocation5 + $0xc] sm:$0xf]
    %v261 = vld [vmem:[#allocation5 + $0x10] sm:$0xf]
    %v262 = vld [vmem:[#allocation5 + $0x14] sm:$0xf]
    %v263 = vld [vmem:[#allocation5 + $0x18] sm:$0xf]
    %v264 = vld [vmem:[#allocation5 + $0x1c] sm:$0xf]
    %v265 = vld [vmem:[#allocation5 + $0x20] sm:$0xf]
    %v266 = vld [vmem:[#allocation5 + $0x24] sm:$0xf]
    %v267 = vld [vmem:[#allocation5 + $0x28] sm:$0xf]
    %v268 = vld [vmem:[#allocation5 + $0x2c] sm:$0xf]
    %v269 = vld [vmem:[#allocation5 + $0x30] sm:$0xf]
    %v270 = vld [vmem:[#allocation5 + $0x34] sm:$0xf]
    %v271 = vld [vmem:[#allocation5 + $0x38] sm:$0xf]
    %v272 = vld [vmem:[#allocation5 + $0x3c] sm:$0xf]
    %v289 = vunpack.c.l.b16 %v257
    %v290 = vunpack.c.l.b16 %v258
    %v291 = vunpack.c.l.b16 %v259
    %v292 = vunpack.c.l.b16 %v260
    %v293 = vunpack.c.l.b16 %v261
    %v294 = vunpack.c.l.b16 %v262
    %v295 = vunpack.c.l.b16 %v263
    %v296 = vunpack.c.l.b16 %v264
    %v297 = vunpack.c.l.b16 %v265
    %v298 = vunpack.c.l.b16 %v266
    %v299 = vunpack.c.l.b16 %v267
    %v300 = vunpack.c.l.b16 %v268
    %v301 = vunpack.c.l.b16 %v269
    %v302 = vunpack.c.l.b16 %v270
    %v303 = vunpack.c.l.b16 %v271
    %v304 = vunpack.c.l.b16 %v272
    %v305 = vpack.c.b16 %v290, %v289
    %v306 = vpack.c.b16 %v292, %v291
    %v307 = vpack.c.b16 %v294, %v293
    %v308 = vpack.c.b16 %v296, %v295
    %v309 = vpack.c.b16 %v298, %v297
    %v310 = vpack.c.b16 %v300, %v299
    %v311 = vpack.c.b16 %v302, %v301
    %v312 = vpack.c.b16 %v304, %v303
    %321 = vmatprep.subr.bf16.mxu0 0
    %322 = vmatpush1.bf16.msra.mxu0 %v305
    %323 = vmatprep.subr.bf16.mxu0 0
    %324 = vmatpush1.bf16.msra.mxu0 %v306
    %325 = vmatprep.subr.bf16.mxu0 0
    %326 = vmatpush1.bf16.msra.mxu0 %v307
    %327 = vmatprep.subr.bf16.mxu0 0
    %328 = vmatpush1.bf16.msra.mxu0 %v308
    %329 = vmatprep.subr.bf16.mxu0 0
    %330 = vmatpush1.bf16.msra.mxu0 %v309
    %331 = vmatprep.subr.bf16.mxu0 0
    %332 = vmatpush1.bf16.msra.mxu0 %v310
    %333 = vmatprep.subr.bf16.mxu0 0
    %334 = vmatpush1.bf16.msra.mxu0 %v311
    %335 = vmatprep.subr.bf16.mxu0 0
    %336 = vmatpush1.bf16.msra.mxu0 %v312
    %337 = vmatprep.subr.bf16.mxu0 0
    %338 = vmatpush1.bf16.msra.mxu0 0
    %339 = vmatprep.subr.bf16.mxu0 0
    %340 = vmatpush1.bf16.msra.mxu0 0
    %341 = vmatprep.subr.bf16.mxu0 0
    %342 = vmatpush1.bf16.msra.mxu0 0
    %343 = vmatprep.subr.bf16.mxu0 0
    %344 = vmatpush1.bf16.msra.mxu0 0
    %345 = vmatprep.subr.bf16.mxu0 0
    %346 = vmatpush1.bf16.msra.mxu0 0
    %347 = vmatprep.subr.bf16.mxu0 0
    %348 = vmatpush1.bf16.msra.mxu0 0
    %349 = vmatprep.subr.bf16.mxu0 0
    %350 = vmatpush1.bf16.msra.mxu0 0
    %351 = vmatprep.subr.bf16.mxu0 0
    %352 = vmatpush1.bf16.msra.mxu0 0
    %353 = vmatprep.mubr.bf16.mxu0 0
    %354 = vmatmul.mubr.bf16.gmra.mrb[0].mxu0 %v225
    %v355 = vpop.f32.mrb[0].mxu0
    %v356 = vadd.f32 0.0, %v355
    %v357 = vpop.f32.mrb[0].mxu0
    %v358 = vpop.f32.mrb[0].mxu0
    %v359 = vadd.f32 0.0, %v358
    %v360 = vpop.f32.mrb[0].mxu0
    %361 = vmatprep.mubr.bf16.mxu0 0
    %362 = vmatmul.mubr.bf16.gmra.mrb[0].mxu0 %v226
    %v363 = vpop.f32.mrb[0].mxu0
    %v364 = vadd.f32 0.0, %v363
    %v365 = vpop.f32.mrb[0].mxu0
    %v366 = vpop.f32.mrb[0].mxu0
    %v367 = vadd.f32 0.0, %v366
    %v368 = vpop.f32.mrb[0].mxu0
    %369 = vmatprep.mubr.bf16.mxu0 0
    %370 = vmatmul.mubr.bf16.gmra.mrb[0].mxu0 %v227
    %v371 = vpop.f32.mrb[0].mxu0
    %v372 = vadd.f32 0.0, %v371
    %v373 = vpop.f32.mrb[0].mxu0
    %v374 = vpop.f32.mrb[0].mxu0
    %v375 = vadd.f32 0.0, %v374
    %v376 = vpop.f32.mrb[0].mxu0
    %377 = vmatprep.mubr.bf16.mxu0 0
    %378 = vmatmul.mubr.bf16.gmra.mrb[0].mxu0 %v228
    %v379 = vpop.f32.mrb[0].mxu0
    %v380 = vadd.f32 0.0, %v379
    %v381 = vpop.f32.mrb[0].mxu0
    %v382 = vpop.f32.mrb[0].mxu0
    %v383 = vadd.f32 0.0, %v382
    %v384 = vpop.f32.mrb[0].mxu0
    %385 = vmatprep.mubr.bf16.mxu0 0
    %386 = vmatmul.mubr.bf16.gmra.mrb[0].mxu0 %v229
    %v387 = vpop.f32.mrb[0].mxu0
    %v388 = vadd.f32 0.0, %v387
    %v389 = vpop.f32.mrb[0].mxu0
    %v390 = vpop.f32.mrb[0].mxu0
    %v391 = vadd.f32 0.0, %v390
    %v392 = vpop.f32.mrb[0].mxu0
    %393 = vmatprep.mubr.bf16.mxu0 0
    %394 = vmatmul.mubr.bf16.gmra.mrb[0].mxu0 %v230
    %v395 = vpop.f32.mrb[0].mxu0
    %v396 = vadd.f32 0.0, %v395
    %v397 = vpop.f32.mrb[0].mxu0
    %v398 = vpop.f32.mrb[0].mxu0
    %v399 = vadd.f32 0.0, %v398
    %v400 = vpop.f32.mrb[0].mxu0
    %401 = vmatprep.mubr.bf16.mxu0 0
    %402 = vmatmul.mubr.bf16.gmra.mrb[0].mxu0 %v231
    %v403 = vpop.f32.mrb[0].mxu0
    %v404 = vadd.f32 0.0, %v403
    %v405 = vpop.f32.mrb[0].mxu0
    %v406 = vpop.f32.mrb[0].mxu0
    %v407 = vadd.f32 0.0, %v406
    %v408 = vpop.f32.mrb[0].mxu0
    %409 = vmatprep.mubr.bf16.mxu0 0
    %410 = vmatmul.mubr.bf16.gmra.mrb[0].mxu0 %v232
    %v411 = vpop.f32.mrb[0].mxu0
    %v412 = vadd.f32 0.0, %v411
    %v413 = vpop.f32.mrb[0].mxu0
    %v414 = vpop.f32.mrb[0].mxu0
    %v415 = vadd.f32 0.0, %v414
    %v416 = vpop.f32.mrb[0].mxu0
    %417 = vmatprep.mubr.bf16.mxu0 0
    %418 = vmatmul.mubr.bf16.gmra.mrb[0].mxu0 %v233
    %v419 = vpop.f32.mrb[0].mxu0
    %v420 = vadd.f32 0.0, %v419
    %v421 = vpop.f32.mrb[0].mxu0
    %v422 = vpop.f32.mrb[0].mxu0
    %v423 = vadd.f32 0.0, %v422
    %v424 = vpop.f32.mrb[0].mxu0
    %425 = vmatprep.mubr.bf16.mxu0 0
    %426 = vmatmul.mubr.bf16.gmra.mrb[0].mxu0 %v234
    %v427 = vpop.f32.mrb[0].mxu0
    %v428 = vadd.f32 0.0, %v427
    %v429 = vpop.f32.mrb[0].mxu0
    %v430 = vpop.f32.mrb[0].mxu0
    %v431 = vadd.f32 0.0, %v430
    %v432 = vpop.f32.mrb[0].mxu0
    %433 = vmatprep.mubr.bf16.mxu0 0
    %434 = vmatmul.mubr.bf16.gmra.mrb[0].mxu0 %v235
    %v435 = vpop.f32.mrb[0].mxu0
    %v436 = vadd.f32 0.0, %v435
    %v437 = vpop.f32.mrb[0].mxu0
    %v438 = vpop.f32.mrb[0].mxu0
    %v439 = vadd.f32 0.0, %v438
    %v440 = vpop.f32.mrb[0].mxu0
    %441 = vmatprep.mubr.bf16.mxu0 0
    %442 = vmatmul.mubr.bf16.gmra.mrb[0].mxu0 %v236
    %v443 = vpop.f32.mrb[0].mxu0
    %v444 = vadd.f32 0.0, %v443
    %v445 = vpop.f32.mrb[0].mxu0
    %v446 = vpop.f32.mrb[0].mxu0
    %v447 = vadd.f32 0.0, %v446
    %v448 = vpop.f32.mrb[0].mxu0
    %449 = vmatprep.mubr.bf16.mxu0 0
    %450 = vmatmul.mubr.bf16.gmra.mrb[0].mxu0 %v237
    %v451 = vpop.f32.mrb[0].mxu0
    %v452 = vadd.f32 0.0, %v451
    %v453 = vpop.f32.mrb[0].mxu0
    %v454 = vpop.f32.mrb[0].mxu0
    %v455 = vadd.f32 0.0, %v454
    %v456 = vpop.f32.mrb[0].mxu0
    %457 = vmatprep.mubr.bf16.mxu0 0
    %458 = vmatmul.mubr.bf16.gmra.mrb[0].mxu0 %v238
    %v459 = vpop.f32.mrb[0].mxu0
    %v460 = vadd.f32 0.0, %v459
    %v461 = vpop.f32.mrb[0].mxu0
    %v462 = vpop.f32.mrb[0].mxu0
    %v463 = vadd.f32 0.0, %v462
    %v464 = vpop.f32.mrb[0].mxu0
    %465 = vmatprep.mubr.bf16.mxu0 0
    %466 = vmatmul.mubr.bf16.gmra.mrb[0].mxu0 %v239
    %v467 = vpop.f32.mrb[0].mxu0
    %v468 = vadd.f32 0.0, %v467
    %v469 = vpop.f32.mrb[0].mxu0
    %v470 = vpop.f32.mrb[0].mxu0
    %v471 = vadd.f32 0.0, %v470
    %v472 = vpop.f32.mrb[0].mxu0
    %473 = vmatprep.mubr.bf16.mxu0 0
    %474 = vmatmul.mubr.bf16.gmra.mrb[0].mxu0 %v240
    %v475 = vpop.f32.mrb[0].mxu0
    %v476 = vadd.f32 0.0, %v475
    %v477 = vpop.f32.mrb[0].mxu0
    %v478 = vpop.f32.mrb[0].mxu0
    %v479 = vadd.f32 0.0, %v478
    %v480 = vpop.f32.mrb[0].mxu0
    %481 = vmatprep.mubr.bf16.mxu0 0
    %482 = vmatmul.mubr.bf16.gmra.mrb[0].mxu0 %v241
    %v483 = vpop.f32.mrb[0].mxu0
    %v484 = vadd.f32 0.0, %v483
    %v485 = vpop.f32.mrb[0].mxu0
    %v486 = vpop.f32.mrb[0].mxu0
    %v487 = vadd.f32 0.0, %v486
    %v488 = vpop.f32.mrb[0].mxu0
    %489 = vmatprep.mubr.bf16.mxu0 0
    %490 = vmatmul.mubr.bf16.gmra.mrb[0].mxu0 %v242
    %v491 = vpop.f32.mrb[0].mxu0
    %v492 = vadd.f32 0.0, %v491
    %v493 = vpop.f32.mrb[0].mxu0
    %v494 = vpop.f32.mrb[0].mxu0
    %v495 = vadd.f32 0.0, %v494
    %v496 = vpop.f32.mrb[0].mxu0
    %497 = vmatprep.mubr.bf16.mxu0 0
    %498 = vmatmul.mubr.bf16.gmra.mrb[0].mxu0 %v243
    %v499 = vpop.f32.mrb[0].mxu0
    %v500 = vadd.f32 0.0, %v499
    %v501 = vpop.f32.mrb[0].mxu0
    %v502 = vpop.f32.mrb[0].mxu0
    %v503 = vadd.f32 0.0, %v502
    %v504 = vpop.f32.mrb[0].mxu0
    %505 = vmatprep.mubr.bf16.mxu0 0
    %506 = vmatmul.mubr.bf16.gmra.mrb[0].mxu0 %v244
    %v507 = vpop.f32.mrb[0].mxu0
    %v508 = vadd.f32 0.0, %v507
    %v509 = vpop.f32.mrb[0].mxu0
    %v510 = vpop.f32.mrb[0].mxu0
    %v511 = vadd.f32 0.0, %v510
    %v512 = vpop.f32.mrb[0].mxu0
    %513 = vmatprep.mubr.bf16.mxu0 0
    %514 = vmatmul.mubr.bf16.gmra.mrb[0].mxu0 %v245
    %v515 = vpop.f32.mrb[0].mxu0
    %v516 = vadd.f32 0.0, %v515
    %v517 = vpop.f32.mrb[0].mxu0
    %v518 = vpop.f32.mrb[0].mxu0
    %v519 = vadd.f32 0.0, %v518
    %v520 = vpop.f32.mrb[0].mxu0
    %521 = vmatprep.mubr.bf16.mxu0 0
    %522 = vmatmul.mubr.bf16.gmra.mrb[0].mxu0 %v246
    %v523 = vpop.f32.mrb[0].mxu0
    %v524 = vadd.f32 0.0, %v523
    %v525 = vpop.f32.mrb[0].mxu0
    %v526 = vpop.f32.mrb[0].mxu0
    %v527 = vadd.f32 0.0, %v526
    %v528 = vpop.f32.mrb[0].mxu0
    %529 = vmatprep.mubr.bf16.mxu0 0
    %530 = vmatmul.mubr.bf16.gmra.mrb[0].mxu0 %v247
    %v531 = vpop.f32.mrb[0].mxu0
    %v532 = vadd.f32 0.0, %v531
    %v533 = vpop.f32.mrb[0].mxu0
    %v534 = vpop.f32.mrb[0].mxu0
    %v535 = vadd.f32 0.0, %v534
    %v536 = vpop.f32.mrb[0].mxu0
    %537 = vmatprep.mubr.bf16.mxu0 0
    %538 = vmatmul.mubr.bf16.gmra.mrb[0].mxu0 %v248
    %v539 = vpop.f32.mrb[0].mxu0
    %v540 = vadd.f32 0.0, %v539
    %v541 = vpop.f32.mrb[0].mxu0
    %v542 = vpop.f32.mrb[0].mxu0
    %v543 = vadd.f32 0.0, %v542
    %v544 = vpop.f32.mrb[0].mxu0
    %545 = vmatprep.mubr.bf16.mxu0 0
    %546 = vmatmul.mubr.bf16.gmra.mrb[0].mxu0 %v249
    %v547 = vpop.f32.mrb[0].mxu0
    %v548 = vadd.f32 0.0, %v547
    %v549 = vpop.f32.mrb[0].mxu0
    %v550 = vpop.f32.mrb[0].mxu0
    %v551 = vadd.f32 0.0, %v550
    %v552 = vpop.f32.mrb[0].mxu0
    %553 = vmatprep.mubr.bf16.mxu0 0
    %554 = vmatmul.mubr.bf16.gmra.mrb[0].mxu0 %v250
    %v555 = vpop.f32.mrb[0].mxu0
    %v556 = vadd.f32 0.0, %v555
    %v557 = vpop.f32.mrb[0].mxu0
    %v558 = vpop.f32.mrb[0].mxu0
    %v559 = vadd.f32 0.0, %v558
    %v560 = vpop.f32.mrb[0].mxu0
    %561 = vmatprep.mubr.bf16.mxu0 0
    %562 = vmatmul.mubr.bf16.gmra.mrb[0].mxu0 %v251
    %v563 = vpop.f32.mrb[0].mxu0
    %v564 = vadd.f32 0.0, %v563
    %v565 = vpop.f32.mrb[0].mxu0
    %v566 = vpop.f32.mrb[0].mxu0
    %v567 = vadd.f32 0.0, %v566
    %v568 = vpop.f32.mrb[0].mxu0
    %569 = vmatprep.mubr.bf16.mxu0 0
    %570 = vmatmul.mubr.bf16.gmra.mrb[0].mxu0 %v252
    %v571 = vpop.f32.mrb[0].mxu0
    %v572 = vadd.f32 0.0, %v571
    %v573 = vpop.f32.mrb[0].mxu0
    %v574 = vpop.f32.mrb[0].mxu0
    %v575 = vadd.f32 0.0, %v574
    %v576 = vpop.f32.mrb[0].mxu0
    %577 = vmatprep.mubr.bf16.mxu0 0
    %578 = vmatmul.mubr.bf16.gmra.mrb[0].mxu0 %v253
    %v579 = vpop.f32.mrb[0].mxu0
    %v580 = vadd.f32 0.0, %v579
    %v581 = vpop.f32.mrb[0].mxu0
    %v582 = vpop.f32.mrb[0].mxu0
    %v583 = vadd.f32 0.0, %v582
    %v584 = vpop.f32.mrb[0].mxu0
    %585 = vmatprep.mubr.bf16.mxu0 0
    %586 = vmatmul.mubr.bf16.gmra.mrb[0].mxu0 %v254
    %v587 = vpop.f32.mrb[0].mxu0
    %v588 = vadd.f32 0.0, %v587
    %v589 = vpop.f32.mrb[0].mxu0
    %v590 = vpop.f32.mrb[0].mxu0
    %v591 = vadd.f32 0.0, %v590
    %v592 = vpop.f32.mrb[0].mxu0
    %593 = vmatprep.mubr.bf16.mxu0 0
    %594 = vmatmul.mubr.bf16.gmra.mrb[0].mxu0 %v255
    %v595 = vpop.f32.mrb[0].mxu0
    %v596 = vadd.f32 0.0, %v595
    %v597 = vpop.f32.mrb[0].mxu0
    %v598 = vpop.f32.mrb[0].mxu0
    %v599 = vadd.f32 0.0, %v598
    %v600 = vpop.f32.mrb[0].mxu0
    %601 = vmatprep.mubr.bf16.mxu0 0
    %602 = vmatmul.mubr.bf16.gmra.mrb[0].mxu0 %v256
    %v603 = vpop.f32.mrb[0].mxu0
    %v604 = vadd.f32 0.0, %v603
    %v605 = vpop.f32.mrb[0].mxu0
    %v606 = vpop.f32.mrb[0].mxu0
    %v607 = vadd.f32 0.0, %v606
    %v608 = vpop.f32.mrb[0].mxu0
    %609 = vdwg.mxu0
    %v610 = vld [vmem:[#allocation7] sm:$0x1]
    %v612 = vlaneseq
    %v613 = vshrl.u32 %v612, 7
    %v614 = vsub.s32 0, %v613
    %v615 = vrot.slane %v610, %v614
    %v617 = vmul.f32 %v356, %v615
    %v618 = vmul.f32 %v359, %v615
    %v619 = vmul.f32 %v364, %v615
    %v620 = vmul.f32 %v367, %v615
    %v621 = vmul.f32 %v372, %v615
    %v622 = vmul.f32 %v375, %v615
    %v623 = vmul.f32 %v380, %v615
    %v624 = vmul.f32 %v383, %v615
    %v625 = vmul.f32 %v388, %v615
    %v626 = vmul.f32 %v391, %v615
    %v627 = vmul.f32 %v396, %v615
    %v628 = vmul.f32 %v399, %v615
    %v629 = vmul.f32 %v404, %v615
    %v630 = vmul.f32 %v407, %v615
    %v631 = vmul.f32 %v412, %v615
    %v632 = vmul.f32 %v415, %v615
    %v633 = vmul.f32 %v420, %v615
    %v634 = vmul.f32 %v423, %v615
    %v635 = vmul.f32 %v428, %v615
    %v636 = vmul.f32 %v431, %v615
    %v637 = vmul.f32 %v436, %v615
    %v638 = vmul.f32 %v439, %v615
    %v639 = vmul.f32 %v444, %v615
    %v640 = vmul.f32 %v447, %v615
    %v641 = vmul.f32 %v452, %v615
    %v642 = vmul.f32 %v455, %v615
    %v643 = vmul.f32 %v460, %v615
    %v644 = vmul.f32 %v463, %v615
    %v645 = vmul.f32 %v468, %v615
    %v646 = vmul.f32 %v471, %v615
    %v647 = vmul.f32 %v476, %v615
    %v648 = vmul.f32 %v479, %v615
    %v649 = vmul.f32 %v484, %v615
    %v650 = vmul.f32 %v487, %v615
    %v651 = vmul.f32 %v492, %v615
    %v652 = vmul.f32 %v495, %v615
    %v653 = vmul.f32 %v500, %v615
    %v654 = vmul.f32 %v503, %v615
    %v655 = vmul.f32 %v508, %v615
    %v656 = vmul.f32 %v511, %v615
    %v657 = vmul.f32 %v516, %v615
    %v658 = vmul.f32 %v519, %v615
    %v659 = vmul.f32 %v524, %v615
    %v660 = vmul.f32 %v527, %v615
    %v661 = vmul.f32 %v532, %v615
    %v662 = vmul.f32 %v535, %v615
    %v663 = vmul.f32 %v540, %v615
    %v664 = vmul.f32 %v543, %v615
    %v665 = vmul.f32 %v548, %v615
    %v666 = vmul.f32 %v551, %v615
    %v667 = vmul.f32 %v556, %v615
    %v668 = vmul.f32 %v559, %v615
    %v669 = vmul.f32 %v564, %v615
    %v670 = vmul.f32 %v567, %v615
    %v671 = vmul.f32 %v572, %v615
    %v672 = vmul.f32 %v575, %v615
    %v673 = vmul.f32 %v580, %v615
    %v674 = vmul.f32 %v583, %v615
    %v675 = vmul.f32 %v588, %v615
    %v676 = vmul.f32 %v591, %v615
    %v677 = vmul.f32 %v596, %v615
    %v678 = vmul.f32 %v599, %v615
    %v679 = vmul.f32 %v604, %v615
    %v680 = vmul.f32 %v607, %v615
    %v681 = vld [vmem:[#allocation8] sm:$0x1]
    %v683 = vlaneseq
    %v684 = vshrl.u32 %v683, 7
    %v685 = vsub.s32 0, %v684
    %v686 = vrot.slane %v681, %v685
    %v688 = vadd.f32 %v617, %v686
    %v689 = vadd.f32 %v618, %v686
    %v690 = vadd.f32 %v619, %v686
    %v691 = vadd.f32 %v620, %v686
    %v692 = vadd.f32 %v621, %v686
    %v693 = vadd.f32 %v622, %v686
    %v694 = vadd.f32 %v623, %v686
    %v695 = vadd.f32 %v624, %v686
    %v696 = vadd.f32 %v625, %v686
    %v697 = vadd.f32 %v626, %v686
    %v698 = vadd.f32 %v627, %v686
    %v699 = vadd.f32 %v628, %v686
    %v700 = vadd.f32 %v629, %v686
    %v701 = vadd.f32 %v630, %v686
    %v702 = vadd.f32 %v631, %v686
    %v703 = vadd.f32 %v632, %v686
    %v704 = vadd.f32 %v633, %v686
    %v705 = vadd.f32 %v634, %v686
    %v706 = vadd.f32 %v635, %v686
    %v707 = vadd.f32 %v636, %v686
    %v708 = vadd.f32 %v637, %v686
    %v709 = vadd.f32 %v638, %v686
    %v710 = vadd.f32 %v639, %v686
    %v711 = vadd.f32 %v640, %v686
    %v712 = vadd.f32 %v641, %v686
    %v713 = vadd.f32 %v642, %v686
    %v714 = vadd.f32 %v643, %v686
    %v715 = vadd.f32 %v644, %v686
    %v716 = vadd.f32 %v645, %v686
    %v717 = vadd.f32 %v646, %v686
    %v718 = vadd.f32 %v647, %v686
    %v719 = vadd.f32 %v648, %v686
    %v720 = vadd.f32 %v649, %v686
    %v721 = vadd.f32 %v650, %v686
    %v722 = vadd.f32 %v651, %v686
    %v723 = vadd.f32 %v652, %v686
    %v724 = vadd.f32 %v653, %v686
    %v725 = vadd.f32 %v654, %v686
    %v726 = vadd.f32 %v655, %v686
    %v727 = vadd.f32 %v656, %v686
    %v728 = vadd.f32 %v657, %v686
    %v729 = vadd.f32 %v658, %v686
    %v730 = vadd.f32 %v659, %v686
    %v731 = vadd.f32 %v660, %v686
    %v732 = vadd.f32 %v661, %v686
    %v733 = vadd.f32 %v662, %v686
    %v734 = vadd.f32 %v663, %v686
    %v735 = vadd.f32 %v664, %v686
    %v736 = vadd.f32 %v665, %v686
    %v737 = vadd.f32 %v666, %v686
    %v738 = vadd.f32 %v667, %v686
    %v739 = vadd.f32 %v668, %v686
    %v740 = vadd.f32 %v669, %v686
    %v741 = vadd.f32 %v670, %v686
    %v742 = vadd.f32 %v671, %v686
    %v743 = vadd.f32 %v672, %v686
    %v744 = vadd.f32 %v673, %v686
    %v745 = vadd.f32 %v674, %v686
    %v746 = vadd.f32 %v675, %v686
    %v747 = vadd.f32 %v676, %v686
    %v748 = vadd.f32 %v677, %v686
    %v749 = vadd.f32 %v678, %v686
    %v750 = vadd.f32 %v679, %v686
    %v751 = vadd.f32 %v680, %v686
    %v752 = vmax.f32 %v688, 0.0
    %v753 = vmax.f32 %v689, 0.0
    %v754 = vmax.f32 %v690, 0.0
    %v755 = vmax.f32 %v691, 0.0
    %v756 = vmax.f32 %v692, 0.0
    %v757 = vmax.f32 %v693, 0.0
    %v758 = vmax.f32 %v694, 0.0
    %v759 = vmax.f32 %v695, 0.0
    %v760 = vmax.f32 %v696, 0.0
    %v761 = vmax.f32 %v697, 0.0
    %v762 = vmax.f32 %v698, 0.0
    %v763 = vmax.f32 %v699, 0.0
    %v764 = vmax.f32 %v700, 0.0
    %v765 = vmax.f32 %v701, 0.0
    %v766 = vmax.f32 %v702, 0.0
    %v767 = vmax.f32 %v703, 0.0
    %v768 = vmax.f32 %v704, 0.0
    %v769 = vmax.f32 %v705, 0.0
    %v770 = vmax.f32 %v706, 0.0
    %v771 = vmax.f32 %v707, 0.0
    %v772 = vmax.f32 %v708, 0.0
    %v773 = vmax.f32 %v709, 0.0
    %v774 = vmax.f32 %v710, 0.0
    %v775 = vmax.f32 %v711, 0.0
    %v776 = vmax.f32 %v712, 0.0
    %v777 = vmax.f32 %v713, 0.0
    %v778 = vmax.f32 %v714, 0.0
    %v779 = vmax.f32 %v715, 0.0
    %v780 = vmax.f32 %v716, 0.0
    %v781 = vmax.f32 %v717, 0.0
    %v782 = vmax.f32 %v718, 0.0
    %v783 = vmax.f32 %v719, 0.0
    %v784 = vmax.f32 %v720, 0.0
    %v785 = vmax.f32 %v721, 0.0
    %v786 = vmax.f32 %v722, 0.0
    %v787 = vmax.f32 %v723, 0.0
    %v788 = vmax.f32 %v724, 0.0
    %v789 = vmax.f32 %v725, 0.0
    %v790 = vmax.f32 %v726, 0.0
    %v791 = vmax.f32 %v727, 0.0
    %v792 = vmax.f32 %v728, 0.0
    %v793 = vmax.f32 %v729, 0.0
    %v794 = vmax.f32 %v730, 0.0
    %v795 = vmax.f32 %v731, 0.0
    %v796 = vmax.f32 %v732, 0.0
    %v797 = vmax.f32 %v733, 0.0
    %v798 = vmax.f32 %v734, 0.0
    %v799 = vmax.f32 %v735, 0.0
    %v800 = vmax.f32 %v736, 0.0
    %v801 = vmax.f32 %v737, 0.0
    %v802 = vmax.f32 %v738, 0.0
    %v803 = vmax.f32 %v739, 0.0
    %v804 = vmax.f32 %v740, 0.0
    %v805 = vmax.f32 %v741, 0.0
    %v806 = vmax.f32 %v742, 0.0
    %v807 = vmax.f32 %v743, 0.0
    %v808 = vmax.f32 %v744, 0.0
    %v809 = vmax.f32 %v745, 0.0
    %v810 = vmax.f32 %v746, 0.0
    %v811 = vmax.f32 %v747, 0.0
    %v812 = vmax.f32 %v748, 0.0
    %v813 = vmax.f32 %v749, 0.0
    %v814 = vmax.f32 %v750, 0.0
    %v815 = vmax.f32 %v751, 0.0
    %vm881 = vcmask 1040384
    %v882 = vrot.slane 0.0, 7
    %v883 = vsel %vm881, %v882, %v882
    %v884 = vrot.slane %v752, 7
    %v885 = vrot.slane %v753, 7
    %v886 = vsel %vm881, %v884, %v885
    %v887 = vrot.slane %v754, 7
    %v888 = vrot.slane %v755, 7
    %v889 = vsel %vm881, %v887, %v888
    %v890 = vrot.slane %v756, 7
    %v891 = vrot.slane %v757, 7
    %v892 = vsel %vm881, %v890, %v891
    %v893 = vrot.slane %v758, 7
    %v894 = vrot.slane %v759, 7
    %v895 = vsel %vm881, %v893, %v894
    %v896 = vrot.slane %v760, 7
    %v897 = vrot.slane %v761, 7
    %v898 = vsel %vm881, %v896, %v897
    %v899 = vrot.slane %v762, 7
    %v900 = vrot.slane %v763, 7
    %v901 = vsel %vm881, %v899, %v900
    %v902 = vrot.slane %v764, 7
    %v903 = vrot.slane %v765, 7
    %v904 = vsel %vm881, %v902, %v903
    %v905 = vrot.slane %v766, 7
    %v906 = vrot.slane %v767, 7
    %v907 = vsel %vm881, %v905, %v906
    %v908 = vrot.slane %v768, 7
    %v909 = vrot.slane %v769, 7
    %v910 = vsel %vm881, %v908, %v909
    %v911 = vrot.slane %v770, 7
    %v912 = vrot.slane %v771, 7
    %v913 = vsel %vm881, %v911, %v912
    %v914 = vrot.slane %v772, 7
    %v915 = vrot.slane %v773, 7
    %v916 = vsel %vm881, %v914, %v915
    %v917 = vrot.slane %v774, 7
    %v918 = vrot.slane %v775, 7
    %v919 = vsel %vm881, %v917, %v918
    %v920 = vrot.slane %v776, 7
    %v921 = vrot.slane %v777, 7
    %v922 = vsel %vm881, %v920, %v921
    %v923 = vrot.slane %v778, 7
    %v924 = vrot.slane %v779, 7
    %v925 = vsel %vm881, %v923, %v924
    %v926 = vrot.slane %v780, 7
    %v927 = vrot.slane %v781, 7
    %v928 = vsel %vm881, %v926, %v927
    %v929 = vrot.slane %v782, 7
    %v930 = vrot.slane %v783, 7
    %v931 = vsel %vm881, %v929, %v930
    %v932 = vrot.slane %v784, 7
    %v933 = vrot.slane %v785, 7
    %v934 = vsel %vm881, %v932, %v933
    %v935 = vrot.slane %v786, 7
    %v936 = vrot.slane %v787, 7
    %v937 = vsel %vm881, %v935, %v936
    %v938 = vrot.slane %v788, 7
    %v939 = vrot.slane %v789, 7
    %v940 = vsel %vm881, %v938, %v939
    %v941 = vrot.slane %v790, 7
    %v942 = vrot.slane %v791, 7
    %v943 = vsel %vm881, %v941, %v942
    %v944 = vrot.slane %v792, 7
    %v945 = vrot.slane %v793, 7
    %v946 = vsel %vm881, %v944, %v945
    %v947 = vrot.slane %v794, 7
    %v948 = vrot.slane %v795, 7
    %v949 = vsel %vm881, %v947, %v948
    %v950 = vrot.slane %v796, 7
    %v951 = vrot.slane %v797, 7
    %v952 = vsel %vm881, %v950, %v951
    %v953 = vrot.slane %v798, 7
    %v954 = vrot.slane %v799, 7
    %v955 = vsel %vm881, %v953, %v954
    %v956 = vrot.slane %v800, 7
    %v957 = vrot.slane %v801, 7
    %v958 = vsel %vm881, %v956, %v957
    %v959 = vrot.slane %v802, 7
    %v960 = vrot.slane %v803, 7
    %v961 = vsel %vm881, %v959, %v960
    %v962 = vrot.slane %v804, 7
    %v963 = vrot.slane %v805, 7
    %v964 = vsel %vm881, %v962, %v963
    %v965 = vrot.slane %v806, 7
    %v966 = vrot.slane %v807, 7
    %v967 = vsel %vm881, %v965, %v966
    %v968 = vrot.slane %v808, 7
    %v969 = vrot.slane %v809, 7
    %v970 = vsel %vm881, %v968, %v969
    %v971 = vrot.slane %v810, 7
    %v972 = vrot.slane %v811, 7
    %v973 = vsel %vm881, %v971, %v972
    %v974 = vrot.slane %v812, 7
    %v975 = vrot.slane %v813, 7
    %v976 = vsel %vm881, %v974, %v975
    %v977 = vrot.slane %v814, 7
    %v978 = vrot.slane %v815, 7
    %v979 = vsel %vm881, %v977, %v978
    %v1078 = vsel %vm881, 0.0, %v882
    %v1079 = vsel %vm881, 0.0, %v884
    %v1080 = vsel %vm881, 0.0, %v887
    %v1081 = vsel %vm881, 0.0, %v890
    %v1082 = vsel %vm881, 0.0, %v893
    %v1083 = vsel %vm881, 0.0, %v896
    %v1084 = vsel %vm881, 0.0, %v899
    %v1085 = vsel %vm881, 0.0, %v902
    %v1086 = vsel %vm881, 0.0, %v905
    %v1087 = vsel %vm881, 0.0, %v908
    %v1088 = vsel %vm881, 0.0, %v911
    %v1089 = vsel %vm881, 0.0, %v914
    %v1090 = vsel %vm881, 0.0, %v917
    %v1091 = vsel %vm881, 0.0, %v920
    %v1092 = vsel %vm881, 0.0, %v923
    %v1093 = vsel %vm881, 0.0, %v926
    %v1094 = vsel %vm881, 0.0, %v929
    %v1095 = vsel %vm881, 0.0, %v932
    %v1096 = vsel %vm881, 0.0, %v935
    %v1097 = vsel %vm881, 0.0, %v938
    %v1098 = vsel %vm881, 0.0, %v941
    %v1099 = vsel %vm881, 0.0, %v944
    %v1100 = vsel %vm881, 0.0, %v947
    %v1101 = vsel %vm881, 0.0, %v950
    %v1102 = vsel %vm881, 0.0, %v953
    %v1103 = vsel %vm881, 0.0, %v956
    %v1104 = vsel %vm881, 0.0, %v959
    %v1105 = vsel %vm881, 0.0, %v962
    %v1106 = vsel %vm881, 0.0, %v965
    %v1107 = vsel %vm881, 0.0, %v968
    %v1108 = vsel %vm881, 0.0, %v971
    %v1109 = vsel %vm881, 0.0, %v974
    %v1110 = vsel %vm881, 0.0, %v977
    %v1111 = vsel %vm881, %v882, 0.0
    %v1112 = vsel %vm881, %v885, 0.0
    %v1113 = vsel %vm881, %v888, 0.0
    %v1114 = vsel %vm881, %v891, 0.0
    %v1115 = vsel %vm881, %v894, 0.0
    %v1116 = vsel %vm881, %v897, 0.0
    %v1117 = vsel %vm881, %v900, 0.0
    %v1118 = vsel %vm881, %v903, 0.0
    %v1119 = vsel %vm881, %v906, 0.0
    %v1120 = vsel %vm881, %v909, 0.0
    %v1121 = vsel %vm881, %v912, 0.0
    %v1122 = vsel %vm881, %v915, 0.0
    %v1123 = vsel %vm881, %v918, 0.0
    %v1124 = vsel %vm881, %v921, 0.0
    %v1125 = vsel %vm881, %v924, 0.0
    %v1126 = vsel %vm881, %v927, 0.0
    %v1127 = vsel %vm881, %v930, 0.0
    %v1128 = vsel %vm881, %v933, 0.0
    %v1129 = vsel %vm881, %v936, 0.0
    %v1130 = vsel %vm881, %v939, 0.0
    %v1131 = vsel %vm881, %v942, 0.0
    %v1132 = vsel %vm881, %v945, 0.0
    %v1133 = vsel %vm881, %v948, 0.0
    %v1134 = vsel %vm881, %v951, 0.0
    %v1135 = vsel %vm881, %v954, 0.0
    %v1136 = vsel %vm881, %v957, 0.0
    %v1137 = vsel %vm881, %v960, 0.0
    %v1138 = vsel %vm881, %v963, 0.0
    %v1139 = vsel %vm881, %v966, 0.0
    %v1140 = vsel %vm881, %v969, 0.0
    %v1141 = vsel %vm881, %v972, 0.0
    %v1142 = vsel %vm881, %v975, 0.0
    %v1143 = vsel %vm881, %v978, 0.0
    %vm1206 = vcmask 1046528
    %v1207 = vrot.slane %v1078, 1
    %v1208 = vrot.slane %v883, 1
    %v1209 = vsel %vm1206, %v1207, %v1208
    %v1210 = vrot.slane %v1111, 1
    %v1211 = vsel %vm1206, %v1208, %v1210
    %v1212 = vrot.slane %v1079, 1
    %v1213 = vrot.slane %v886, 1
    %v1214 = vsel %vm1206, %v1212, %v1213
    %v1215 = vrot.slane %v1112, 1
    %v1216 = vsel %vm1206, %v1213, %v1215
    %v1217 = vrot.slane %v1080, 1
    %v1218 = vrot.slane %v889, 1
    %v1219 = vsel %vm1206, %v1217, %v1218
    %v1220 = vrot.slane %v1113, 1
    %v1221 = vsel %vm1206, %v1218, %v1220
    %v1222 = vrot.slane %v1081, 1
    %v1223 = vrot.slane %v892, 1
    %v1224 = vsel %vm1206, %v1222, %v1223
    %v1225 = vrot.slane %v1114, 1
    %v1226 = vsel %vm1206, %v1223, %v1225
    %v1227 = vrot.slane %v1082, 1
    %v1228 = vrot.slane %v895, 1
    %v1229 = vsel %vm1206, %v1227, %v1228
    %v1230 = vrot.slane %v1115, 1
    %v1231 = vsel %vm1206, %v1228, %v1230
    %v1232 = vrot.slane %v1083, 1
    %v1233 = vrot.slane %v898, 1
    %v1234 = vsel %vm1206, %v1232, %v1233
    %v1235 = vrot.slane %v1116, 1
    %v1236 = vsel %vm1206, %v1233, %v1235
    %v1237 = vrot.slane %v1084, 1
    %v1238 = vrot.slane %v901, 1
    %v1239 = vsel %vm1206, %v1237, %v1238
    %v1240 = vrot.slane %v1117, 1
    %v1241 = vsel %vm1206, %v1238, %v1240
    %v1242 = vrot.slane %v1085, 1
    %v1243 = vrot.slane %v904, 1
    %v1244 = vsel %vm1206, %v1242, %v1243
    %v1245 = vrot.slane %v1118, 1
    %v1246 = vsel %vm1206, %v1243, %v1245
    %v1247 = vrot.slane %v1086, 1
    %v1248 = vrot.slane %v907, 1
    %v1249 = vsel %vm1206, %v1247, %v1248
    %v1250 = vrot.slane %v1119, 1
    %v1251 = vsel %vm1206, %v1248, %v1250
    %v1252 = vrot.slane %v1087, 1
    %v1253 = vrot.slane %v910, 1
    %v1254 = vsel %vm1206, %v1252, %v1253
    %v1255 = vrot.slane %v1120, 1
    %v1256 = vsel %vm1206, %v1253, %v1255
    %v1257 = vrot.slane %v1088, 1
    %v1258 = vrot.slane %v913, 1
    %v1259 = vsel %vm1206, %v1257, %v1258
    %v1260 = vrot.slane %v1121, 1
    %v1261 = vsel %vm1206, %v1258, %v1260
    %v1262 = vrot.slane %v1089, 1
    %v1263 = vrot.slane %v916, 1
    %v1264 = vsel %vm1206, %v1262, %v1263
    %v1265 = vrot.slane %v1122, 1
    %v1266 = vsel %vm1206, %v1263, %v1265
    %v1267 = vrot.slane %v1090, 1
    %v1268 = vrot.slane %v919, 1
    %v1269 = vsel %vm1206, %v1267, %v1268
    %v1270 = vrot.slane %v1123, 1
    %v1271 = vsel %vm1206, %v1268, %v1270
    %v1272 = vrot.slane %v1091, 1
    %v1273 = vrot.slane %v922, 1
    %v1274 = vsel %vm1206, %v1272, %v1273
    %v1275 = vrot.slane %v1124, 1
    %v1276 = vsel %vm1206, %v1273, %v1275
    %v1277 = vrot.slane %v1092, 1
    %v1278 = vrot.slane %v925, 1
    %v1279 = vsel %vm1206, %v1277, %v1278
    %v1280 = vrot.slane %v1125, 1
    %v1281 = vsel %vm1206, %v1278, %v1280
    %v1282 = vrot.slane %v1093, 1
    %v1283 = vrot.slane %v928, 1
    %v1284 = vsel %vm1206, %v1282, %v1283
    %v1285 = vrot.slane %v1126, 1
    %v1286 = vsel %vm1206, %v1283, %v1285
    %v1287 = vrot.slane %v1095, 1
    %v1288 = vrot.slane %v934, 1
    %v1289 = vsel %vm1206, %v1287, %v1288
    %v1290 = vrot.slane %v1128, 1
    %v1291 = vsel %vm1206, %v1288, %v1290
    %v1292 = vrot.slane %v1096, 1
    %v1293 = vrot.slane %v937, 1
    %v1294 = vsel %vm1206, %v1292, %v1293
    %v1295 = vrot.slane %v1129, 1
    %v1296 = vsel %vm1206, %v1293, %v1295
    %v1297 = vrot.slane %v1097, 1
    %v1298 = vrot.slane %v940, 1
    %v1299 = vsel %vm1206, %v1297, %v1298
    %v1300 = vrot.slane %v1130, 1
    %v1301 = vsel %vm1206, %v1298, %v1300
    %v1302 = vrot.slane %v1098, 1
    %v1303 = vrot.slane %v943, 1
    %v1304 = vsel %vm1206, %v1302, %v1303
    %v1305 = vrot.slane %v1131, 1
    %v1306 = vsel %vm1206, %v1303, %v1305
    %v1307 = vrot.slane %v1099, 1
    %v1308 = vrot.slane %v946, 1
    %v1309 = vsel %vm1206, %v1307, %v1308
    %v1310 = vrot.slane %v1132, 1
    %v1311 = vsel %vm1206, %v1308, %v1310
    %v1312 = vrot.slane %v1100, 1
    %v1313 = vrot.slane %v949, 1
    %v1314 = vsel %vm1206, %v1312, %v1313
    %v1315 = vrot.slane %v1133, 1
    %v1316 = vsel %vm1206, %v1313, %v1315
    %v1317 = vrot.slane %v1101, 1
    %v1318 = vrot.slane %v952, 1
    %v1319 = vsel %vm1206, %v1317, %v1318
    %v1320 = vrot.slane %v1134, 1
    %v1321 = vsel %vm1206, %v1318, %v1320
    %v1322 = vrot.slane %v1102, 1
    %v1323 = vrot.slane %v955, 1
    %v1324 = vsel %vm1206, %v1322, %v1323
    %v1325 = vrot.slane %v1135, 1
    %v1326 = vsel %vm1206, %v1323, %v1325
    %v1327 = vrot.slane %v1103, 1
    %v1328 = vrot.slane %v958, 1
    %v1329 = vsel %vm1206, %v1327, %v1328
    %v1330 = vrot.slane %v1136, 1
    %v1331 = vsel %vm1206, %v1328, %v1330
    %v1332 = vrot.slane %v1104, 1
    %v1333 = vrot.slane %v961, 1
    %v1334 = vsel %vm1206, %v1332, %v1333
    %v1335 = vrot.slane %v1137, 1
    %v1336 = vsel %vm1206, %v1333, %v1335
    %v1337 = vrot.slane %v1105, 1
    %v1338 = vrot.slane %v964, 1
    %v1339 = vsel %vm1206, %v1337, %v1338
    %v1340 = vrot.slane %v1138, 1
    %v1341 = vsel %vm1206, %v1338, %v1340
    %v1342 = vrot.slane %v1106, 1
    %v1343 = vrot.slane %v967, 1
    %v1344 = vsel %vm1206, %v1342, %v1343
    %v1345 = vrot.slane %v1139, 1
    %v1346 = vsel %vm1206, %v1343, %v1345
    %v1347 = vrot.slane %v1107, 1
    %v1348 = vrot.slane %v970, 1
    %v1349 = vsel %vm1206, %v1347, %v1348
    %v1350 = vrot.slane %v1140, 1
    %v1351 = vsel %vm1206, %v1348, %v1350
    %v1352 = vrot.slane %v1108, 1
    %v1353 = vrot.slane %v973, 1
    %v1354 = vsel %vm1206, %v1352, %v1353
    %v1355 = vrot.slane %v1141, 1
    %v1356 = vsel %vm1206, %v1353, %v1355
    %v1357 = vrot.slane %v1109, 1
    %v1358 = vrot.slane %v976, 1
    %v1359 = vsel %vm1206, %v1357, %v1358
    %v1360 = vrot.slane %v1142, 1
    %v1361 = vsel %vm1206, %v1358, %v1360
    %vm1424 = vcmask 1045504
    %v1425 = vrot.slane %v1078, 2
    %v1426 = vrot.slane %v883, 2
    %v1427 = vsel %vm1424, %v1425, %v1426
    %v1428 = vrot.slane %v1111, 2
    %v1429 = vsel %vm1424, %v1426, %v1428
    %v1430 = vrot.slane %v1079, 2
    %v1431 = vrot.slane %v886, 2
    %v1432 = vsel %vm1424, %v1430, %v1431
    %v1433 = vrot.slane %v1112, 2
    %v1434 = vsel %vm1424, %v1431, %v1433
    %v1435 = vrot.slane %v1080, 2
    %v1436 = vrot.slane %v889, 2
    %v1437 = vsel %vm1424, %v1435, %v1436
    %v1438 = vrot.slane %v1113, 2
    %v1439 = vsel %vm1424, %v1436, %v1438
    %v1440 = vrot.slane %v1081, 2
    %v1441 = vrot.slane %v892, 2
    %v1442 = vsel %vm1424, %v1440, %v1441
    %v1443 = vrot.slane %v1114, 2
    %v1444 = vsel %vm1424, %v1441, %v1443
    %v1445 = vrot.slane %v1082, 2
    %v1446 = vrot.slane %v895, 2
    %v1447 = vsel %vm1424, %v1445, %v1446
    %v1448 = vrot.slane %v1115, 2
    %v1449 = vsel %vm1424, %v1446, %v1448
    %v1450 = vrot.slane %v1083, 2
    %v1451 = vrot.slane %v898, 2
    %v1452 = vsel %vm1424, %v1450, %v1451
    %v1453 = vrot.slane %v1116, 2
    %v1454 = vsel %vm1424, %v1451, %v1453
    %v1455 = vrot.slane %v1084, 2
    %v1456 = vrot.slane %v901, 2
    %v1457 = vsel %vm1424, %v1455, %v1456
    %v1458 = vrot.slane %v1117, 2
    %v1459 = vsel %vm1424, %v1456, %v1458
    %v1460 = vrot.slane %v1085, 2
    %v1461 = vrot.slane %v904, 2
    %v1462 = vsel %vm1424, %v1460, %v1461
    %v1463 = vrot.slane %v1118, 2
    %v1464 = vsel %vm1424, %v1461, %v1463
    %v1465 = vrot.slane %v1086, 2
    %v1466 = vrot.slane %v907, 2
    %v1467 = vsel %vm1424, %v1465, %v1466
    %v1468 = vrot.slane %v1119, 2
    %v1469 = vsel %vm1424, %v1466, %v1468
    %v1470 = vrot.slane %v1087, 2
    %v1471 = vrot.slane %v910, 2
    %v1472 = vsel %vm1424, %v1470, %v1471
    %v1473 = vrot.slane %v1120, 2
    %v1474 = vsel %vm1424, %v1471, %v1473
    %v1475 = vrot.slane %v1088, 2
    %v1476 = vrot.slane %v913, 2
    %v1477 = vsel %vm1424, %v1475, %v1476
    %v1478 = vrot.slane %v1121, 2
    %v1479 = vsel %vm1424, %v1476, %v1478
    %v1480 = vrot.slane %v1089, 2
    %v1481 = vrot.slane %v916, 2
    %v1482 = vsel %vm1424, %v1480, %v1481
    %v1483 = vrot.slane %v1122, 2
    %v1484 = vsel %vm1424, %v1481, %v1483
    %v1485 = vrot.slane %v1090, 2
    %v1486 = vrot.slane %v919, 2
    %v1487 = vsel %vm1424, %v1485, %v1486
    %v1488 = vrot.slane %v1123, 2
    %v1489 = vsel %vm1424, %v1486, %v1488
    %v1490 = vrot.slane %v1091, 2
    %v1491 = vrot.slane %v922, 2
    %v1492 = vsel %vm1424, %v1490, %v1491
    %v1493 = vrot.slane %v1124, 2
    %v1494 = vsel %vm1424, %v1491, %v1493
    %v1495 = vrot.slane %v1092, 2
    %v1496 = vrot.slane %v925, 2
    %v1497 = vsel %vm1424, %v1495, %v1496
    %v1498 = vrot.slane %v1125, 2
    %v1499 = vsel %vm1424, %v1496, %v1498
    %v1500 = vrot.slane %v1093, 2
    %v1501 = vrot.slane %v928, 2
    %v1502 = vsel %vm1424, %v1500, %v1501
    %v1503 = vrot.slane %v1126, 2
    %v1504 = vsel %vm1424, %v1501, %v1503
    %v1505 = vrot.slane %v1095, 2
    %v1506 = vrot.slane %v934, 2
    %v1507 = vsel %vm1424, %v1505, %v1506
    %v1508 = vrot.slane %v1128, 2
    %v1509 = vsel %vm1424, %v1506, %v1508
    %v1510 = vrot.slane %v1096, 2
    %v1511 = vrot.slane %v937, 2
    %v1512 = vsel %vm1424, %v1510, %v1511
    %v1513 = vrot.slane %v1129, 2
    %v1514 = vsel %vm1424, %v1511, %v1513
    %v1515 = vrot.slane %v1097, 2
    %v1516 = vrot.slane %v940, 2
    %v1517 = vsel %vm1424, %v1515, %v1516
    %v1518 = vrot.slane %v1130, 2
    %v1519 = vsel %vm1424, %v1516, %v1518
    %v1520 = vrot.slane %v1098, 2
    %v1521 = vrot.slane %v943, 2
    %v1522 = vsel %vm1424, %v1520, %v1521
    %v1523 = vrot.slane %v1131, 2
    %v1524 = vsel %vm1424, %v1521, %v1523
    %v1525 = vrot.slane %v1099, 2
    %v1526 = vrot.slane %v946, 2
    %v1527 = vsel %vm1424, %v1525, %v1526
    %v1528 = vrot.slane %v1132, 2
    %v1529 = vsel %vm1424, %v1526, %v1528
    %v1530 = vrot.slane %v1100, 2
    %v1531 = vrot.slane %v949, 2
    %v1532 = vsel %vm1424, %v1530, %v1531
    %v1533 = vrot.slane %v1133, 2
    %v1534 = vsel %vm1424, %v1531, %v1533
    %v1535 = vrot.slane %v1101, 2
    %v1536 = vrot.slane %v952, 2
    %v1537 = vsel %vm1424, %v1535, %v1536
    %v1538 = vrot.slane %v1134, 2
    %v1539 = vsel %vm1424, %v1536, %v1538
    %v1540 = vrot.slane %v1102, 2
    %v1541 = vrot.slane %v955, 2
    %v1542 = vsel %vm1424, %v1540, %v1541
    %v1543 = vrot.slane %v1135, 2
    %v1544 = vsel %vm1424, %v1541, %v1543
    %v1545 = vrot.slane %v1103, 2
    %v1546 = vrot.slane %v958, 2
    %v1547 = vsel %vm1424, %v1545, %v1546
    %v1548 = vrot.slane %v1136, 2
    %v1549 = vsel %vm1424, %v1546, %v1548
    %v1550 = vrot.slane %v1104, 2
    %v1551 = vrot.slane %v961, 2
    %v1552 = vsel %vm1424, %v1550, %v1551
    %v1553 = vrot.slane %v1137, 2
    %v1554 = vsel %vm1424, %v1551, %v1553
    %v1555 = vrot.slane %v1105, 2
    %v1556 = vrot.slane %v964, 2
    %v1557 = vsel %vm1424, %v1555, %v1556
    %v1558 = vrot.slane %v1138, 2
    %v1559 = vsel %vm1424, %v1556, %v1558
    %v1560 = vrot.slane %v1106, 2
    %v1561 = vrot.slane %v967, 2
    %v1562 = vsel %vm1424, %v1560, %v1561
    %v1563 = vrot.slane %v1139, 2
    %v1564 = vsel %vm1424, %v1561, %v1563
    %v1565 = vrot.slane %v1107, 2
    %v1566 = vrot.slane %v970, 2
    %v1567 = vsel %vm1424, %v1565, %v1566
    %v1568 = vrot.slane %v1140, 2
    %v1569 = vsel %vm1424, %v1566, %v1568
    %v1570 = vrot.slane %v1108, 2
    %v1571 = vrot.slane %v973, 2
    %v1572 = vsel %vm1424, %v1570, %v1571
    %v1573 = vrot.slane %v1141, 2
    %v1574 = vsel %vm1424, %v1571, %v1573
    %v1575 = vrot.slane %v1109, 2
    %v1576 = vrot.slane %v976, 2
    %v1577 = vsel %vm1424, %v1575, %v1576
    %v1578 = vrot.slane %v1142, 2
    %v1579 = vsel %vm1424, %v1576, %v1578
    %v1646 = vrot.slane %v1094, 1
    %v1647 = vrot.slane %v931, 1
    %v1648 = vsel %vm1206, %v1646, %v1647
    %v1649 = vrot.slane %v1127, 1
    %v1650 = vsel %vm1206, %v1647, %v1649
    %v1651 = vrot.slane %v1110, 1
    %v1652 = vrot.slane %v979, 1
    %v1653 = vsel %vm1206, %v1651, %v1652
    %v1654 = vrot.slane %v1143, 1
    %v1655 = vsel %vm1206, %v1652, %v1654
    %v1660 = vrot.slane %v1094, 2
    %v1661 = vrot.slane %v931, 2
    %v1662 = vsel %vm1424, %v1660, %v1661
    %v1663 = vrot.slane %v1127, 2
    %v1664 = vsel %vm1424, %v1661, %v1663
    %v1665 = vrot.slane %v1110, 2
    %v1666 = vrot.slane %v979, 2
    %v1667 = vsel %vm1424, %v1665, %v1666
    %v1668 = vrot.slane %v1143, 2
    %v1669 = vsel %vm1424, %v1666, %v1668
    %v1674 = vpack.c.bf16 %v883, %v1078
    %v1675 = vpack.c.bf16 %v1211, %v1209
    %v1676 = vpack.c.bf16 %v1429, %v1427
    %v1677 = vpack.c.bf16 %v886, %v1079
    %v1678 = vpack.c.bf16 %v1216, %v1214
    %v1679 = vpack.c.bf16 %v1434, %v1432
    %v1680 = vpack.c.bf16 %v889, %v1080
    %v1681 = vpack.c.bf16 %v1221, %v1219
    %v1682 = vpack.c.bf16 %v1439, %v1437
    %v1683 = vpack.c.bf16 %v892, %v1081
    %v1684 = vpack.c.bf16 %v1226, %v1224
    %v1685 = vpack.c.bf16 %v1444, %v1442
    %v1686 = vpack.c.bf16 %v895, %v1082
    %v1687 = vpack.c.bf16 %v1231, %v1229
    %v1688 = vpack.c.bf16 %v1449, %v1447
    %v1689 = vpack.c.bf16 %v898, %v1083
    %v1690 = vpack.c.bf16 %v1236, %v1234
    %v1691 = vpack.c.bf16 %v1454, %v1452
    %v1692 = vpack.c.bf16 %v901, %v1084
    %v1693 = vpack.c.bf16 %v1241, %v1239
    %v1694 = vpack.c.bf16 %v1459, %v1457
    %v1695 = vpack.c.bf16 %v904, %v1085
    %v1696 = vpack.c.bf16 %v1246, %v1244
    %v1697 = vpack.c.bf16 %v1464, %v1462
    %v1698 = vpack.c.bf16 %v907, %v1086
    %v1699 = vpack.c.bf16 %v1251, %v1249
    %v1700 = vpack.c.bf16 %v1469, %v1467
    %v1701 = vpack.c.bf16 %v910, %v1087
    %v1702 = vpack.c.bf16 %v1256, %v1254
    %v1703 = vpack.c.bf16 %v1474, %v1472
    %v1704 = vpack.c.bf16 %v913, %v1088
    %v1705 = vpack.c.bf16 %v1261, %v1259
    %v1706 = vpack.c.bf16 %v1479, %v1477
    %v1707 = vpack.c.bf16 %v916, %v1089
    %v1708 = vpack.c.bf16 %v1266, %v1264
    %v1709 = vpack.c.bf16 %v1484, %v1482
    %v1710 = vpack.c.bf16 %v919, %v1090
    %v1711 = vpack.c.bf16 %v1271, %v1269
    %v1712 = vpack.c.bf16 %v1489, %v1487
    %v1713 = vpack.c.bf16 %v922, %v1091
    %v1714 = vpack.c.bf16 %v1276, %v1274
    %v1715 = vpack.c.bf16 %v1494, %v1492
    %v1716 = vpack.c.bf16 %v925, %v1092
    %v1717 = vpack.c.bf16 %v1281, %v1279
    %v1718 = vpack.c.bf16 %v1499, %v1497
    %v1719 = vpack.c.bf16 %v928, %v1093
    %v1720 = vpack.c.bf16 %v1286, %v1284
    %v1721 = vpack.c.bf16 %v1504, %v1502
    %v1722 = vpack.c.bf16 %v931, %v1094
    %v1723 = vpack.c.bf16 %v1650, %v1648
    %v1724 = vpack.c.bf16 %v1664, %v1662
    %v1725 = vpack.c.bf16 %v934, %v1095
    %v1726 = vpack.c.bf16 %v1291, %v1289
    %v1727 = vpack.c.bf16 %v1509, %v1507
    %v1728 = vpack.c.bf16 %v937, %v1096
    %v1729 = vpack.c.bf16 %v1296, %v1294
    %v1730 = vpack.c.bf16 %v1514, %v1512
    %v1731 = vpack.c.bf16 %v940, %v1097
    %v1732 = vpack.c.bf16 %v1301, %v1299
    %v1733 = vpack.c.bf16 %v1519, %v1517
    %v1734 = vpack.c.bf16 %v943, %v1098
    %v1735 = vpack.c.bf16 %v1306, %v1304
    %v1736 = vpack.c.bf16 %v1524, %v1522
    %v1737 = vpack.c.bf16 %v946, %v1099
    %v1738 = vpack.c.bf16 %v1311, %v1309
    %v1739 = vpack.c.bf16 %v1529, %v1527
    %v1740 = vpack.c.bf16 %v949, %v1100
    %v1741 = vpack.c.bf16 %v1316, %v1314
    %v1742 = vpack.c.bf16 %v1534, %v1532
    %v1743 = vpack.c.bf16 %v952, %v1101
    %v1744 = vpack.c.bf16 %v1321, %v1319
    %v1745 = vpack.c.bf16 %v1539, %v1537
    %v1746 = vpack.c.bf16 %v955, %v1102
    %v1747 = vpack.c.bf16 %v1326, %v1324
    %v1748 = vpack.c.bf16 %v1544, %v1542
    %v1749 = vpack.c.bf16 %v958, %v1103
    %v1750 = vpack.c.bf16 %v1331, %v1329
    %v1751 = vpack.c.bf16 %v1549, %v1547
    %v1752 = vpack.c.bf16 %v961, %v1104
    %v1753 = vpack.c.bf16 %v1336, %v1334
    %v1754 = vpack.c.bf16 %v1554, %v1552
    %v1755 = vpack.c.bf16 %v964, %v1105
    %v1756 = vpack.c.bf16 %v1341, %v1339
    %v1757 = vpack.c.bf16 %v1559, %v1557
    %v1758 = vpack.c.bf16 %v967, %v1106
    %v1759 = vpack.c.bf16 %v1346, %v1344
    %v1760 = vpack.c.bf16 %v1564, %v1562
    %v1761 = vpack.c.bf16 %v970, %v1107
    %v1762 = vpack.c.bf16 %v1351, %v1349
    %v1763 = vpack.c.bf16 %v1569, %v1567
    %v1764 = vpack.c.bf16 %v973, %v1108
    %v1765 = vpack.c.bf16 %v1356, %v1354
    %v1766 = vpack.c.bf16 %v1574, %v1572
    %v1767 = vpack.c.bf16 %v976, %v1109
    %v1768 = vpack.c.bf16 %v1361, %v1359
    %v1769 = vpack.c.bf16 %v1579, %v1577
    %v1770 = vpack.c.bf16 %v979, %v1110
    %v1771 = vpack.c.bf16 %v1655, %v1653
    %v1772 = vpack.c.bf16 %v1669, %v1667
    %v1773 = vld [vmem:[#allocation10] sm:$0xf]
    %v1774 = vld [vmem:[#allocation10 + $0x4] sm:$0xf]
    %v1775 = vld [vmem:[#allocation10 + $0x8] sm:$0xf]
    %v1776 = vld [vmem:[#allocation10 + $0xc] sm:$0xf]
    %v1777 = vld [vmem:[#allocation10 + $0x10] sm:$0xf]
    %v1778 = vld [vmem:[#allocation10 + $0x14] sm:$0xf]
    %v1779 = vld [vmem:[#allocation10 + $0x18] sm:$0xf]
    %v1780 = vld [vmem:[#allocation10 + $0x1c] sm:$0xf]
    %v1781 = vld [vmem:[#allocation10 + $0x20] sm:$0xf]
    %v1782 = vld [vmem:[#allocation10 + $0x24] sm:$0xf]
    %v1783 = vld [vmem:[#allocation10 + $0x28] sm:$0xf]
    %v1784 = vld [vmem:[#allocation10 + $0x2c] sm:$0xf]
    %v1785 = vld [vmem:[#allocation10 + $0x30] sm:$0xf]
    %v1786 = vld [vmem:[#allocation10 + $0x34] sm:$0xf]
    %v1787 = vld [vmem:[#allocation10 + $0x38] sm:$0xf]
    %v1788 = vld [vmem:[#allocation10 + $0x3c] sm:$0xf]
    %v1789 = vld [vmem:[#allocation10 + $0x40] sm:$0xf]
    %v1790 = vld [vmem:[#allocation10 + $0x44] sm:$0xf]
    %v1791 = vld [vmem:[#allocation10 + $0x48] sm:$0xf]
    %v1792 = vld [vmem:[#allocation10 + $0x4c] sm:$0xf]
    %v1793 = vld [vmem:[#allocation10 + $0x50] sm:$0xf]
    %v1794 = vld [vmem:[#allocation10 + $0x54] sm:$0xf]
    %v1795 = vld [vmem:[#allocation10 + $0x58] sm:$0xf]
    %v1796 = vld [vmem:[#allocation10 + $0x5c] sm:$0xf]
    %v1797 = vld [vmem:[#allocation10 + $0x60] sm:$0xf]
    %v1798 = vld [vmem:[#allocation10 + $0x64] sm:$0xf]
    %v1799 = vld [vmem:[#allocation10 + $0x68] sm:$0xf]
    %v1800 = vld [vmem:[#allocation10 + $0x6c] sm:$0xf]
    %v1801 = vld [vmem:[#allocation10 + $0x70] sm:$0xf]
    %v1802 = vld [vmem:[#allocation10 + $0x74] sm:$0xf]
    %v1803 = vld [vmem:[#allocation10 + $0x78] sm:$0xf]
    %v1804 = vld [vmem:[#allocation10 + $0x7c] sm:$0xf]
    %v1805 = vld [vmem:[#allocation10 + $0x80] sm:$0xf]
    %v1806 = vld [vmem:[#allocation10 + $0x84] sm:$0xf]
    %v1807 = vld [vmem:[#allocation10 + $0x88] sm:$0xf]
    %v1808 = vld [vmem:[#allocation10 + $0x8c] sm:$0xf]
    %v1809 = vld [vmem:[#allocation10 + $0x90] sm:$0xf]
    %v1810 = vld [vmem:[#allocation10 + $0x94] sm:$0xf]
    %v1811 = vld [vmem:[#allocation10 + $0x98] sm:$0xf]
    %v1812 = vld [vmem:[#allocation10 + $0x9c] sm:$0xf]
    %v1813 = vld [vmem:[#allocation10 + $0xa0] sm:$0xf]
    %v1814 = vld [vmem:[#allocation10 + $0xa4] sm:$0xf]
    %v1815 = vld [vmem:[#allocation10 + $0xa8] sm:$0xf]
    %v1816 = vld [vmem:[#allocation10 + $0xac] sm:$0xf]
    %v1817 = vld [vmem:[#allocation10 + $0xb0] sm:$0xf]
    %v1818 = vld [vmem:[#allocation10 + $0xb4] sm:$0xf]
    %v1819 = vld [vmem:[#allocation10 + $0xb8] sm:$0xf]
    %v1820 = vld [vmem:[#allocation10 + $0xbc] sm:$0xf]
    %v1821 = vld [vmem:[#allocation10 + $0xc0] sm:$0xf]
    %v1822 = vld [vmem:[#allocation10 + $0xc4] sm:$0xf]
    %v1823 = vld [vmem:[#allocation10 + $0xc8] sm:$0xf]
    %v1824 = vld [vmem:[#allocation10 + $0xcc] sm:$0xf]
    %v1825 = vld [vmem:[#allocation10 + $0xd0] sm:$0xf]
    %v1826 = vld [vmem:[#allocation10 + $0xd4] sm:$0xf]
    %v1827 = vld [vmem:[#allocation10 + $0xd8] sm:$0xf]
    %v1828 = vld [vmem:[#allocation10 + $0xdc] sm:$0xf]
    %v1829 = vld [vmem:[#allocation10 + $0xe0] sm:$0xf]
    %v1830 = vld [vmem:[#allocation10 + $0xe4] sm:$0xf]
    %v1831 = vld [vmem:[#allocation10 + $0xe8] sm:$0xf]
    %v1832 = vld [vmem:[#allocation10 + $0xec] sm:$0xf]
    %v1833 = vld [vmem:[#allocation10 + $0xf0] sm:$0xf]
    %v1834 = vld [vmem:[#allocation10 + $0xf4] sm:$0xf]
    %v1835 = vld [vmem:[#allocation10 + $0xf8] sm:$0xf]
    %v1836 = vld [vmem:[#allocation10 + $0xfc] sm:$0xf]
    %v1837 = vld [vmem:[#allocation10 + $0x100] sm:$0xf]
    %v1838 = vld [vmem:[#allocation10 + $0x104] sm:$0xf]
    %v1839 = vld [vmem:[#allocation10 + $0x108] sm:$0xf]
    %v1840 = vld [vmem:[#allocation10 + $0x10c] sm:$0xf]
    %v1841 = vld [vmem:[#allocation10 + $0x110] sm:$0xf]
    %v1842 = vld [vmem:[#allocation10 + $0x114] sm:$0xf]
    %v1843 = vld [vmem:[#allocation10 + $0x118] sm:$0xf]
    %v1844 = vld [vmem:[#allocation10 + $0x11c] sm:$0xf]
    %v1845 = vld [vmem:[#allocation10 + $0x120] sm:$0xf]
    %v1846 = vld [vmem:[#allocation10 + $0x124] sm:$0xf]
    %v1847 = vld [vmem:[#allocation10 + $0x128] sm:$0xf]
    %v1848 = vld [vmem:[#allocation10 + $0x12c] sm:$0xf]
    %v1849 = vld [vmem:[#allocation10 + $0x130] sm:$0xf]
    %v1850 = vld [vmem:[#allocation10 + $0x134] sm:$0xf]
    %v1851 = vld [vmem:[#allocation10 + $0x138] sm:$0xf]
    %v1852 = vld [vmem:[#allocation10 + $0x13c] sm:$0xf]
    %v1853 = vld [vmem:[#allocation10 + $0x140] sm:$0xf]
    %v1854 = vld [vmem:[#allocation10 + $0x144] sm:$0xf]
    %v1855 = vld [vmem:[#allocation10 + $0x148] sm:$0xf]
    %v1856 = vld [vmem:[#allocation10 + $0x14c] sm:$0xf]
    %v1857 = vld [vmem:[#allocation10 + $0x150] sm:$0xf]
    %v1858 = vld [vmem:[#allocation10 + $0x154] sm:$0xf]
    %v1859 = vld [vmem:[#allocation10 + $0x158] sm:$0xf]
    %v1860 = vld [vmem:[#allocation10 + $0x15c] sm:$0xf]
    %v1861 = vld [vmem:[#allocation10 + $0x160] sm:$0xf]
    %v1862 = vld [vmem:[#allocation10 + $0x164] sm:$0xf]
    %v1863 = vld [vmem:[#allocation10 + $0x168] sm:$0xf]
    %v1864 = vld [vmem:[#allocation10 + $0x16c] sm:$0xf]
    %v1865 = vld [vmem:[#allocation10 + $0x170] sm:$0xf]
    %v1866 = vld [vmem:[#allocation10 + $0x174] sm:$0xf]
    %v1867 = vld [vmem:[#allocation10 + $0x178] sm:$0xf]
    %v1868 = vld [vmem:[#allocation10 + $0x17c] sm:$0xf]
    %v1869 = vld [vmem:[#allocation10 + $0x180] sm:$0xf]
    %v1870 = vld [vmem:[#allocation10 + $0x184] sm:$0xf]
    %v1871 = vld [vmem:[#allocation10 + $0x188] sm:$0xf]
    %v1872 = vld [vmem:[#allocation10 + $0x18c] sm:$0xf]
    %v1873 = vld [vmem:[#allocation10 + $0x190] sm:$0xf]
    %v1874 = vld [vmem:[#allocation10 + $0x194] sm:$0xf]
    %v1875 = vld [vmem:[#allocation10 + $0x198] sm:$0xf]
    %v1876 = vld [vmem:[#allocation10 + $0x19c] sm:$0xf]
    %v1877 = vld [vmem:[#allocation10 + $0x1a0] sm:$0xf]
    %v1878 = vld [vmem:[#allocation10 + $0x1a4] sm:$0xf]
    %v1879 = vld [vmem:[#allocation10 + $0x1a8] sm:$0xf]
    %v1880 = vld [vmem:[#allocation10 + $0x1ac] sm:$0xf]
    %v1881 = vld [vmem:[#allocation10 + $0x1b0] sm:$0xf]
    %v1882 = vld [vmem:[#allocation10 + $0x1b4] sm:$0xf]
    %v1883 = vld [vmem:[#allocation10 + $0x1b8] sm:$0xf]
    %v1884 = vld [vmem:[#allocation10 + $0x1bc] sm:$0xf]
    %v1885 = vld [vmem:[#allocation10 + $0x1c0] sm:$0xf]
    %v1886 = vld [vmem:[#allocation10 + $0x1c4] sm:$0xf]
    %v1887 = vld [vmem:[#allocation10 + $0x1c8] sm:$0xf]
    %v1888 = vld [vmem:[#allocation10 + $0x1cc] sm:$0xf]
    %v1889 = vld [vmem:[#allocation10 + $0x1d0] sm:$0xf]
    %v1890 = vld [vmem:[#allocation10 + $0x1d4] sm:$0xf]
    %v1891 = vld [vmem:[#allocation10 + $0x1d8] sm:$0xf]
    %v1892 = vld [vmem:[#allocation10 + $0x1dc] sm:$0xf]
    %v1893 = vld [vmem:[#allocation10 + $0x1e0] sm:$0xf]
    %v1894 = vld [vmem:[#allocation10 + $0x1e4] sm:$0xf]
    %v1895 = vld [vmem:[#allocation10 + $0x1e8] sm:$0xf]
    %v1896 = vld [vmem:[#allocation10 + $0x1ec] sm:$0xf]
    %v1897 = vld [vmem:[#allocation10 + $0x1f0] sm:$0xf]
    %v1898 = vld [vmem:[#allocation10 + $0x1f4] sm:$0xf]
    %v1899 = vld [vmem:[#allocation10 + $0x1f8] sm:$0xf]
    %v1900 = vld [vmem:[#allocation10 + $0x1fc] sm:$0xf]
    %v1901 = vld [vmem:[#allocation10 + $0x200] sm:$0xf]
    %v1902 = vld [vmem:[#allocation10 + $0x204] sm:$0xf]
    %v1903 = vld [vmem:[#allocation10 + $0x208] sm:$0xf]
    %v1904 = vld [vmem:[#allocation10 + $0x20c] sm:$0xf]
    %v1905 = vld [vmem:[#allocation10 + $0x210] sm:$0xf]
    %v1906 = vld [vmem:[#allocation10 + $0x214] sm:$0xf]
    %v1907 = vld [vmem:[#allocation10 + $0x218] sm:$0xf]
    %v1908 = vld [vmem:[#allocation10 + $0x21c] sm:$0xf]
    %v1909 = vld [vmem:[#allocation10 + $0x220] sm:$0xf]
    %v1910 = vld [vmem:[#allocation10 + $0x224] sm:$0xf]
    %v1911 = vld [vmem:[#allocation10 + $0x228] sm:$0xf]
    %v1912 = vld [vmem:[#allocation10 + $0x22c] sm:$0xf]
    %v1913 = vld [vmem:[#allocation10 + $0x230] sm:$0xf]
    %v1914 = vld [vmem:[#allocation10 + $0x234] sm:$0xf]
    %v1915 = vld [vmem:[#allocation10 + $0x238] sm:$0xf]
    %v1916 = vld [vmem:[#allocation10 + $0x23c] sm:$0xf]
    %v2061 = vunpack.c.l.b16 %v1773
    %v2062 = vunpack.c.l.b16 %v1774
    %v2063 = vunpack.c.l.b16 %v1775
    %v2064 = vunpack.c.l.b16 %v1776
    %v2065 = vunpack.c.l.b16 %v1777
    %v2066 = vunpack.c.l.b16 %v1778
    %v2067 = vunpack.c.l.b16 %v1779
    %v2068 = vunpack.c.l.b16 %v1780
    %v2069 = vunpack.c.l.b16 %v1781
    %v2070 = vunpack.c.l.b16 %v1782
    %v2071 = vunpack.c.l.b16 %v1783
    %v2072 = vunpack.c.l.b16 %v1784
    %v2073 = vunpack.c.l.b16 %v1785
    %v2074 = vunpack.c.l.b16 %v1786
    %v2075 = vunpack.c.l.b16 %v1787
    %v2076 = vunpack.c.l.b16 %v1788
    %v2077 = vunpack.c.l.b16 %v1789
    %v2078 = vunpack.c.l.b16 %v1790
    %v2079 = vunpack.c.l.b16 %v1791
    %v2080 = vunpack.c.l.b16 %v1792
    %v2081 = vunpack.c.l.b16 %v1793
    %v2082 = vunpack.c.l.b16 %v1794
    %v2083 = vunpack.c.l.b16 %v1795
    %v2084 = vunpack.c.l.b16 %v1796
    %v2085 = vunpack.c.l.b16 %v1797
    %v2086 = vunpack.c.l.b16 %v1798
    %v2087 = vunpack.c.l.b16 %v1799
    %v2088 = vunpack.c.l.b16 %v1800
    %v2089 = vunpack.c.l.b16 %v1801
    %v2090 = vunpack.c.l.b16 %v1802
    %v2091 = vunpack.c.l.b16 %v1803
    %v2092 = vunpack.c.l.b16 %v1804
    %v2093 = vunpack.c.l.b16 %v1805
    %v2094 = vunpack.c.l.b16 %v1806
    %v2095 = vunpack.c.l.b16 %v1807
    %v2096 = vunpack.c.l.b16 %v1808
    %v2097 = vunpack.c.l.b16 %v1809
    %v2098 = vunpack.c.l.b16 %v1810
    %v2099 = vunpack.c.l.b16 %v1811
    %v2100 = vunpack.c.l.b16 %v1812
    %v2101 = vunpack.c.l.b16 %v1813
    %v2102 = vunpack.c.l.b16 %v1814
    %v2103 = vunpack.c.l.b16 %v1815
    %v2104 = vunpack.c.l.b16 %v1816
    %v2105 = vunpack.c.l.b16 %v1817
    %v2106 = vunpack.c.l.b16 %v1818
    %v2107 = vunpack.c.l.b16 %v1819
    %v2108 = vunpack.c.l.b16 %v1820
    %v2109 = vunpack.c.l.b16 %v1821
    %v2110 = vunpack.c.l.b16 %v1822
    %v2111 = vunpack.c.l.b16 %v1823
    %v2112 = vunpack.c.l.b16 %v1824
    %v2113 = vunpack.c.l.b16 %v1825
    %v2114 = vunpack.c.l.b16 %v1826
    %v2115 = vunpack.c.l.b16 %v1827
    %v2116 = vunpack.c.l.b16 %v1828
    %v2117 = vunpack.c.l.b16 %v1829
    %v2118 = vunpack.c.l.b16 %v1830
    %v2119 = vunpack.c.l.b16 %v1831
    %v2120 = vunpack.c.l.b16 %v1832
    %v2121 = vunpack.c.l.b16 %v1833
    %v2122 = vunpack.c.l.b16 %v1834
    %v2123 = vunpack.c.l.b16 %v1835
    %v2124 = vunpack.c.l.b16 %v1836
    %v2125 = vunpack.c.l.b16 %v1837
    %v2126 = vunpack.c.l.b16 %v1838
    %v2127 = vunpack.c.l.b16 %v1839
    %v2128 = vunpack.c.l.b16 %v1840
    %v2129 = vunpack.c.l.b16 %v1841
    %v2130 = vunpack.c.l.b16 %v1842
    %v2131 = vunpack.c.l.b16 %v1843
    %v2132 = vunpack.c.l.b16 %v1844
    %v2133 = vunpack.c.l.b16 %v1845
    %v2134 = vunpack.c.l.b16 %v1846
    %v2135 = vunpack.c.l.b16 %v1847
    %v2136 = vunpack.c.l.b16 %v1848
    %v2137 = vunpack.c.l.b16 %v1849
    %v2138 = vunpack.c.l.b16 %v1850
    %v2139 = vunpack.c.l.b16 %v1851
    %v2140 = vunpack.c.l.b16 %v1852
    %v2141 = vunpack.c.l.b16 %v1853
    %v2142 = vunpack.c.l.b16 %v1854
    %v2143 = vunpack.c.l.b16 %v1855
    %v2144 = vunpack.c.l.b16 %v1856
    %v2145 = vunpack.c.l.b16 %v1857
    %v2146 = vunpack.c.l.b16 %v1858
    %v2147 = vunpack.c.l.b16 %v1859
    %v2148 = vunpack.c.l.b16 %v1860
    %v2149 = vunpack.c.l.b16 %v1861
    %v2150 = vunpack.c.l.b16 %v1862
    %v2151 = vunpack.c.l.b16 %v1863
    %v2152 = vunpack.c.l.b16 %v1864
    %v2153 = vunpack.c.l.b16 %v1865
    %v2154 = vunpack.c.l.b16 %v1866
    %v2155 = vunpack.c.l.b16 %v1867
    %v2156 = vunpack.c.l.b16 %v1868
    %v2157 = vunpack.c.l.b16 %v1869
    %v2158 = vunpack.c.l.b16 %v1870
    %v2159 = vunpack.c.l.b16 %v1871
    %v2160 = vunpack.c.l.b16 %v1872
    %v2161 = vunpack.c.l.b16 %v1873
    %v2162 = vunpack.c.l.b16 %v1874
    %v2163 = vunpack.c.l.b16 %v1875
    %v2164 = vunpack.c.l.b16 %v1876
    %v2165 = vunpack.c.l.b16 %v1877
    %v2166 = vunpack.c.l.b16 %v1878
    %v2167 = vunpack.c.l.b16 %v1879
    %v2168 = vunpack.c.l.b16 %v1880
    %v2169 = vunpack.c.l.b16 %v1881
    %v2170 = vunpack.c.l.b16 %v1882
    %v2171 = vunpack.c.l.b16 %v1883
    %v2172 = vunpack.c.l.b16 %v1884
    %v2173 = vunpack.c.l.b16 %v1885
    %v2174 = vunpack.c.l.b16 %v1886
    %v2175 = vunpack.c.l.b16 %v1887
    %v2176 = vunpack.c.l.b16 %v1888
    %v2177 = vunpack.c.l.b16 %v1889
    %v2178 = vunpack.c.l.b16 %v1890
    %v2179 = vunpack.c.l.b16 %v1891
    %v2180 = vunpack.c.l.b16 %v1892
    %v2181 = vunpack.c.l.b16 %v1893
    %v2182 = vunpack.c.l.b16 %v1894
    %v2183 = vunpack.c.l.b16 %v1895
    %v2184 = vunpack.c.l.b16 %v1896
    %v2185 = vunpack.c.l.b16 %v1897
    %v2186 = vunpack.c.l.b16 %v1898
    %v2187 = vunpack.c.l.b16 %v1899
    %v2188 = vunpack.c.l.b16 %v1900
    %v2189 = vunpack.c.l.b16 %v1901
    %v2190 = vunpack.c.l.b16 %v1902
    %v2191 = vunpack.c.l.b16 %v1903
    %v2192 = vunpack.c.l.b16 %v1904
    %v2193 = vunpack.c.l.b16 %v1905
    %v2194 = vunpack.c.l.b16 %v1906
    %v2195 = vunpack.c.l.b16 %v1907
    %v2196 = vunpack.c.l.b16 %v1908
    %v2197 = vunpack.c.l.b16 %v1909
    %v2198 = vunpack.c.l.b16 %v1910
    %v2199 = vunpack.c.l.b16 %v1911
    %v2200 = vunpack.c.l.b16 %v1912
    %v2201 = vunpack.c.l.b16 %v1913
    %v2202 = vunpack.c.l.b16 %v1914
    %v2203 = vunpack.c.l.b16 %v1915
    %v2204 = vunpack.c.l.b16 %v1916
    %v2205 = vpack.c.b16 %v2062, %v2061
    %v2206 = vpack.c.b16 %v2064, %v2063
    %v2207 = vpack.c.b16 %v2066, %v2065
    %v2208 = vpack.c.b16 %v2068, %v2067
    %v2209 = vpack.c.b16 %v2070, %v2069
    %v2210 = vpack.c.b16 %v2072, %v2071
    %v2211 = vpack.c.b16 %v2074, %v2073
    %v2212 = vpack.c.b16 %v2076, %v2075
    %v2213 = vpack.c.b16 %v2078, %v2077
    %v2214 = vpack.c.b16 %v2080, %v2079
    %v2215 = vpack.c.b16 %v2082, %v2081
    %v2216 = vpack.c.b16 %v2084, %v2083
    %v2217 = vpack.c.b16 %v2086, %v2085
    %v2218 = vpack.c.b16 %v2088, %v2087
    %v2219 = vpack.c.b16 %v2090, %v2089
    %v2220 = vpack.c.b16 %v2092, %v2091
    %v2221 = vpack.c.b16 %v2094, %v2093
    %v2222 = vpack.c.b16 %v2096, %v2095
    %v2223 = vpack.c.b16 %v2098, %v2097
    %v2224 = vpack.c.b16 %v2100, %v2099
    %v2225 = vpack.c.b16 %v2102, %v2101
    %v2226 = vpack.c.b16 %v2104, %v2103
    %v2227 = vpack.c.b16 %v2106, %v2105
    %v2228 = vpack.c.b16 %v2108, %v2107
    %v2229 = vpack.c.b16 %v2110, %v2109
    %v2230 = vpack.c.b16 %v2112, %v2111
    %v2231 = vpack.c.b16 %v2114, %v2113
    %v2232 = vpack.c.b16 %v2116, %v2115
    %v2233 = vpack.c.b16 %v2118, %v2117
    %v2234 = vpack.c.b16 %v2120, %v2119
    %v2235 = vpack.c.b16 %v2122, %v2121
    %v2236 = vpack.c.b16 %v2124, %v2123
    %v2237 = vpack.c.b16 %v2126, %v2125
    %v2238 = vpack.c.b16 %v2128, %v2127
    %v2239 = vpack.c.b16 %v2130, %v2129
    %v2240 = vpack.c.b16 %v2132, %v2131
    %v2241 = vpack.c.b16 %v2134, %v2133
    %v2242 = vpack.c.b16 %v2136, %v2135
    %v2243 = vpack.c.b16 %v2138, %v2137
    %v2244 = vpack.c.b16 %v2140, %v2139
    %v2245 = vpack.c.b16 %v2142, %v2141
    %v2246 = vpack.c.b16 %v2144, %v2143
    %v2247 = vpack.c.b16 %v2146, %v2145
    %v2248 = vpack.c.b16 %v2148, %v2147
    %v2249 = vpack.c.b16 %v2150, %v2149
    %v2250 = vpack.c.b16 %v2152, %v2151
    %v2251 = vpack.c.b16 %v2154, %v2153
    %v2252 = vpack.c.b16 %v2156, %v2155
    %v2253 = vpack.c.b16 %v2158, %v2157
    %v2254 = vpack.c.b16 %v2160, %v2159
    %v2255 = vpack.c.b16 %v2162, %v2161
    %v2256 = vpack.c.b16 %v2164, %v2163
    %v2257 = vpack.c.b16 %v2166, %v2165
    %v2258 = vpack.c.b16 %v2168, %v2167
    %v2259 = vpack.c.b16 %v2170, %v2169
    %v2260 = vpack.c.b16 %v2172, %v2171
    %v2261 = vpack.c.b16 %v2174, %v2173
    %v2262 = vpack.c.b16 %v2176, %v2175
    %v2263 = vpack.c.b16 %v2178, %v2177
    %v2264 = vpack.c.b16 %v2180, %v2179
    %v2265 = vpack.c.b16 %v2182, %v2181
    %v2266 = vpack.c.b16 %v2184, %v2183
    %v2267 = vpack.c.b16 %v2186, %v2185
    %v2268 = vpack.c.b16 %v2188, %v2187
    %v2269 = vpack.c.b16 %v2190, %v2189
    %v2270 = vpack.c.b16 %v2192, %v2191
    %v2271 = vpack.c.b16 %v2194, %v2193
    %v2272 = vpack.c.b16 %v2196, %v2195
    %v2273 = vpack.c.b16 %v2198, %v2197
    %v2274 = vpack.c.b16 %v2200, %v2199
    %v2275 = vpack.c.b16 %v2202, %v2201
    %v2276 = vpack.c.b16 %v2204, %v2203
    %2349 = vmatprep.subr.bf16.mxu0 0
    %2350 = vmatpush1.bf16.msra.mxu0 %v2205
    %2351 = vmatprep.subr.bf16.mxu0 0
    %2352 = vmatpush1.bf16.msra.mxu0 %v2206
    %2353 = vmatprep.subr.bf16.mxu0 0
    %2354 = vmatpush1.bf16.msra.mxu0 %v2207
    %2355 = vmatprep.subr.bf16.mxu0 0
    %2356 = vmatpush1.bf16.msra.mxu0 %v2208
    %2357 = vmatprep.subr.bf16.mxu0 0
    %2358 = vmatpush1.bf16.msra.mxu0 %v2209
    %2359 = vmatprep.subr.bf16.mxu0 0
    %2360 = vmatpush1.bf16.msra.mxu0 %v2210
    %2361 = vmatprep.subr.bf16.mxu0 0
    %2362 = vmatpush1.bf16.msra.mxu0 %v2211
    %2363 = vmatprep.subr.bf16.mxu0 0
    %2364 = vmatpush1.bf16.msra.mxu0 %v2212
    %2365 = vmatprep.subr.bf16.mxu0 0
    %2366 = vmatpush1.bf16.msra.mxu0 %v2213
    %2367 = vmatprep.subr.bf16.mxu0 0
    %2368 = vmatpush1.bf16.msra.mxu0 %v2214
    %2369 = vmatprep.subr.bf16.mxu0 0
    %2370 = vmatpush1.bf16.msra.mxu0 %v2215
    %2371 = vmatprep.subr.bf16.mxu0 0
    %2372 = vmatpush1.bf16.msra.mxu0 %v2216
    %2373 = vmatprep.subr.bf16.mxu0 0
    %2374 = vmatpush1.bf16.msra.mxu0 %v2217
    %2375 = vmatprep.subr.bf16.mxu0 0
    %2376 = vmatpush1.bf16.msra.mxu0 %v2218
    %2377 = vmatprep.subr.bf16.mxu0 0
    %2378 = vmatpush1.bf16.msra.mxu0 %v2219
    %2379 = vmatprep.subr.bf16.mxu0 0
    %2380 = vmatpush1.bf16.msra.mxu0 %v2220
    %2381 = vmatprep.mubr.bf16.mxu0 %v1675
    %2382 = vmatmul.mubr.bf16.gmra.mrb[0].mxu0 %v1674
    %v2383 = vpop.f32.mrb[0].mxu0
    %v2384 = vadd.f32 0.0, %v2383
    %v2385 = vpop.f32.mrb[0].mxu0
    %v2386 = vpop.f32.mrb[0].mxu0
    %v2387 = vadd.f32 0.0, %v2386
    %v2388 = vpop.f32.mrb[0].mxu0
    %2389 = vmatprep.mubr.bf16.mxu0 %v1678
    %2390 = vmatmul.mubr.bf16.gmra.mrb[0].mxu0 %v1677
    %v2391 = vpop.f32.mrb[0].mxu0
    %v2392 = vadd.f32 0.0, %v2391
    %v2393 = vpop.f32.mrb[0].mxu0
    %v2394 = vpop.f32.mrb[0].mxu0
    %v2395 = vadd.f32 0.0, %v2394
    %v2396 = vpop.f32.mrb[0].mxu0
    %2397 = vmatprep.mubr.bf16.mxu0 %v1681
    %2398 = vmatmul.mubr.bf16.gmra.mrb[0].mxu0 %v1680
    %v2399 = vpop.f32.mrb[0].mxu0
    %v2400 = vadd.f32 0.0, %v2399
    %v2401 = vpop.f32.mrb[0].mxu0
    %v2402 = vpop.f32.mrb[0].mxu0
    %v2403 = vadd.f32 0.0, %v2402
    %v2404 = vpop.f32.mrb[0].mxu0
    %2405 = vmatprep.mubr.bf16.mxu0 %v1684
    %2406 = vmatmul.mubr.bf16.gmra.mrb[0].mxu0 %v1683
    %v2407 = vpop.f32.mrb[0].mxu0
    %v2408 = vadd.f32 0.0, %v2407
    %v2409 = vpop.f32.mrb[0].mxu0
    %v2410 = vpop.f32.mrb[0].mxu0
    %v2411 = vadd.f32 0.0, %v2410
    %v2412 = vpop.f32.mrb[0].mxu0
    %2413 = vmatprep.mubr.bf16.mxu0 %v1687
    %2414 = vmatmul.mubr.bf16.gmra.mrb[0].mxu0 %v1686
    %v2415 = vpop.f32.mrb[0].mxu0
    %v2416 = vadd.f32 0.0, %v2415
    %v2417 = vpop.f32.mrb[0].mxu0
    %v2418 = vpop.f32.mrb[0].mxu0
    %v2419 = vadd.f32 0.0, %v2418
    %v2420 = vpop.f32.mrb[0].mxu0
    %2421 = vmatprep.mubr.bf16.mxu0 %v1690
    %2422 = vmatmul.mubr.bf16.gmra.mrb[0].mxu0 %v1689
    %v2423 = vpop.f32.mrb[0].mxu0
    %v2424 = vadd.f32 0.0, %v2423
    %v2425 = vpop.f32.mrb[0].mxu0
    %v2426 = vpop.f32.mrb[0].mxu0
    %v2427 = vadd.f32 0.0, %v2426
    %v2428 = vpop.f32.mrb[0].mxu0
    %2429 = vmatprep.mubr.bf16.mxu0 %v1693
    %2430 = vmatmul.mubr.bf16.gmra.mrb[0].mxu0 %v1692
    %v2431 = vpop.f32.mrb[0].mxu0
    %v2432 = vadd.f32 0.0, %v2431
    %v2433 = vpop.f32.mrb[0].mxu0
    %v2434 = vpop.f32.mrb[0].mxu0
    %v2435 = vadd.f32 0.0, %v2434
    %v2436 = vpop.f32.mrb[0].mxu0
    %2437 = vmatprep.mubr.bf16.mxu0 %v1696
    %2438 = vmatmul.mubr.bf16.gmra.mrb[0].mxu0 %v1695
    %v2439 = vpop.f32.mrb[0].mxu0
    %v2440 = vadd.f32 0.0, %v2439
    %v2441 = vpop.f32.mrb[0].mxu0
    %v2442 = vpop.f32.mrb[0].mxu0
    %v2443 = vadd.f32 0.0, %v2442
    %v2444 = vpop.f32.mrb[0].mxu0
    %2445 = vmatprep.mubr.bf16.mxu0 %v1699
    %2446 = vmatmul.mubr.bf16.gmra.mrb[0].mxu0 %v1698
    %v2447 = vpop.f32.mrb[0].mxu0
    %v2448 = vadd.f32 0.0, %v2447
    %v2449 = vpop.f32.mrb[0].mxu0
    %v2450 = vpop.f32.mrb[0].mxu0
    %v2451 = vadd.f32 0.0, %v2450
    %v2452 = vpop.f32.mrb[0].mxu0
    %2453 = vmatprep.mubr.bf16.mxu0 %v1702
    %2454 = vmatmul.mubr.bf16.gmra.mrb[0].mxu0 %v1701
    %v2455 = vpop.f32.mrb[0].mxu0
    %v2456 = vadd.f32 0.0, %v2455
    %v2457 = vpop.f32.mrb[0].mxu0
    %v2458 = vpop.f32.mrb[0].mxu0
    %v2459 = vadd.f32 0.0, %v2458
    %v2460 = vpop.f32.mrb[0].mxu0
    %2461 = vmatprep.mubr.bf16.mxu0 %v1705
    %2462 = vmatmul.mubr.bf16.gmra.mrb[0].mxu0 %v1704
    %v2463 = vpop.f32.mrb[0].mxu0
    %v2464 = vadd.f32 0.0, %v2463
    %v2465 = vpop.f32.mrb[0].mxu0
    %v2466 = vpop.f32.mrb[0].mxu0
    %v2467 = vadd.f32 0.0, %v2466
    %v2468 = vpop.f32.mrb[0].mxu0
    %2469 = vmatprep.mubr.bf16.mxu0 %v1708
    %2470 = vmatmul.mubr.bf16.gmra.mrb[0].mxu0 %v1707
    %v2471 = vpop.f32.mrb[0].mxu0
    %v2472 = vadd.f32 0.0, %v2471
    %v2473 = vpop.f32.mrb[0].mxu0
    %v2474 = vpop.f32.mrb[0].mxu0
    %v2475 = vadd.f32 0.0, %v2474
    %v2476 = vpop.f32.mrb[0].mxu0
    %2477 = vmatprep.mubr.bf16.mxu0 %v1711
    %2478 = vmatmul.mubr.bf16.gmra.mrb[0].mxu0 %v1710
    %v2479 = vpop.f32.mrb[0].mxu0
    %v2480 = vadd.f32 0.0, %v2479
    %v2481 = vpop.f32.mrb[0].mxu0
    %v2482 = vpop.f32.mrb[0].mxu0
    %v2483 = vadd.f32 0.0, %v2482
    %v2484 = vpop.f32.mrb[0].mxu0
    %2485 = vmatprep.mubr.bf16.mxu0 %v1714
    %2486 = vmatmul.mubr.bf16.gmra.mrb[0].mxu0 %v1713
    %v2487 = vpop.f32.mrb[0].mxu0
    %v2488 = vadd.f32 0.0, %v2487
    %v2489 = vpop.f32.mrb[0].mxu0
    %v2490 = vpop.f32.mrb[0].mxu0
    %v2491 = vadd.f32 0.0, %v2490
    %v2492 = vpop.f32.mrb[0].mxu0
    %2493 = vmatprep.mubr.bf16.mxu0 %v1717
    %2494 = vmatmul.mubr.bf16.gmra.mrb[0].mxu0 %v1716
    %v2495 = vpop.f32.mrb[0].mxu0
    %v2496 = vadd.f32 0.0, %v2495
    %v2497 = vpop.f32.mrb[0].mxu0
    %v2498 = vpop.f32.mrb[0].mxu0
    %v2499 = vadd.f32 0.0, %v2498
    %v2500 = vpop.f32.mrb[0].mxu0
    %2501 = vmatprep.mubr.bf16.mxu0 %v1720
    %2502 = vmatmul.mubr.bf16.gmra.mrb[0].mxu0 %v1719
    %v2503 = vpop.f32.mrb[0].mxu0
    %v2504 = vadd.f32 0.0, %v2503
    %v2505 = vpop.f32.mrb[0].mxu0
    %v2506 = vpop.f32.mrb[0].mxu0
    %v2507 = vadd.f32 0.0, %v2506
    %v2508 = vpop.f32.mrb[0].mxu0
    %2509 = vmatprep.mubr.bf16.mxu0 %v1675
    %2510 = vmatmul.mubr.bf16.gmra.mrb[0].mxu0 %v1674
    %v2511 = vpop.f32.mrb[0].mxu0
    %v2512 = vadd.f32 0.0, %v2511
    %v2513 = vpop.f32.mrb[0].mxu0
    %v2514 = vpop.f32.mrb[0].mxu0
    %v2515 = vadd.f32 0.0, %v2514
    %v2516 = vpop.f32.mrb[0].mxu0
    %2517 = vmatprep.mubr.bf16.mxu0 %v1726
    %2518 = vmatmul.mubr.bf16.gmra.mrb[0].mxu0 %v1725
    %v2519 = vpop.f32.mrb[0].mxu0
    %v2520 = vadd.f32 0.0, %v2519
    %v2521 = vpop.f32.mrb[0].mxu0
    %v2522 = vpop.f32.mrb[0].mxu0
    %v2523 = vadd.f32 0.0, %v2522
    %v2524 = vpop.f32.mrb[0].mxu0
    %2525 = vmatprep.mubr.bf16.mxu0 %v1729
    %2526 = vmatmul.mubr.bf16.gmra.mrb[0].mxu0 %v1728
    %v2527 = vpop.f32.mrb[0].mxu0
    %v2528 = vadd.f32 0.0, %v2527
    %v2529 = vpop.f32.mrb[0].mxu0
    %v2530 = vpop.f32.mrb[0].mxu0
    %v2531 = vadd.f32 0.0, %v2530
    %v2532 = vpop.f32.mrb[0].mxu0
    %2533 = vmatprep.mubr.bf16.mxu0 %v1732
    %2534 = vmatmul.mubr.bf16.gmra.mrb[0].mxu0 %v1731
    %v2535 = vpop.f32.mrb[0].mxu0
    %v2536 = vadd.f32 0.0, %v2535
    %v2537 = vpop.f32.mrb[0].mxu0
    %v2538 = vpop.f32.mrb[0].mxu0
    %v2539 = vadd.f32 0.0, %v2538
    %v2540 = vpop.f32.mrb[0].mxu0
    %2541 = vmatprep.mubr.bf16.mxu0 %v1735
    %2542 = vmatmul.mubr.bf16.gmra.mrb[0].mxu0 %v1734
    %v2543 = vpop.f32.mrb[0].mxu0
    %v2544 = vadd.f32 0.0, %v2543
    %v2545 = vpop.f32.mrb[0].mxu0
    %v2546 = vpop.f32.mrb[0].mxu0
    %v2547 = vadd.f32 0.0, %v2546
    %v2548 = vpop.f32.mrb[0].mxu0
    %2549 = vmatprep.mubr.bf16.mxu0 %v1738
    %2550 = vmatmul.mubr.bf16.gmra.mrb[0].mxu0 %v1737
    %v2551 = vpop.f32.mrb[0].mxu0
    %v2552 = vadd.f32 0.0, %v2551
    %v2553 = vpop.f32.mrb[0].mxu0
    %v2554 = vpop.f32.mrb[0].mxu0
    %v2555 = vadd.f32 0.0, %v2554
    %v2556 = vpop.f32.mrb[0].mxu0
    %2557 = vmatprep.mubr.bf16.mxu0 %v1741
    %2558 = vmatmul.mubr.bf16.gmra.mrb[0].mxu0 %v1740
    %v2559 = vpop.f32.mrb[0].mxu0
    %v2560 = vadd.f32 0.0, %v2559
    %v2561 = vpop.f32.mrb[0].mxu0
    %v2562 = vpop.f32.mrb[0].mxu0
    %v2563 = vadd.f32 0.0, %v2562
    %v2564 = vpop.f32.mrb[0].mxu0
    %2565 = vmatprep.mubr.bf16.mxu0 %v1744
    %2566 = vmatmul.mubr.bf16.gmra.mrb[0].mxu0 %v1743
    %v2567 = vpop.f32.mrb[0].mxu0
    %v2568 = vadd.f32 0.0, %v2567
    %v2569 = vpop.f32.mrb[0].mxu0
    %v2570 = vpop.f32.mrb[0].mxu0
    %v2571 = vadd.f32 0.0, %v2570
    %v2572 = vpop.f32.mrb[0].mxu0
    %2573 = vmatprep.mubr.bf16.mxu0 %v1747
    %2574 = vmatmul.mubr.bf16.gmra.mrb[0].mxu0 %v1746
    %v2575 = vpop.f32.mrb[0].mxu0
    %v2576 = vadd.f32 0.0, %v2575
    %v2577 = vpop.f32.mrb[0].mxu0
    %v2578 = vpop.f32.mrb[0].mxu0
    %v2579 = vadd.f32 0.0, %v2578
    %v2580 = vpop.f32.mrb[0].mxu0
    %2581 = vmatprep.mubr.bf16.mxu0 %v1750
    %2582 = vmatmul.mubr.bf16.gmra.mrb[0].mxu0 %v1749
    %v2583 = vpop.f32.mrb[0].mxu0
    %v2584 = vadd.f32 0.0, %v2583
    %v2585 = vpop.f32.mrb[0].mxu0
    %v2586 = vpop.f32.mrb[0].mxu0
    %v2587 = vadd.f32 0.0, %v2586
    %v2588 = vpop.f32.mrb[0].mxu0
    %2589 = vmatprep.mubr.bf16.mxu0 %v1753
    %2590 = vmatmul.mubr.bf16.gmra.mrb[0].mxu0 %v1752
    %v2591 = vpop.f32.mrb[0].mxu0
    %v2592 = vadd.f32 0.0, %v2591
    %v2593 = vpop.f32.mrb[0].mxu0
    %v2594 = vpop.f32.mrb[0].mxu0
    %v2595 = vadd.f32 0.0, %v2594
    %v2596 = vpop.f32.mrb[0].mxu0
    %2597 = vmatprep.mubr.bf16.mxu0 %v1756
    %2598 = vmatmul.mubr.bf16.gmra.mrb[0].mxu0 %v1755
    %v2599 = vpop.f32.mrb[0].mxu0
    %v2600 = vadd.f32 0.0, %v2599
    %v2601 = vpop.f32.mrb[0].mxu0
    %v2602 = vpop.f32.mrb[0].mxu0
    %v2603 = vadd.f32 0.0, %v2602
    %v2604 = vpop.f32.mrb[0].mxu0
    %2605 = vmatprep.mubr.bf16.mxu0 %v1759
    %2606 = vmatmul.mubr.bf16.gmra.mrb[0].mxu0 %v1758
    %v2607 = vpop.f32.mrb[0].mxu0
    %v2608 = vadd.f32 0.0, %v2607
    %v2609 = vpop.f32.mrb[0].mxu0
    %v2610 = vpop.f32.mrb[0].mxu0
    %v2611 = vadd.f32 0.0, %v2610
    %v2612 = vpop.f32.mrb[0].mxu0
    %2613 = vmatprep.mubr.bf16.mxu0 %v1762
    %2614 = vmatmul.mubr.bf16.gmra.mrb[0].mxu0 %v1761
    %v2615 = vpop.f32.mrb[0].mxu0
    %v2616 = vadd.f32 0.0, %v2615
    %v2617 = vpop.f32.mrb[0].mxu0
    %v2618 = vpop.f32.mrb[0].mxu0
    %v2619 = vadd.f32 0.0, %v2618
    %v2620 = vpop.f32.mrb[0].mxu0
    %2621 = vmatprep.mubr.bf16.mxu0 %v1765
    %2622 = vmatmul.mubr.bf16.gmra.mrb[0].mxu0 %v1764
    %v2623 = vpop.f32.mrb[0].mxu0
    %v2624 = vadd.f32 0.0, %v2623
    %v2625 = vpop.f32.mrb[0].mxu0
    %v2626 = vpop.f32.mrb[0].mxu0
    %v2627 = vadd.f32 0.0, %v2626
    %v2628 = vpop.f32.mrb[0].mxu0
    %2629 = vmatprep.mubr.bf16.mxu0 %v1768
    %2630 = vmatmul.mubr.bf16.gmra.mrb[0].mxu0 %v1767
    %v2631 = vpop.f32.mrb[0].mxu0
    %v2632 = vadd.f32 0.0, %v2631
    %v2633 = vpop.f32.mrb[0].mxu0
    %v2634 = vpop.f32.mrb[0].mxu0
    %v2635 = vadd.f32 0.0, %v2634
    %v2636 = vpop.f32.mrb[0].mxu0
    %2637 = vdwg.mxu0
    %2638 = vmatprep.subr.bf16.mxu0 0
    %2639 = vmatpush1.bf16.msra.mxu0 %v2221
    %2640 = vmatprep.subr.bf16.mxu0 0
    %2641 = vmatpush1.bf16.msra.mxu0 %v2222
    %2642 = vmatprep.subr.bf16.mxu0 0
    %2643 = vmatpush1.bf16.msra.mxu0 %v2223
    %2644 = vmatprep.subr.bf16.mxu0 0
    %2645 = vmatpush1.bf16.msra.mxu0 %v2224
    %2646 = vmatprep.subr.bf16.mxu0 0
    %2647 = vmatpush1.bf16.msra.mxu0 %v2225
    %2648 = vmatprep.subr.bf16.mxu0 0
    %2649 = vmatpush1.bf16.msra.mxu0 %v2226
    %2650 = vmatprep.subr.bf16.mxu0 0
    %2651 = vmatpush1.bf16.msra.mxu0 %v2227
    %2652 = vmatprep.subr.bf16.mxu0 0
    %2653 = vmatpush1.bf16.msra.mxu0 %v2228
    %2654 = vmatprep.subr.bf16.mxu0 0
    %2655 = vmatpush1.bf16.msra.mxu0 %v2229
    %2656 = vmatprep.subr.bf16.mxu0 0
    %2657 = vmatpush1.bf16.msra.mxu0 %v2230
    %2658 = vmatprep.subr.bf16.mxu0 0
    %2659 = vmatpush1.bf16.msra.mxu0 %v2231
    %2660 = vmatprep.subr.bf16.mxu0 0
    %2661 = vmatpush1.bf16.msra.mxu0 %v2232
    %2662 = vmatprep.subr.bf16.mxu0 0
    %2663 = vmatpush1.bf16.msra.mxu0 %v2233
    %2664 = vmatprep.subr.bf16.mxu0 0
    %2665 = vmatpush1.bf16.msra.mxu0 %v2234
    %2666 = vmatprep.subr.bf16.mxu0 0
    %2667 = vmatpush1.bf16.msra.mxu0 %v2235
    %2668 = vmatprep.subr.bf16.mxu0 0
    %2669 = vmatpush1.bf16.msra.mxu0 %v2236
    %2670 = vmatprep.mubr.bf16.mxu0 %v1677
    %2671 = vmatmul.mubr.bf16.gmra.mrb[0].mxu0 %v1676
    %v2672 = vpop.f32.mrb[0].mxu0
    %v2673 = vadd.f32 %v2384, %v2672
    %v2674 = vpop.f32.mrb[0].mxu0
    %v2675 = vpop.f32.mrb[0].mxu0
    %v2676 = vadd.f32 %v2387, %v2675
    %v2677 = vpop.f32.mrb[0].mxu0
    %2678 = vmatprep.mubr.bf16.mxu0 %v1680
    %2679 = vmatmul.mubr.bf16.gmra.mrb[0].mxu0 %v1679
    %v2680 = vpop.f32.mrb[0].mxu0
    %v2681 = vadd.f32 %v2392, %v2680
    %v2682 = vpop.f32.mrb[0].mxu0
    %v2683 = vpop.f32.mrb[0].mxu0
    %v2684 = vadd.f32 %v2395, %v2683
    %v2685 = vpop.f32.mrb[0].mxu0
    %2686 = vmatprep.mubr.bf16.mxu0 %v1683
    %2687 = vmatmul.mubr.bf16.gmra.mrb[0].mxu0 %v1682
    %v2688 = vpop.f32.mrb[0].mxu0
    %v2689 = vadd.f32 %v2400, %v2688
    %v2690 = vpop.f32.mrb[0].mxu0
    %v2691 = vpop.f32.mrb[0].mxu0
    %v2692 = vadd.f32 %v2403, %v2691
    %v2693 = vpop.f32.mrb[0].mxu0
    %2694 = vmatprep.mubr.bf16.mxu0 %v1686
    %2695 = vmatmul.mubr.bf16.gmra.mrb[0].mxu0 %v1685
    %v2696 = vpop.f32.mrb[0].mxu0
    %v2697 = vadd.f32 %v2408, %v2696
    %v2698 = vpop.f32.mrb[0].mxu0
    %v2699 = vpop.f32.mrb[0].mxu0
    %v2700 = vadd.f32 %v2411, %v2699
    %v2701 = vpop.f32.mrb[0].mxu0
    %2702 = vmatprep.mubr.bf16.mxu0 %v1689
    %2703 = vmatmul.mubr.bf16.gmra.mrb[0].mxu0 %v1688
    %v2704 = vpop.f32.mrb[0].mxu0
    %v2705 = vadd.f32 %v2416, %v2704
    %v2706 = vpop.f32.mrb[0].mxu0
    %v2707 = vpop.f32.mrb[0].mxu0
    %v2708 = vadd.f32 %v2419, %v2707
    %v2709 = vpop.f32.mrb[0].mxu0
    %2710 = vmatprep.mubr.bf16.mxu0 %v1692
    %2711 = vmatmul.mubr.bf16.gmra.mrb[0].mxu0 %v1691
    %v2712 = vpop.f32.mrb[0].mxu0
    %v2713 = vadd.f32 %v2424, %v2712
    %v2714 = vpop.f32.mrb[0].mxu0
    %v2715 = vpop.f32.mrb[0].mxu0
    %v2716 = vadd.f32 %v2427, %v2715
    %v2717 = vpop.f32.mrb[0].mxu0
    %2718 = vmatprep.mubr.bf16.mxu0 %v1695
    %2719 = vmatmul.mubr.bf16.gmra.mrb[0].mxu0 %v1694
    %v2720 = vpop.f32.mrb[0].mxu0
    %v2721 = vadd.f32 %v2432, %v2720
    %v2722 = vpop.f32.mrb[0].mxu0
    %v2723 = vpop.f32.mrb[0].mxu0
    %v2724 = vadd.f32 %v2435, %v2723
    %v2725 = vpop.f32.mrb[0].mxu0
    %2726 = vmatprep.mubr.bf16.mxu0 %v1698
    %2727 = vmatmul.mubr.bf16.gmra.mrb[0].mxu0 %v1697
    %v2728 = vpop.f32.mrb[0].mxu0
    %v2729 = vadd.f32 %v2440, %v2728
    %v2730 = vpop.f32.mrb[0].mxu0
    %v2731 = vpop.f32.mrb[0].mxu0
    %v2732 = vadd.f32 %v2443, %v2731
    %v2733 = vpop.f32.mrb[0].mxu0
    %2734 = vmatprep.mubr.bf16.mxu0 %v1701
    %2735 = vmatmul.mubr.bf16.gmra.mrb[0].mxu0 %v1700
    %v2736 = vpop.f32.mrb[0].mxu0
    %v2737 = vadd.f32 %v2448, %v2736
    %v2738 = vpop.f32.mrb[0].mxu0
    %v2739 = vpop.f32.mrb[0].mxu0
    %v2740 = vadd.f32 %v2451, %v2739
    %v2741 = vpop.f32.mrb[0].mxu0
    %2742 = vmatprep.mubr.bf16.mxu0 %v1704
    %2743 = vmatmul.mubr.bf16.gmra.mrb[0].mxu0 %v1703
    %v2744 = vpop.f32.mrb[0].mxu0
    %v2745 = vadd.f32 %v2456, %v2744
    %v2746 = vpop.f32.mrb[0].mxu0
    %v2747 = vpop.f32.mrb[0].mxu0
    %v2748 = vadd.f32 %v2459, %v2747
    %v2749 = vpop.f32.mrb[0].mxu0
    %2750 = vmatprep.mubr.bf16.mxu0 %v1707
    %2751 = vmatmul.mubr.bf16.gmra.mrb[0].mxu0 %v1706
    %v2752 = vpop.f32.mrb[0].mxu0
    %v2753 = vadd.f32 %v2464, %v2752
    %v2754 = vpop.f32.mrb[0].mxu0
    %v2755 = vpop.f32.mrb[0].mxu0
    %v2756 = vadd.f32 %v2467, %v2755
    %v2757 = vpop.f32.mrb[0].mxu0
    %2758 = vmatprep.mubr.bf16.mxu0 %v1710
    %2759 = vmatmul.mubr.bf16.gmra.mrb[0].mxu0 %v1709
    %v2760 = vpop.f32.mrb[0].mxu0
    %v2761 = vadd.f32 %v2472, %v2760
    %v2762 = vpop.f32.mrb[0].mxu0
    %v2763 = vpop.f32.mrb[0].mxu0
    %v2764 = vadd.f32 %v2475, %v2763
    %v2765 = vpop.f32.mrb[0].mxu0
    %2766 = vmatprep.mubr.bf16.mxu0 %v1713
    %2767 = vmatmul.mubr.bf16.gmra.mrb[0].mxu0 %v1712
    %v2768 = vpop.f32.mrb[0].mxu0
    %v2769 = vadd.f32 %v2480, %v2768
    %v2770 = vpop.f32.mrb[0].mxu0
    %v2771 = vpop.f32.mrb[0].mxu0
    %v2772 = vadd.f32 %v2483, %v2771
    %v2773 = vpop.f32.mrb[0].mxu0
    %2774 = vmatprep.mubr.bf16.mxu0 %v1716
    %2775 = vmatmul.mubr.bf16.gmra.mrb[0].mxu0 %v1715
    %v2776 = vpop.f32.mrb[0].mxu0
    %v2777 = vadd.f32 %v2488, %v2776
    %v2778 = vpop.f32.mrb[0].mxu0
    %v2779 = vpop.f32.mrb[0].mxu0
    %v2780 = vadd.f32 %v2491, %v2779
    %v2781 = vpop.f32.mrb[0].mxu0
    %2782 = vmatprep.mubr.bf16.mxu0 %v1719
    %2783 = vmatmul.mubr.bf16.gmra.mrb[0].mxu0 %v1718
    %v2784 = vpop.f32.mrb[0].mxu0
    %v2785 = vadd.f32 %v2496, %v2784
    %v2786 = vpop.f32.mrb[0].mxu0
    %v2787 = vpop.f32.mrb[0].mxu0
    %v2788 = vadd.f32 %v2499, %v2787
    %v2789 = vpop.f32.mrb[0].mxu0
    %2790 = vmatprep.mubr.bf16.mxu0 %v1722
    %2791 = vmatmul.mubr.bf16.gmra.mrb[0].mxu0 %v1721
    %v2792 = vpop.f32.mrb[0].mxu0
    %v2793 = vadd.f32 %v2504, %v2792
    %v2794 = vpop.f32.mrb[0].mxu0
    %v2795 = vpop.f32.mrb[0].mxu0
    %v2796 = vadd.f32 %v2507, %v2795
    %v2797 = vpop.f32.mrb[0].mxu0
    %2798 = vmatprep.mubr.bf16.mxu0 %v1725
    %2799 = vmatmul.mubr.bf16.gmra.mrb[0].mxu0 %v1676
    %v2800 = vpop.f32.mrb[0].mxu0
    %v2801 = vadd.f32 %v2512, %v2800
    %v2802 = vpop.f32.mrb[0].mxu0
    %v2803 = vpop.f32.mrb[0].mxu0
    %v2804 = vadd.f32 %v2515, %v2803
    %v2805 = vpop.f32.mrb[0].mxu0
    %2806 = vmatprep.mubr.bf16.mxu0 %v1728
    %2807 = vmatmul.mubr.bf16.gmra.mrb[0].mxu0 %v1727
    %v2808 = vpop.f32.mrb[0].mxu0
    %v2809 = vadd.f32 %v2520, %v2808
    %v2810 = vpop.f32.mrb[0].mxu0
    %v2811 = vpop.f32.mrb[0].mxu0
    %v2812 = vadd.f32 %v2523, %v2811
    %v2813 = vpop.f32.mrb[0].mxu0
    %2814 = vmatprep.mubr.bf16.mxu0 %v1731
    %2815 = vmatmul.mubr.bf16.gmra.mrb[0].mxu0 %v1730
    %v2816 = vpop.f32.mrb[0].mxu0
    %v2817 = vadd.f32 %v2528, %v2816
    %v2818 = vpop.f32.mrb[0].mxu0
    %v2819 = vpop.f32.mrb[0].mxu0
    %v2820 = vadd.f32 %v2531, %v2819
    %v2821 = vpop.f32.mrb[0].mxu0
    %2822 = vmatprep.mubr.bf16.mxu0 %v1734
    %2823 = vmatmul.mubr.bf16.gmra.mrb[0].mxu0 %v1733
    %v2824 = vpop.f32.mrb[0].mxu0
    %v2825 = vadd.f32 %v2536, %v2824
    %v2826 = vpop.f32.mrb[0].mxu0
    %v2827 = vpop.f32.mrb[0].mxu0
    %v2828 = vadd.f32 %v2539, %v2827
    %v2829 = vpop.f32.mrb[0].mxu0
    %2830 = vmatprep.mubr.bf16.mxu0 %v1737
    %2831 = vmatmul.mubr.bf16.gmra.mrb[0].mxu0 %v1736
    %v2832 = vpop.f32.mrb[0].mxu0
    %v2833 = vadd.f32 %v2544, %v2832
    %v2834 = vpop.f32.mrb[0].mxu0
    %v2835 = vpop.f32.mrb[0].mxu0
    %v2836 = vadd.f32 %v2547, %v2835
    %v2837 = vpop.f32.mrb[0].mxu0
    %2838 = vmatprep.mubr.bf16.mxu0 %v1740
    %2839 = vmatmul.mubr.bf16.gmra.mrb[0].mxu0 %v1739
    %v2840 = vpop.f32.mrb[0].mxu0
    %v2841 = vadd.f32 %v2552, %v2840
    %v2842 = vpop.f32.mrb[0].mxu0
    %v2843 = vpop.f32.mrb[0].mxu0
    %v2844 = vadd.f32 %v2555, %v2843
    %v2845 = vpop.f32.mrb[0].mxu0
    %2846 = vmatprep.mubr.bf16.mxu0 %v1743
    %2847 = vmatmul.mubr.bf16.gmra.mrb[0].mxu0 %v1742
    %v2848 = vpop.f32.mrb[0].mxu0
    %v2849 = vadd.f32 %v2560, %v2848
    %v2850 = vpop.f32.mrb[0].mxu0
    %v2851 = vpop.f32.mrb[0].mxu0
    %v2852 = vadd.f32 %v2563, %v2851
    %v2853 = vpop.f32.mrb[0].mxu0
    %2854 = vmatprep.mubr.bf16.mxu0 %v1746
    %2855 = vmatmul.mubr.bf16.gmra.mrb[0].mxu0 %v1745
    %v2856 = vpop.f32.mrb[0].mxu0
    %v2857 = vadd.f32 %v2568, %v2856
    %v2858 = vpop.f32.mrb[0].mxu0
    %v2859 = vpop.f32.mrb[0].mxu0
    %v2860 = vadd.f32 %v2571, %v2859
    %v2861 = vpop.f32.mrb[0].mxu0
    %2862 = vmatprep.mubr.bf16.mxu0 %v1749
    %2863 = vmatmul.mubr.bf16.gmra.mrb[0].mxu0 %v1748
    %v2864 = vpop.f32.mrb[0].mxu0
    %v2865 = vadd.f32 %v2576, %v2864
    %v2866 = vpop.f32.mrb[0].mxu0
    %v2867 = vpop.f32.mrb[0].mxu0
    %v2868 = vadd.f32 %v2579, %v2867
    %v2869 = vpop.f32.mrb[0].mxu0
    %2870 = vmatprep.mubr.bf16.mxu0 %v1752
    %2871 = vmatmul.mubr.bf16.gmra.mrb[0].mxu0 %v1751
    %v2872 = vpop.f32.mrb[0].mxu0
    %v2873 = vadd.f32 %v2584, %v2872
    %v2874 = vpop.f32.mrb[0].mxu0
    %v2875 = vpop.f32.mrb[0].mxu0
    %v2876 = vadd.f32 %v2587, %v2875
    %v2877 = vpop.f32.mrb[0].mxu0
    %2878 = vmatprep.mubr.bf16.mxu0 %v1755
    %2879 = vmatmul.mubr.bf16.gmra.mrb[0].mxu0 %v1754
    %v2880 = vpop.f32.mrb[0].mxu0
    %v2881 = vadd.f32 %v2592, %v2880
    %v2882 = vpop.f32.mrb[0].mxu0
    %v2883 = vpop.f32.mrb[0].mxu0
    %v2884 = vadd.f32 %v2595, %v2883
    %v2885 = vpop.f32.mrb[0].mxu0
    %2886 = vmatprep.mubr.bf16.mxu0 %v1758
    %2887 = vmatmul.mubr.bf16.gmra.mrb[0].mxu0 %v1757
    %v2888 = vpop.f32.mrb[0].mxu0
    %v2889 = vadd.f32 %v2600, %v2888
    %v2890 = vpop.f32.mrb[0].mxu0
    %v2891 = vpop.f32.mrb[0].mxu0
    %v2892 = vadd.f32 %v2603, %v2891
    %v2893 = vpop.f32.mrb[0].mxu0
    %2894 = vmatprep.mubr.bf16.mxu0 %v1761
    %2895 = vmatmul.mubr.bf16.gmra.mrb[0].mxu0 %v1760
    %v2896 = vpop.f32.mrb[0].mxu0
    %v2897 = vadd.f32 %v2608, %v2896
    %v2898 = vpop.f32.mrb[0].mxu0
    %v2899 = vpop.f32.mrb[0].mxu0
    %v2900 = vadd.f32 %v2611, %v2899
    %v2901 = vpop.f32.mrb[0].mxu0
    %2902 = vmatprep.mubr.bf16.mxu0 %v1764
    %2903 = vmatmul.mubr.bf16.gmra.mrb[0].mxu0 %v1763
    %v2904 = vpop.f32.mrb[0].mxu0
    %v2905 = vadd.f32 %v2616, %v2904
    %v2906 = vpop.f32.mrb[0].mxu0
    %v2907 = vpop.f32.mrb[0].mxu0
    %v2908 = vadd.f32 %v2619, %v2907
    %v2909 = vpop.f32.mrb[0].mxu0
    %2910 = vmatprep.mubr.bf16.mxu0 %v1767
    %2911 = vmatmul.mubr.bf16.gmra.mrb[0].mxu0 %v1766
    %v2912 = vpop.f32.mrb[0].mxu0
    %v2913 = vadd.f32 %v2624, %v2912
    %v2914 = vpop.f32.mrb[0].mxu0
    %v2915 = vpop.f32.mrb[0].mxu0
    %v2916 = vadd.f32 %v2627, %v2915
    %v2917 = vpop.f32.mrb[0].mxu0
    %2918 = vmatprep.mubr.bf16.mxu0 %v1770
    %2919 = vmatmul.mubr.bf16.gmra.mrb[0].mxu0 %v1769
    %v2920 = vpop.f32.mrb[0].mxu0
    %v2921 = vadd.f32 %v2632, %v2920
    %v2922 = vpop.f32.mrb[0].mxu0
    %v2923 = vpop.f32.mrb[0].mxu0
    %v2924 = vadd.f32 %v2635, %v2923
    %v2925 = vpop.f32.mrb[0].mxu0
    %2926 = vdwg.mxu0
    %2927 = vmatprep.subr.bf16.mxu0 0
    %2928 = vmatpush1.bf16.msra.mxu0 %v2237
    %2929 = vmatprep.subr.bf16.mxu0 0
    %2930 = vmatpush1.bf16.msra.mxu0 %v2238
    %2931 = vmatprep.subr.bf16.mxu0 0
    %2932 = vmatpush1.bf16.msra.mxu0 %v2239
    %2933 = vmatprep.subr.bf16.mxu0 0
    %2934 = vmatpush1.bf16.msra.mxu0 %v2240
    %2935 = vmatprep.subr.bf16.mxu0 0
    %2936 = vmatpush1.bf16.msra.mxu0 %v2241
    %2937 = vmatprep.subr.bf16.mxu0 0
    %2938 = vmatpush1.bf16.msra.mxu0 %v2242
    %2939 = vmatprep.subr.bf16.mxu0 0
    %2940 = vmatpush1.bf16.msra.mxu0 %v2243
    %2941 = vmatprep.subr.bf16.mxu0 0
    %2942 = vmatpush1.bf16.msra.mxu0 %v2244
    %2943 = vmatprep.subr.bf16.mxu0 0
    %2944 = vmatpush1.bf16.msra.mxu0 %v2245
    %2945 = vmatprep.subr.bf16.mxu0 0
    %2946 = vmatpush1.bf16.msra.mxu0 %v2246
    %2947 = vmatprep.subr.bf16.mxu0 0
    %2948 = vmatpush1.bf16.msra.mxu0 %v2247
    %2949 = vmatprep.subr.bf16.mxu0 0
    %2950 = vmatpush1.bf16.msra.mxu0 %v2248
    %2951 = vmatprep.subr.bf16.mxu0 0
    %2952 = vmatpush1.bf16.msra.mxu0 %v2249
    %2953 = vmatprep.subr.bf16.mxu0 0
    %2954 = vmatpush1.bf16.msra.mxu0 %v2250
    %2955 = vmatprep.subr.bf16.mxu0 0
    %2956 = vmatpush1.bf16.msra.mxu0 %v2251
    %2957 = vmatprep.subr.bf16.mxu0 0
    %2958 = vmatpush1.bf16.msra.mxu0 %v2252
    %2959 = vmatprep.mubr.bf16.mxu0 %v1679
    %2960 = vmatmul.mubr.bf16.gmra.mrb[0].mxu0 %v1678
    %v2961 = vpop.f32.mrb[0].mxu0
    %v2962 = vadd.f32 %v2673, %v2961
    %v2963 = vpop.f32.mrb[0].mxu0
    %v2964 = vpop.f32.mrb[0].mxu0
    %v2965 = vadd.f32 %v2676, %v2964
    %v2966 = vpop.f32.mrb[0].mxu0
    %2967 = vmatprep.mubr.bf16.mxu0 %v1682
    %2968 = vmatmul.mubr.bf16.gmra.mrb[0].mxu0 %v1681
    %v2969 = vpop.f32.mrb[0].mxu0
    %v2970 = vadd.f32 %v2681, %v2969
    %v2971 = vpop.f32.mrb[0].mxu0
    %v2972 = vpop.f32.mrb[0].mxu0
    %v2973 = vadd.f32 %v2684, %v2972
    %v2974 = vpop.f32.mrb[0].mxu0
    %2975 = vmatprep.mubr.bf16.mxu0 %v1685
    %2976 = vmatmul.mubr.bf16.gmra.mrb[0].mxu0 %v1684
    %v2977 = vpop.f32.mrb[0].mxu0
    %v2978 = vadd.f32 %v2689, %v2977
    %v2979 = vpop.f32.mrb[0].mxu0
    %v2980 = vpop.f32.mrb[0].mxu0
    %v2981 = vadd.f32 %v2692, %v2980
    %v2982 = vpop.f32.mrb[0].mxu0
    %2983 = vmatprep.mubr.bf16.mxu0 %v1688
    %2984 = vmatmul.mubr.bf16.gmra.mrb[0].mxu0 %v1687
    %v2985 = vpop.f32.mrb[0].mxu0
    %v2986 = vadd.f32 %v2697, %v2985
    %v2987 = vpop.f32.mrb[0].mxu0
    %v2988 = vpop.f32.mrb[0].mxu0
    %v2989 = vadd.f32 %v2700, %v2988
    %v2990 = vpop.f32.mrb[0].mxu0
    %2991 = vmatprep.mubr.bf16.mxu0 %v1691
    %2992 = vmatmul.mubr.bf16.gmra.mrb[0].mxu0 %v1690
    %v2993 = vpop.f32.mrb[0].mxu0
    %v2994 = vadd.f32 %v2705, %v2993
    %v2995 = vpop.f32.mrb[0].mxu0
    %v2996 = vpop.f32.mrb[0].mxu0
    %v2997 = vadd.f32 %v2708, %v2996
    %v2998 = vpop.f32.mrb[0].mxu0
    %2999 = vmatprep.mubr.bf16.mxu0 %v1694
    %3000 = vmatmul.mubr.bf16.gmra.mrb[0].mxu0 %v1693
    %v3001 = vpop.f32.mrb[0].mxu0
    %v3002 = vadd.f32 %v2713, %v3001
    %v3003 = vpop.f32.mrb[0].mxu0
    %v3004 = vpop.f32.mrb[0].mxu0
    %v3005 = vadd.f32 %v2716, %v3004
    %v3006 = vpop.f32.mrb[0].mxu0
    %3007 = vmatprep.mubr.bf16.mxu0 %v1697
    %3008 = vmatmul.mubr.bf16.gmra.mrb[0].mxu0 %v1696
    %v3009 = vpop.f32.mrb[0].mxu0
    %v3010 = vadd.f32 %v2721, %v3009
    %v3011 = vpop.f32.mrb[0].mxu0
    %v3012 = vpop.f32.mrb[0].mxu0
    %v3013 = vadd.f32 %v2724, %v3012
    %v3014 = vpop.f32.mrb[0].mxu0
    %3015 = vmatprep.mubr.bf16.mxu0 %v1700
    %3016 = vmatmul.mubr.bf16.gmra.mrb[0].mxu0 %v1699
    %v3017 = vpop.f32.mrb[0].mxu0
    %v3018 = vadd.f32 %v2729, %v3017
    %v3019 = vpop.f32.mrb[0].mxu0
    %v3020 = vpop.f32.mrb[0].mxu0
    %v3021 = vadd.f32 %v2732, %v3020
    %v3022 = vpop.f32.mrb[0].mxu0
    %3023 = vmatprep.mubr.bf16.mxu0 %v1703
    %3024 = vmatmul.mubr.bf16.gmra.mrb[0].mxu0 %v1702
    %v3025 = vpop.f32.mrb[0].mxu0
    %v3026 = vadd.f32 %v2737, %v3025
    %v3027 = vpop.f32.mrb[0].mxu0
    %v3028 = vpop.f32.mrb[0].mxu0
    %v3029 = vadd.f32 %v2740, %v3028
    %v3030 = vpop.f32.mrb[0].mxu0
    %3031 = vmatprep.mubr.bf16.mxu0 %v1706
    %3032 = vmatmul.mubr.bf16.gmra.mrb[0].mxu0 %v1705
    %v3033 = vpop.f32.mrb[0].mxu0
    %v3034 = vadd.f32 %v2745, %v3033
    %v3035 = vpop.f32.mrb[0].mxu0
    %v3036 = vpop.f32.mrb[0].mxu0
    %v3037 = vadd.f32 %v2748, %v3036
    %v3038 = vpop.f32.mrb[0].mxu0
    %3039 = vmatprep.mubr.bf16.mxu0 %v1709
    %3040 = vmatmul.mubr.bf16.gmra.mrb[0].mxu0 %v1708
    %v3041 = vpop.f32.mrb[0].mxu0
    %v3042 = vadd.f32 %v2753, %v3041
    %v3043 = vpop.f32.mrb[0].mxu0
    %v3044 = vpop.f32.mrb[0].mxu0
    %v3045 = vadd.f32 %v2756, %v3044
    %v3046 = vpop.f32.mrb[0].mxu0
    %3047 = vmatprep.mubr.bf16.mxu0 %v1712
    %3048 = vmatmul.mubr.bf16.gmra.mrb[0].mxu0 %v1711
    %v3049 = vpop.f32.mrb[0].mxu0
    %v3050 = vadd.f32 %v2761, %v3049
    %v3051 = vpop.f32.mrb[0].mxu0
    %v3052 = vpop.f32.mrb[0].mxu0
    %v3053 = vadd.f32 %v2764, %v3052
    %v3054 = vpop.f32.mrb[0].mxu0
    %3055 = vmatprep.mubr.bf16.mxu0 %v1715
    %3056 = vmatmul.mubr.bf16.gmra.mrb[0].mxu0 %v1714
    %v3057 = vpop.f32.mrb[0].mxu0
    %v3058 = vadd.f32 %v2769, %v3057
    %v3059 = vpop.f32.mrb[0].mxu0
    %v3060 = vpop.f32.mrb[0].mxu0
    %v3061 = vadd.f32 %v2772, %v3060
    %v3062 = vpop.f32.mrb[0].mxu0
    %3063 = vmatprep.mubr.bf16.mxu0 %v1718
    %3064 = vmatmul.mubr.bf16.gmra.mrb[0].mxu0 %v1717
    %v3065 = vpop.f32.mrb[0].mxu0
    %v3066 = vadd.f32 %v2777, %v3065
    %v3067 = vpop.f32.mrb[0].mxu0
    %v3068 = vpop.f32.mrb[0].mxu0
    %v3069 = vadd.f32 %v2780, %v3068
    %v3070 = vpop.f32.mrb[0].mxu0
    %3071 = vmatprep.mubr.bf16.mxu0 %v1721
    %3072 = vmatmul.mubr.bf16.gmra.mrb[0].mxu0 %v1720
    %v3073 = vpop.f32.mrb[0].mxu0
    %v3074 = vadd.f32 %v2785, %v3073
    %v3075 = vpop.f32.mrb[0].mxu0
    %v3076 = vpop.f32.mrb[0].mxu0
    %v3077 = vadd.f32 %v2788, %v3076
    %v3078 = vpop.f32.mrb[0].mxu0
    %3079 = vmatprep.mubr.bf16.mxu0 %v1724
    %3080 = vmatmul.mubr.bf16.gmra.mrb[0].mxu0 %v1723
    %v3081 = vpop.f32.mrb[0].mxu0
    %v3082 = vadd.f32 %v2793, %v3081
    %v3083 = vpop.f32.mrb[0].mxu0
    %v3084 = vpop.f32.mrb[0].mxu0
    %v3085 = vadd.f32 %v2796, %v3084
    %v3086 = vpop.f32.mrb[0].mxu0
    %3087 = vmatprep.mubr.bf16.mxu0 %v1727
    %3088 = vmatmul.mubr.bf16.gmra.mrb[0].mxu0 %v1726
    %v3089 = vpop.f32.mrb[0].mxu0
    %v3090 = vadd.f32 %v2801, %v3089
    %v3091 = vpop.f32.mrb[0].mxu0
    %v3092 = vpop.f32.mrb[0].mxu0
    %v3093 = vadd.f32 %v2804, %v3092
    %v3094 = vpop.f32.mrb[0].mxu0
    %3095 = vmatprep.mubr.bf16.mxu0 %v1730
    %3096 = vmatmul.mubr.bf16.gmra.mrb[0].mxu0 %v1729
    %v3097 = vpop.f32.mrb[0].mxu0
    %v3098 = vadd.f32 %v2809, %v3097
    %v3099 = vpop.f32.mrb[0].mxu0
    %v3100 = vpop.f32.mrb[0].mxu0
    %v3101 = vadd.f32 %v2812, %v3100
    %v3102 = vpop.f32.mrb[0].mxu0
    %3103 = vmatprep.mubr.bf16.mxu0 %v1733
    %3104 = vmatmul.mubr.bf16.gmra.mrb[0].mxu0 %v1732
    %v3105 = vpop.f32.mrb[0].mxu0
    %v3106 = vadd.f32 %v2817, %v3105
    %v3107 = vpop.f32.mrb[0].mxu0
    %v3108 = vpop.f32.mrb[0].mxu0
    %v3109 = vadd.f32 %v2820, %v3108
    %v3110 = vpop.f32.mrb[0].mxu0
    %3111 = vmatprep.mubr.bf16.mxu0 %v1736
    %3112 = vmatmul.mubr.bf16.gmra.mrb[0].mxu0 %v1735
    %v3113 = vpop.f32.mrb[0].mxu0
    %v3114 = vadd.f32 %v2825, %v3113
    %v3115 = vpop.f32.mrb[0].mxu0
    %v3116 = vpop.f32.mrb[0].mxu0
    %v3117 = vadd.f32 %v2828, %v3116
    %v3118 = vpop.f32.mrb[0].mxu0
    %3119 = vmatprep.mubr.bf16.mxu0 %v1739
    %3120 = vmatmul.mubr.bf16.gmra.mrb[0].mxu0 %v1738
    %v3121 = vpop.f32.mrb[0].mxu0
    %v3122 = vadd.f32 %v2833, %v3121
    %v3123 = vpop.f32.mrb[0].mxu0
    %v3124 = vpop.f32.mrb[0].mxu0
    %v3125 = vadd.f32 %v2836, %v3124
    %v3126 = vpop.f32.mrb[0].mxu0
    %3127 = vmatprep.mubr.bf16.mxu0 %v1742
    %3128 = vmatmul.mubr.bf16.gmra.mrb[0].mxu0 %v1741
    %v3129 = vpop.f32.mrb[0].mxu0
    %v3130 = vadd.f32 %v2841, %v3129
    %v3131 = vpop.f32.mrb[0].mxu0
    %v3132 = vpop.f32.mrb[0].mxu0
    %v3133 = vadd.f32 %v2844, %v3132
    %v3134 = vpop.f32.mrb[0].mxu0
    %3135 = vmatprep.mubr.bf16.mxu0 %v1745
    %3136 = vmatmul.mubr.bf16.gmra.mrb[0].mxu0 %v1744
    %v3137 = vpop.f32.mrb[0].mxu0
    %v3138 = vadd.f32 %v2849, %v3137
    %v3139 = vpop.f32.mrb[0].mxu0
    %v3140 = vpop.f32.mrb[0].mxu0
    %v3141 = vadd.f32 %v2852, %v3140
    %v3142 = vpop.f32.mrb[0].mxu0
    %3143 = vmatprep.mubr.bf16.mxu0 %v1748
    %3144 = vmatmul.mubr.bf16.gmra.mrb[0].mxu0 %v1747
    %v3145 = vpop.f32.mrb[0].mxu0
    %v3146 = vadd.f32 %v2857, %v3145
    %v3147 = vpop.f32.mrb[0].mxu0
    %v3148 = vpop.f32.mrb[0].mxu0
    %v3149 = vadd.f32 %v2860, %v3148
    %v3150 = vpop.f32.mrb[0].mxu0
    %3151 = vmatprep.mubr.bf16.mxu0 %v1751
    %3152 = vmatmul.mubr.bf16.gmra.mrb[0].mxu0 %v1750
    %v3153 = vpop.f32.mrb[0].mxu0
    %v3154 = vadd.f32 %v2865, %v3153
    %v3155 = vpop.f32.mrb[0].mxu0
    %v3156 = vpop.f32.mrb[0].mxu0
    %v3157 = vadd.f32 %v2868, %v3156
    %v3158 = vpop.f32.mrb[0].mxu0
    %3159 = vmatprep.mubr.bf16.mxu0 %v1754
    %3160 = vmatmul.mubr.bf16.gmra.mrb[0].mxu0 %v1753
    %v3161 = vpop.f32.mrb[0].mxu0
    %v3162 = vadd.f32 %v2873, %v3161
    %v3163 = vpop.f32.mrb[0].mxu0
    %v3164 = vpop.f32.mrb[0].mxu0
    %v3165 = vadd.f32 %v2876, %v3164
    %v3166 = vpop.f32.mrb[0].mxu0
    %3167 = vmatprep.mubr.bf16.mxu0 %v1757
    %3168 = vmatmul.mubr.bf16.gmra.mrb[0].mxu0 %v1756
    %v3169 = vpop.f32.mrb[0].mxu0
    %v3170 = vadd.f32 %v2881, %v3169
    %v3171 = vpop.f32.mrb[0].mxu0
    %v3172 = vpop.f32.mrb[0].mxu0
    %v3173 = vadd.f32 %v2884, %v3172
    %v3174 = vpop.f32.mrb[0].mxu0
    %3175 = vmatprep.mubr.bf16.mxu0 %v1760
    %3176 = vmatmul.mubr.bf16.gmra.mrb[0].mxu0 %v1759
    %v3177 = vpop.f32.mrb[0].mxu0
    %v3178 = vadd.f32 %v2889, %v3177
    %v3179 = vpop.f32.mrb[0].mxu0
    %v3180 = vpop.f32.mrb[0].mxu0
    %v3181 = vadd.f32 %v2892, %v3180
    %v3182 = vpop.f32.mrb[0].mxu0
    %3183 = vmatprep.mubr.bf16.mxu0 %v1763
    %3184 = vmatmul.mubr.bf16.gmra.mrb[0].mxu0 %v1762
    %v3185 = vpop.f32.mrb[0].mxu0
    %v3186 = vadd.f32 %v2897, %v3185
    %v3187 = vpop.f32.mrb[0].mxu0
    %v3188 = vpop.f32.mrb[0].mxu0
    %v3189 = vadd.f32 %v2900, %v3188
    %v3190 = vpop.f32.mrb[0].mxu0
    %3191 = vmatprep.mubr.bf16.mxu0 %v1766
    %3192 = vmatmul.mubr.bf16.gmra.mrb[0].mxu0 %v1765
    %v3193 = vpop.f32.mrb[0].mxu0
    %v3194 = vadd.f32 %v2905, %v3193
    %v3195 = vpop.f32.mrb[0].mxu0
    %v3196 = vpop.f32.mrb[0].mxu0
    %v3197 = vadd.f32 %v2908, %v3196
    %v3198 = vpop.f32.mrb[0].mxu0
    %3199 = vmatprep.mubr.bf16.mxu0 %v1769
    %3200 = vmatmul.mubr.bf16.gmra.mrb[0].mxu0 %v1768
    %v3201 = vpop.f32.mrb[0].mxu0
    %v3202 = vadd.f32 %v2913, %v3201
    %v3203 = vpop.f32.mrb[0].mxu0
    %v3204 = vpop.f32.mrb[0].mxu0
    %v3205 = vadd.f32 %v2916, %v3204
    %v3206 = vpop.f32.mrb[0].mxu0
    %3207 = vmatprep.mubr.bf16.mxu0 %v1772
    %3208 = vmatmul.mubr.bf16.gmra.mrb[0].mxu0 %v1771
    %v3209 = vpop.f32.mrb[0].mxu0
    %v3210 = vadd.f32 %v2921, %v3209
    %v3211 = vpop.f32.mrb[0].mxu0
    %v3212 = vpop.f32.mrb[0].mxu0
    %v3213 = vadd.f32 %v2924, %v3212
    %v3214 = vpop.f32.mrb[0].mxu0
    %3215 = vdwg.mxu0
    %3216 = vmatprep.subr.bf16.mxu0 0
    %3217 = vmatpush1.bf16.msra.mxu0 %v2253
    %3218 = vmatprep.subr.bf16.mxu0 0
    %3219 = vmatpush1.bf16.msra.mxu0 %v2254
    %3220 = vmatprep.subr.bf16.mxu0 0
    %3221 = vmatpush1.bf16.msra.mxu0 %v2255
    %3222 = vmatprep.subr.bf16.mxu0 0
    %3223 = vmatpush1.bf16.msra.mxu0 %v2256
    %3224 = vmatprep.subr.bf16.mxu0 0
    %3225 = vmatpush1.bf16.msra.mxu0 %v2257
    %3226 = vmatprep.subr.bf16.mxu0 0
    %3227 = vmatpush1.bf16.msra.mxu0 %v2258
    %3228 = vmatprep.subr.bf16.mxu0 0
    %3229 = vmatpush1.bf16.msra.mxu0 %v2259
    %3230 = vmatprep.subr.bf16.mxu0 0
    %3231 = vmatpush1.bf16.msra.mxu0 %v2260
    %3232 = vmatprep.subr.bf16.mxu0 0
    %3233 = vmatpush1.bf16.msra.mxu0 %v2261
    %3234 = vmatprep.subr.bf16.mxu0 0
    %3235 = vmatpush1.bf16.msra.mxu0 %v2262
    %3236 = vmatprep.subr.bf16.mxu0 0
    %3237 = vmatpush1.bf16.msra.mxu0 %v2263
    %3238 = vmatprep.subr.bf16.mxu0 0
    %3239 = vmatpush1.bf16.msra.mxu0 %v2264
    %3240 = vmatprep.subr.bf16.mxu0 0
    %3241 = vmatpush1.bf16.msra.mxu0 %v2265
    %3242 = vmatprep.subr.bf16.mxu0 0
    %3243 = vmatpush1.bf16.msra.mxu0 %v2266
    %3244 = vmatprep.subr.bf16.mxu0 0
    %3245 = vmatpush1.bf16.msra.mxu0 %v2267
    %3246 = vmatprep.subr.bf16.mxu0 0
    %3247 = vmatpush1.bf16.msra.mxu0 %v2268
    %3248 = vmatprep.mubr.bf16.mxu0 %v1681
    %3249 = vmatmul.mubr.bf16.gmra.mrb[0].mxu0 %v1680
    %v3250 = vpop.f32.mrb[0].mxu0
    %v3251 = vadd.f32 %v2962, %v3250
    %v3252 = vpop.f32.mrb[0].mxu0
    %v3253 = vpop.f32.mrb[0].mxu0
    %v3254 = vadd.f32 %v2965, %v3253
    %v3255 = vpop.f32.mrb[0].mxu0
    %3256 = vmatprep.mubr.bf16.mxu0 %v1684
    %3257 = vmatmul.mubr.bf16.gmra.mrb[0].mxu0 %v1683
    %v3258 = vpop.f32.mrb[0].mxu0
    %v3259 = vadd.f32 %v2970, %v3258
    %v3260 = vpop.f32.mrb[0].mxu0
    %v3261 = vpop.f32.mrb[0].mxu0
    %v3262 = vadd.f32 %v2973, %v3261
    %v3263 = vpop.f32.mrb[0].mxu0
    %3264 = vmatprep.mubr.bf16.mxu0 %v1687
    %3265 = vmatmul.mubr.bf16.gmra.mrb[0].mxu0 %v1686
    %v3266 = vpop.f32.mrb[0].mxu0
    %v3267 = vadd.f32 %v2978, %v3266
    %v3268 = vpop.f32.mrb[0].mxu0
    %v3269 = vpop.f32.mrb[0].mxu0
    %v3270 = vadd.f32 %v2981, %v3269
    %v3271 = vpop.f32.mrb[0].mxu0
    %3272 = vmatprep.mubr.bf16.mxu0 %v1690
    %3273 = vmatmul.mubr.bf16.gmra.mrb[0].mxu0 %v1689
    %v3274 = vpop.f32.mrb[0].mxu0
    %v3275 = vadd.f32 %v2986, %v3274
    %v3276 = vpop.f32.mrb[0].mxu0
    %v3277 = vpop.f32.mrb[0].mxu0
    %v3278 = vadd.f32 %v2989, %v3277
    %v3279 = vpop.f32.mrb[0].mxu0
    %3280 = vmatprep.mubr.bf16.mxu0 %v1693
    %3281 = vmatmul.mubr.bf16.gmra.mrb[0].mxu0 %v1692
    %v3282 = vpop.f32.mrb[0].mxu0
    %v3283 = vadd.f32 %v2994, %v3282
    %v3284 = vpop.f32.mrb[0].mxu0
    %v3285 = vpop.f32.mrb[0].mxu0
    %v3286 = vadd.f32 %v2997, %v3285
    %v3287 = vpop.f32.mrb[0].mxu0
    %3288 = vmatprep.mubr.bf16.mxu0 %v1696
    %3289 = vmatmul.mubr.bf16.gmra.mrb[0].mxu0 %v1695
    %v3290 = vpop.f32.mrb[0].mxu0
    %v3291 = vadd.f32 %v3002, %v3290
    %v3292 = vpop.f32.mrb[0].mxu0
    %v3293 = vpop.f32.mrb[0].mxu0
    %v3294 = vadd.f32 %v3005, %v3293
    %v3295 = vpop.f32.mrb[0].mxu0
    %3296 = vmatprep.mubr.bf16.mxu0 %v1699
    %3297 = vmatmul.mubr.bf16.gmra.mrb[0].mxu0 %v1698
    %v3298 = vpop.f32.mrb[0].mxu0
    %v3299 = vadd.f32 %v3010, %v3298
    %v3300 = vpop.f32.mrb[0].mxu0
    %v3301 = vpop.f32.mrb[0].mxu0
    %v3302 = vadd.f32 %v3013, %v3301
    %v3303 = vpop.f32.mrb[0].mxu0
    %3304 = vmatprep.mubr.bf16.mxu0 %v1702
    %3305 = vmatmul.mubr.bf16.gmra.mrb[0].mxu0 %v1701
    %v3306 = vpop.f32.mrb[0].mxu0
    %v3307 = vadd.f32 %v3018, %v3306
    %v3308 = vpop.f32.mrb[0].mxu0
    %v3309 = vpop.f32.mrb[0].mxu0
    %v3310 = vadd.f32 %v3021, %v3309
    %v3311 = vpop.f32.mrb[0].mxu0
    %3312 = vmatprep.mubr.bf16.mxu0 %v1705
    %3313 = vmatmul.mubr.bf16.gmra.mrb[0].mxu0 %v1704
    %v3314 = vpop.f32.mrb[0].mxu0
    %v3315 = vadd.f32 %v3026, %v3314
    %v3316 = vpop.f32.mrb[0].mxu0
    %v3317 = vpop.f32.mrb[0].mxu0
    %v3318 = vadd.f32 %v3029, %v3317
    %v3319 = vpop.f32.mrb[0].mxu0
    %3320 = vmatprep.mubr.bf16.mxu0 %v1708
    %3321 = vmatmul.mubr.bf16.gmra.mrb[0].mxu0 %v1707
    %v3322 = vpop.f32.mrb[0].mxu0
    %v3323 = vadd.f32 %v3034, %v3322
    %v3324 = vpop.f32.mrb[0].mxu0
    %v3325 = vpop.f32.mrb[0].mxu0
    %v3326 = vadd.f32 %v3037, %v3325
    %v3327 = vpop.f32.mrb[0].mxu0
    %3328 = vmatprep.mubr.bf16.mxu0 %v1711
    %3329 = vmatmul.mubr.bf16.gmra.mrb[0].mxu0 %v1710
    %v3330 = vpop.f32.mrb[0].mxu0
    %v3331 = vadd.f32 %v3042, %v3330
    %v3332 = vpop.f32.mrb[0].mxu0
    %v3333 = vpop.f32.mrb[0].mxu0
    %v3334 = vadd.f32 %v3045, %v3333
    %v3335 = vpop.f32.mrb[0].mxu0
    %3336 = vmatprep.mubr.bf16.mxu0 %v1714
    %3337 = vmatmul.mubr.bf16.gmra.mrb[0].mxu0 %v1713
    %v3338 = vpop.f32.mrb[0].mxu0
    %v3339 = vadd.f32 %v3050, %v3338
    %v3340 = vpop.f32.mrb[0].mxu0
    %v3341 = vpop.f32.mrb[0].mxu0
    %v3342 = vadd.f32 %v3053, %v3341
    %v3343 = vpop.f32.mrb[0].mxu0
    %3344 = vmatprep.mubr.bf16.mxu0 %v1717
    %3345 = vmatmul.mubr.bf16.gmra.mrb[0].mxu0 %v1716
    %v3346 = vpop.f32.mrb[0].mxu0
    %v3347 = vadd.f32 %v3058, %v3346
    %v3348 = vpop.f32.mrb[0].mxu0
    %v3349 = vpop.f32.mrb[0].mxu0
    %v3350 = vadd.f32 %v3061, %v3349
    %v3351 = vpop.f32.mrb[0].mxu0
    %3352 = vmatprep.mubr.bf16.mxu0 %v1720
    %3353 = vmatmul.mubr.bf16.gmra.mrb[0].mxu0 %v1719
    %v3354 = vpop.f32.mrb[0].mxu0
    %v3355 = vadd.f32 %v3066, %v3354
    %v3356 = vpop.f32.mrb[0].mxu0
    %v3357 = vpop.f32.mrb[0].mxu0
    %v3358 = vadd.f32 %v3069, %v3357
    %v3359 = vpop.f32.mrb[0].mxu0
    %3360 = vmatprep.mubr.bf16.mxu0 %v1723
    %3361 = vmatmul.mubr.bf16.gmra.mrb[0].mxu0 %v1722
    %v3362 = vpop.f32.mrb[0].mxu0
    %v3363 = vadd.f32 %v3074, %v3362
    %v3364 = vpop.f32.mrb[0].mxu0
    %v3365 = vpop.f32.mrb[0].mxu0
    %v3366 = vadd.f32 %v3077, %v3365
    %v3367 = vpop.f32.mrb[0].mxu0
    %3368 = vmatprep.mubr.bf16.mxu0 %v1675
    %3369 = vmatmul.mubr.bf16.gmra.mrb[0].mxu0 %v1674
    %v3370 = vpop.f32.mrb[0].mxu0
    %v3371 = vadd.f32 %v3082, %v3370
    %v3372 = vpop.f32.mrb[0].mxu0
    %v3373 = vpop.f32.mrb[0].mxu0
    %v3374 = vadd.f32 %v3085, %v3373
    %v3375 = vpop.f32.mrb[0].mxu0
    %3376 = vmatprep.mubr.bf16.mxu0 %v1729
    %3377 = vmatmul.mubr.bf16.gmra.mrb[0].mxu0 %v1728
    %v3378 = vpop.f32.mrb[0].mxu0
    %v3379 = vadd.f32 %v3090, %v3378
    %v3380 = vpop.f32.mrb[0].mxu0
    %v3381 = vpop.f32.mrb[0].mxu0
    %v3382 = vadd.f32 %v3093, %v3381
    %v3383 = vpop.f32.mrb[0].mxu0
    %3384 = vmatprep.mubr.bf16.mxu0 %v1732
    %3385 = vmatmul.mubr.bf16.gmra.mrb[0].mxu0 %v1731
    %v3386 = vpop.f32.mrb[0].mxu0
    %v3387 = vadd.f32 %v3098, %v3386
    %v3388 = vpop.f32.mrb[0].mxu0
    %v3389 = vpop.f32.mrb[0].mxu0
    %v3390 = vadd.f32 %v3101, %v3389
    %v3391 = vpop.f32.mrb[0].mxu0
    %3392 = vmatprep.mubr.bf16.mxu0 %v1735
    %3393 = vmatmul.mubr.bf16.gmra.mrb[0].mxu0 %v1734
    %v3394 = vpop.f32.mrb[0].mxu0
    %v3395 = vadd.f32 %v3106, %v3394
    %v3396 = vpop.f32.mrb[0].mxu0
    %v3397 = vpop.f32.mrb[0].mxu0
    %v3398 = vadd.f32 %v3109, %v3397
    %v3399 = vpop.f32.mrb[0].mxu0
    %3400 = vmatprep.mubr.bf16.mxu0 %v1738
    %3401 = vmatmul.mubr.bf16.gmra.mrb[0].mxu0 %v1737
    %v3402 = vpop.f32.mrb[0].mxu0
    %v3403 = vadd.f32 %v3114, %v3402
    %v3404 = vpop.f32.mrb[0].mxu0
    %v3405 = vpop.f32.mrb[0].mxu0
    %v3406 = vadd.f32 %v3117, %v3405
    %v3407 = vpop.f32.mrb[0].mxu0
    %3408 = vmatprep.mubr.bf16.mxu0 %v1741
    %3409 = vmatmul.mubr.bf16.gmra.mrb[0].mxu0 %v1740
    %v3410 = vpop.f32.mrb[0].mxu0
    %v3411 = vadd.f32 %v3122, %v3410
    %v3412 = vpop.f32.mrb[0].mxu0
    %v3413 = vpop.f32.mrb[0].mxu0
    %v3414 = vadd.f32 %v3125, %v3413
    %v3415 = vpop.f32.mrb[0].mxu0
    %3416 = vmatprep.mubr.bf16.mxu0 %v1744
    %3417 = vmatmul.mubr.bf16.gmra.mrb[0].mxu0 %v1743
    %v3418 = vpop.f32.mrb[0].mxu0
    %v3419 = vadd.f32 %v3130, %v3418
    %v3420 = vpop.f32.mrb[0].mxu0
    %v3421 = vpop.f32.mrb[0].mxu0
    %v3422 = vadd.f32 %v3133, %v3421
    %v3423 = vpop.f32.mrb[0].mxu0
    %3424 = vmatprep.mubr.bf16.mxu0 %v1747
    %3425 = vmatmul.mubr.bf16.gmra.mrb[0].mxu0 %v1746
    %v3426 = vpop.f32.mrb[0].mxu0
    %v3427 = vadd.f32 %v3138, %v3426
    %v3428 = vpop.f32.mrb[0].mxu0
    %v3429 = vpop.f32.mrb[0].mxu0
    %v3430 = vadd.f32 %v3141, %v3429
    %v3431 = vpop.f32.mrb[0].mxu0
    %3432 = vmatprep.mubr.bf16.mxu0 %v1750
    %3433 = vmatmul.mubr.bf16.gmra.mrb[0].mxu0 %v1749
    %v3434 = vpop.f32.mrb[0].mxu0
    %v3435 = vadd.f32 %v3146, %v3434
    %v3436 = vpop.f32.mrb[0].mxu0
    %v3437 = vpop.f32.mrb[0].mxu0
    %v3438 = vadd.f32 %v3149, %v3437
    %v3439 = vpop.f32.mrb[0].mxu0
    %3440 = vmatprep.mubr.bf16.mxu0 %v1753
    %3441 = vmatmul.mubr.bf16.gmra.mrb[0].mxu0 %v1752
    %v3442 = vpop.f32.mrb[0].mxu0
    %v3443 = vadd.f32 %v3154, %v3442
    %v3444 = vpop.f32.mrb[0].mxu0
    %v3445 = vpop.f32.mrb[0].mxu0
    %v3446 = vadd.f32 %v3157, %v3445
    %v3447 = vpop.f32.mrb[0].mxu0
    %3448 = vmatprep.mubr.bf16.mxu0 %v1756
    %3449 = vmatmul.mubr.bf16.gmra.mrb[0].mxu0 %v1755
    %v3450 = vpop.f32.mrb[0].mxu0
    %v3451 = vadd.f32 %v3162, %v3450
    %v3452 = vpop.f32.mrb[0].mxu0
    %v3453 = vpop.f32.mrb[0].mxu0
    %v3454 = vadd.f32 %v3165, %v3453
    %v3455 = vpop.f32.mrb[0].mxu0
    %3456 = vmatprep.mubr.bf16.mxu0 %v1759
    %3457 = vmatmul.mubr.bf16.gmra.mrb[0].mxu0 %v1758
    %v3458 = vpop.f32.mrb[0].mxu0
    %v3459 = vadd.f32 %v3170, %v3458
    %v3460 = vpop.f32.mrb[0].mxu0
    %v3461 = vpop.f32.mrb[0].mxu0
    %v3462 = vadd.f32 %v3173, %v3461
    %v3463 = vpop.f32.mrb[0].mxu0
    %3464 = vmatprep.mubr.bf16.mxu0 %v1762
    %3465 = vmatmul.mubr.bf16.gmra.mrb[0].mxu0 %v1761
    %v3466 = vpop.f32.mrb[0].mxu0
    %v3467 = vadd.f32 %v3178, %v3466
    %v3468 = vpop.f32.mrb[0].mxu0
    %v3469 = vpop.f32.mrb[0].mxu0
    %v3470 = vadd.f32 %v3181, %v3469
    %v3471 = vpop.f32.mrb[0].mxu0
    %3472 = vmatprep.mubr.bf16.mxu0 %v1765
    %3473 = vmatmul.mubr.bf16.gmra.mrb[0].mxu0 %v1764
    %v3474 = vpop.f32.mrb[0].mxu0
    %v3475 = vadd.f32 %v3186, %v3474
    %v3476 = vpop.f32.mrb[0].mxu0
    %v3477 = vpop.f32.mrb[0].mxu0
    %v3478 = vadd.f32 %v3189, %v3477
    %v3479 = vpop.f32.mrb[0].mxu0
    %3480 = vmatprep.mubr.bf16.mxu0 %v1768
    %3481 = vmatmul.mubr.bf16.gmra.mrb[0].mxu0 %v1767
    %v3482 = vpop.f32.mrb[0].mxu0
    %v3483 = vadd.f32 %v3194, %v3482
    %v3484 = vpop.f32.mrb[0].mxu0
    %v3485 = vpop.f32.mrb[0].mxu0
    %v3486 = vadd.f32 %v3197, %v3485
    %v3487 = vpop.f32.mrb[0].mxu0
    %3488 = vmatprep.mubr.bf16.mxu0 %v1771
    %3489 = vmatmul.mubr.bf16.gmra.mrb[0].mxu0 %v1770
    %v3490 = vpop.f32.mrb[0].mxu0
    %v3491 = vadd.f32 %v3202, %v3490
    %v3492 = vpop.f32.mrb[0].mxu0
    %v3493 = vpop.f32.mrb[0].mxu0
    %v3494 = vadd.f32 %v3205, %v3493
    %v3495 = vpop.f32.mrb[0].mxu0
    %3496 = vmatprep.mubr.bf16.mxu0 %v1675
    %3497 = vmatmul.mubr.bf16.gmra.mrb[0].mxu0 %v1674
    %v3498 = vpop.f32.mrb[0].mxu0
    %v3499 = vadd.f32 %v3210, %v3498
    %v3500 = vpop.f32.mrb[0].mxu0
    %v3501 = vpop.f32.mrb[0].mxu0
    %v3502 = vadd.f32 %v3213, %v3501
    %v3503 = vpop.f32.mrb[0].mxu0
    %3504 = vdwg.mxu0
    %3505 = vmatprep.subr.bf16.mxu0 0
    %3506 = vmatpush1.bf16.msra.mxu0 %v2269
    %3507 = vmatprep.subr.bf16.mxu0 0
    %3508 = vmatpush1.bf16.msra.mxu0 %v2270
    %3509 = vmatprep.subr.bf16.mxu0 0
    %3510 = vmatpush1.bf16.msra.mxu0 %v2271
    %3511 = vmatprep.subr.bf16.mxu0 0
    %3512 = vmatpush1.bf16.msra.mxu0 %v2272
    %3513 = vmatprep.subr.bf16.mxu0 0
    %3514 = vmatpush1.bf16.msra.mxu0 %v2273
    %3515 = vmatprep.subr.bf16.mxu0 0
    %3516 = vmatpush1.bf16.msra.mxu0 %v2274
    %3517 = vmatprep.subr.bf16.mxu0 0
    %3518 = vmatpush1.bf16.msra.mxu0 %v2275
    %3519 = vmatprep.subr.bf16.mxu0 0
    %3520 = vmatpush1.bf16.msra.mxu0 %v2276
    %3521 = vmatprep.subr.bf16.mxu0 0
    %3522 = vmatpush1.bf16.msra.mxu0 0
    %3523 = vmatprep.subr.bf16.mxu0 0
    %3524 = vmatpush1.bf16.msra.mxu0 0
    %3525 = vmatprep.subr.bf16.mxu0 0
    %3526 = vmatpush1.bf16.msra.mxu0 0
    %3527 = vmatprep.subr.bf16.mxu0 0
    %3528 = vmatpush1.bf16.msra.mxu0 0
    %3529 = vmatprep.subr.bf16.mxu0 0
    %3530 = vmatpush1.bf16.msra.mxu0 0
    %3531 = vmatprep.subr.bf16.mxu0 0
    %3532 = vmatpush1.bf16.msra.mxu0 0
    %3533 = vmatprep.subr.bf16.mxu0 0
    %3534 = vmatpush1.bf16.msra.mxu0 0
    %3535 = vmatprep.subr.bf16.mxu0 0
    %3536 = vmatpush1.bf16.msra.mxu0 0
    %3537 = vmatprep.mubr.bf16.mxu0 0
    %3538 = vmatmul.mubr.bf16.gmra.mrb[0].mxu0 %v1682
    %v3539 = vpop.f32.mrb[0].mxu0
    %v3540 = vadd.f32 %v3251, %v3539
    %v3541 = vpop.f32.mrb[0].mxu0
    %v3542 = vpop.f32.mrb[0].mxu0
    %v3543 = vadd.f32 %v3254, %v3542
    %v3544 = vpop.f32.mrb[0].mxu0
    %3545 = vmatprep.mubr.bf16.mxu0 0
    %3546 = vmatmul.mubr.bf16.gmra.mrb[0].mxu0 %v1685
    %v3547 = vpop.f32.mrb[0].mxu0
    %v3548 = vadd.f32 %v3259, %v3547
    %v3549 = vpop.f32.mrb[0].mxu0
    %v3550 = vpop.f32.mrb[0].mxu0
    %v3551 = vadd.f32 %v3262, %v3550
    %v3552 = vpop.f32.mrb[0].mxu0
    %3553 = vmatprep.mubr.bf16.mxu0 0
    %3554 = vmatmul.mubr.bf16.gmra.mrb[0].mxu0 %v1688
    %v3555 = vpop.f32.mrb[0].mxu0
    %v3556 = vadd.f32 %v3267, %v3555
    %v3557 = vpop.f32.mrb[0].mxu0
    %v3558 = vpop.f32.mrb[0].mxu0
    %v3559 = vadd.f32 %v3270, %v3558
    %v3560 = vpop.f32.mrb[0].mxu0
    %3561 = vmatprep.mubr.bf16.mxu0 0
    %3562 = vmatmul.mubr.bf16.gmra.mrb[0].mxu0 %v1691
    %v3563 = vpop.f32.mrb[0].mxu0
    %v3564 = vadd.f32 %v3275, %v3563
    %v3565 = vpop.f32.mrb[0].mxu0
    %v3566 = vpop.f32.mrb[0].mxu0
    %v3567 = vadd.f32 %v3278, %v3566
    %v3568 = vpop.f32.mrb[0].mxu0
    %3569 = vmatprep.mubr.bf16.mxu0 0
    %3570 = vmatmul.mubr.bf16.gmra.mrb[0].mxu0 %v1694
    %v3571 = vpop.f32.mrb[0].mxu0
    %v3572 = vadd.f32 %v3283, %v3571
    %v3573 = vpop.f32.mrb[0].mxu0
    %v3574 = vpop.f32.mrb[0].mxu0
    %v3575 = vadd.f32 %v3286, %v3574
    %v3576 = vpop.f32.mrb[0].mxu0
    %3577 = vmatprep.mubr.bf16.mxu0 0
    %3578 = vmatmul.mubr.bf16.gmra.mrb[0].mxu0 %v1697
    %v3579 = vpop.f32.mrb[0].mxu0
    %v3580 = vadd.f32 %v3291, %v3579
    %v3581 = vpop.f32.mrb[0].mxu0
    %v3582 = vpop.f32.mrb[0].mxu0
    %v3583 = vadd.f32 %v3294, %v3582
    %v3584 = vpop.f32.mrb[0].mxu0
    %3585 = vmatprep.mubr.bf16.mxu0 0
    %3586 = vmatmul.mubr.bf16.gmra.mrb[0].mxu0 %v1700
    %v3587 = vpop.f32.mrb[0].mxu0
    %v3588 = vadd.f32 %v3299, %v3587
    %v3589 = vpop.f32.mrb[0].mxu0
    %v3590 = vpop.f32.mrb[0].mxu0
    %v3591 = vadd.f32 %v3302, %v3590
    %v3592 = vpop.f32.mrb[0].mxu0
    %3593 = vmatprep.mubr.bf16.mxu0 0
    %3594 = vmatmul.mubr.bf16.gmra.mrb[0].mxu0 %v1703
    %v3595 = vpop.f32.mrb[0].mxu0
    %v3596 = vadd.f32 %v3307, %v3595
    %v3597 = vpop.f32.mrb[0].mxu0
    %v3598 = vpop.f32.mrb[0].mxu0
    %v3599 = vadd.f32 %v3310, %v3598
    %v3600 = vpop.f32.mrb[0].mxu0
    %3601 = vmatprep.mubr.bf16.mxu0 0
    %3602 = vmatmul.mubr.bf16.gmra.mrb[0].mxu0 %v1706
    %v3603 = vpop.f32.mrb[0].mxu0
    %v3604 = vadd.f32 %v3315, %v3603
    %v3605 = vpop.f32.mrb[0].mxu0
    %v3606 = vpop.f32.mrb[0].mxu0
    %v3607 = vadd.f32 %v3318, %v3606
    %v3608 = vpop.f32.mrb[0].mxu0
    %3609 = vmatprep.mubr.bf16.mxu0 0
    %3610 = vmatmul.mubr.bf16.gmra.mrb[0].mxu0 %v1709
    %v3611 = vpop.f32.mrb[0].mxu0
    %v3612 = vadd.f32 %v3323, %v3611
    %v3613 = vpop.f32.mrb[0].mxu0
    %v3614 = vpop.f32.mrb[0].mxu0
    %v3615 = vadd.f32 %v3326, %v3614
    %v3616 = vpop.f32.mrb[0].mxu0
    %3617 = vmatprep.mubr.bf16.mxu0 0
    %3618 = vmatmul.mubr.bf16.gmra.mrb[0].mxu0 %v1712
    %v3619 = vpop.f32.mrb[0].mxu0
    %v3620 = vadd.f32 %v3331, %v3619
    %v3621 = vpop.f32.mrb[0].mxu0
    %v3622 = vpop.f32.mrb[0].mxu0
    %v3623 = vadd.f32 %v3334, %v3622
    %v3624 = vpop.f32.mrb[0].mxu0
    %3625 = vmatprep.mubr.bf16.mxu0 0
    %3626 = vmatmul.mubr.bf16.gmra.mrb[0].mxu0 %v1715
    %v3627 = vpop.f32.mrb[0].mxu0
    %v3628 = vadd.f32 %v3339, %v3627
    %v3629 = vpop.f32.mrb[0].mxu0
    %v3630 = vpop.f32.mrb[0].mxu0
    %v3631 = vadd.f32 %v3342, %v3630
    %v3632 = vpop.f32.mrb[0].mxu0
    %3633 = vmatprep.mubr.bf16.mxu0 0
    %3634 = vmatmul.mubr.bf16.gmra.mrb[0].mxu0 %v1718
    %v3635 = vpop.f32.mrb[0].mxu0
    %v3636 = vadd.f32 %v3347, %v3635
    %v3637 = vpop.f32.mrb[0].mxu0
    %v3638 = vpop.f32.mrb[0].mxu0
    %v3639 = vadd.f32 %v3350, %v3638
    %v3640 = vpop.f32.mrb[0].mxu0
    %3641 = vmatprep.mubr.bf16.mxu0 0
    %3642 = vmatmul.mubr.bf16.gmra.mrb[0].mxu0 %v1721
    %v3643 = vpop.f32.mrb[0].mxu0
    %v3644 = vadd.f32 %v3355, %v3643
    %v3645 = vpop.f32.mrb[0].mxu0
    %v3646 = vpop.f32.mrb[0].mxu0
    %v3647 = vadd.f32 %v3358, %v3646
    %v3648 = vpop.f32.mrb[0].mxu0
    %3649 = vmatprep.mubr.bf16.mxu0 0
    %3650 = vmatmul.mubr.bf16.gmra.mrb[0].mxu0 %v1724
    %v3651 = vpop.f32.mrb[0].mxu0
    %v3652 = vadd.f32 %v3363, %v3651
    %v3653 = vpop.f32.mrb[0].mxu0
    %v3654 = vpop.f32.mrb[0].mxu0
    %v3655 = vadd.f32 %v3366, %v3654
    %v3656 = vpop.f32.mrb[0].mxu0
    %3657 = vmatprep.mubr.bf16.mxu0 0
    %3658 = vmatmul.mubr.bf16.gmra.mrb[0].mxu0 %v1676
    %v3659 = vpop.f32.mrb[0].mxu0
    %v3660 = vadd.f32 %v3371, %v3659
    %v3661 = vpop.f32.mrb[0].mxu0
    %v3662 = vpop.f32.mrb[0].mxu0
    %v3663 = vadd.f32 %v3374, %v3662
    %v3664 = vpop.f32.mrb[0].mxu0
    %3665 = vmatprep.mubr.bf16.mxu0 0
    %3666 = vmatmul.mubr.bf16.gmra.mrb[0].mxu0 %v1730
    %v3667 = vpop.f32.mrb[0].mxu0
    %v3668 = vadd.f32 %v3379, %v3667
    %v3669 = vpop.f32.mrb[0].mxu0
    %v3670 = vpop.f32.mrb[0].mxu0
    %v3671 = vadd.f32 %v3382, %v3670
    %v3672 = vpop.f32.mrb[0].mxu0
    %3673 = vmatprep.mubr.bf16.mxu0 0
    %3674 = vmatmul.mubr.bf16.gmra.mrb[0].mxu0 %v1733
    %v3675 = vpop.f32.mrb[0].mxu0
    %v3676 = vadd.f32 %v3387, %v3675
    %v3677 = vpop.f32.mrb[0].mxu0
    %v3678 = vpop.f32.mrb[0].mxu0
    %v3679 = vadd.f32 %v3390, %v3678
    %v3680 = vpop.f32.mrb[0].mxu0
    %3681 = vmatprep.mubr.bf16.mxu0 0
    %3682 = vmatmul.mubr.bf16.gmra.mrb[0].mxu0 %v1736
    %v3683 = vpop.f32.mrb[0].mxu0
    %v3684 = vadd.f32 %v3395, %v3683
    %v3685 = vpop.f32.mrb[0].mxu0
    %v3686 = vpop.f32.mrb[0].mxu0
    %v3687 = vadd.f32 %v3398, %v3686
    %v3688 = vpop.f32.mrb[0].mxu0
    %3689 = vmatprep.mubr.bf16.mxu0 0
    %3690 = vmatmul.mubr.bf16.gmra.mrb[0].mxu0 %v1739
    %v3691 = vpop.f32.mrb[0].mxu0
    %v3692 = vadd.f32 %v3403, %v3691
    %v3693 = vpop.f32.mrb[0].mxu0
    %v3694 = vpop.f32.mrb[0].mxu0
    %v3695 = vadd.f32 %v3406, %v3694
    %v3696 = vpop.f32.mrb[0].mxu0
    %3697 = vmatprep.mubr.bf16.mxu0 0
    %3698 = vmatmul.mubr.bf16.gmra.mrb[0].mxu0 %v1742
    %v3699 = vpop.f32.mrb[0].mxu0
    %v3700 = vadd.f32 %v3411, %v3699
    %v3701 = vpop.f32.mrb[0].mxu0
    %v3702 = vpop.f32.mrb[0].mxu0
    %v3703 = vadd.f32 %v3414, %v3702
    %v3704 = vpop.f32.mrb[0].mxu0
    %3705 = vmatprep.mubr.bf16.mxu0 0
    %3706 = vmatmul.mubr.bf16.gmra.mrb[0].mxu0 %v1745
    %v3707 = vpop.f32.mrb[0].mxu0
    %v3708 = vadd.f32 %v3419, %v3707
    %v3709 = vpop.f32.mrb[0].mxu0
    %v3710 = vpop.f32.mrb[0].mxu0
    %v3711 = vadd.f32 %v3422, %v3710
    %v3712 = vpop.f32.mrb[0].mxu0
    %3713 = vmatprep.mubr.bf16.mxu0 0
    %3714 = vmatmul.mubr.bf16.gmra.mrb[0].mxu0 %v1748
    %v3715 = vpop.f32.mrb[0].mxu0
    %v3716 = vadd.f32 %v3427, %v3715
    %v3717 = vpop.f32.mrb[0].mxu0
    %v3718 = vpop.f32.mrb[0].mxu0
    %v3719 = vadd.f32 %v3430, %v3718
    %v3720 = vpop.f32.mrb[0].mxu0
    %3721 = vmatprep.mubr.bf16.mxu0 0
    %3722 = vmatmul.mubr.bf16.gmra.mrb[0].mxu0 %v1751
    %v3723 = vpop.f32.mrb[0].mxu0
    %v3724 = vadd.f32 %v3435, %v3723
    %v3725 = vpop.f32.mrb[0].mxu0
    %v3726 = vpop.f32.mrb[0].mxu0
    %v3727 = vadd.f32 %v3438, %v3726
    %v3728 = vpop.f32.mrb[0].mxu0
    %3729 = vmatprep.mubr.bf16.mxu0 0
    %3730 = vmatmul.mubr.bf16.gmra.mrb[0].mxu0 %v1754
    %v3731 = vpop.f32.mrb[0].mxu0
    %v3732 = vadd.f32 %v3443, %v3731
    %v3733 = vpop.f32.mrb[0].mxu0
    %v3734 = vpop.f32.mrb[0].mxu0
    %v3735 = vadd.f32 %v3446, %v3734
    %v3736 = vpop.f32.mrb[0].mxu0
    %3737 = vmatprep.mubr.bf16.mxu0 0
    %3738 = vmatmul.mubr.bf16.gmra.mrb[0].mxu0 %v1757
    %v3739 = vpop.f32.mrb[0].mxu0
    %v3740 = vadd.f32 %v3451, %v3739
    %v3741 = vpop.f32.mrb[0].mxu0
    %v3742 = vpop.f32.mrb[0].mxu0
    %v3743 = vadd.f32 %v3454, %v3742
    %v3744 = vpop.f32.mrb[0].mxu0
    %3745 = vmatprep.mubr.bf16.mxu0 0
    %3746 = vmatmul.mubr.bf16.gmra.mrb[0].mxu0 %v1760
    %v3747 = vpop.f32.mrb[0].mxu0
    %v3748 = vadd.f32 %v3459, %v3747
    %v3749 = vpop.f32.mrb[0].mxu0
    %v3750 = vpop.f32.mrb[0].mxu0
    %v3751 = vadd.f32 %v3462, %v3750
    %v3752 = vpop.f32.mrb[0].mxu0
    %3753 = vmatprep.mubr.bf16.mxu0 0
    %3754 = vmatmul.mubr.bf16.gmra.mrb[0].mxu0 %v1763
    %v3755 = vpop.f32.mrb[0].mxu0
    %v3756 = vadd.f32 %v3467, %v3755
    %v3757 = vpop.f32.mrb[0].mxu0
    %v3758 = vpop.f32.mrb[0].mxu0
    %v3759 = vadd.f32 %v3470, %v3758
    %v3760 = vpop.f32.mrb[0].mxu0
    %3761 = vmatprep.mubr.bf16.mxu0 0
    %3762 = vmatmul.mubr.bf16.gmra.mrb[0].mxu0 %v1766
    %v3763 = vpop.f32.mrb[0].mxu0
    %v3764 = vadd.f32 %v3475, %v3763
    %v3765 = vpop.f32.mrb[0].mxu0
    %v3766 = vpop.f32.mrb[0].mxu0
    %v3767 = vadd.f32 %v3478, %v3766
    %v3768 = vpop.f32.mrb[0].mxu0
    %3769 = vmatprep.mubr.bf16.mxu0 0
    %3770 = vmatmul.mubr.bf16.gmra.mrb[0].mxu0 %v1769
    %v3771 = vpop.f32.mrb[0].mxu0
    %v3772 = vadd.f32 %v3483, %v3771
    %v3773 = vpop.f32.mrb[0].mxu0
    %v3774 = vpop.f32.mrb[0].mxu0
    %v3775 = vadd.f32 %v3486, %v3774
    %v3776 = vpop.f32.mrb[0].mxu0
    %3777 = vmatprep.mubr.bf16.mxu0 0
    %3778 = vmatmul.mubr.bf16.gmra.mrb[0].mxu0 %v1772
    %v3779 = vpop.f32.mrb[0].mxu0
    %v3780 = vadd.f32 %v3491, %v3779
    %v3781 = vpop.f32.mrb[0].mxu0
    %v3782 = vpop.f32.mrb[0].mxu0
    %v3783 = vadd.f32 %v3494, %v3782
    %v3784 = vpop.f32.mrb[0].mxu0
    %3785 = vmatprep.mubr.bf16.mxu0 0
    %3786 = vmatmul.mubr.bf16.gmra.mrb[0].mxu0 %v1676
    %v3787 = vpop.f32.mrb[0].mxu0
    %v3788 = vadd.f32 %v3499, %v3787
    %v3789 = vpop.f32.mrb[0].mxu0
    %v3790 = vpop.f32.mrb[0].mxu0
    %v3791 = vadd.f32 %v3502, %v3790
    %v3792 = vpop.f32.mrb[0].mxu0
    %3793 = vdwg.mxu0
    %v3794 = vld [vmem:[#allocation11] sm:$0x1]
    %v3796 = vlaneseq
    %v3797 = vshrl.u32 %v3796, 7
    %v3798 = vsub.s32 0, %v3797
    %v3799 = vrot.slane %v3794, %v3798
    %v3801 = vmul.f32 %v3540, %v3799
    %v3802 = vmul.f32 %v3543, %v3799
    %v3803 = vmul.f32 %v3548, %v3799
    %v3804 = vmul.f32 %v3551, %v3799
    %v3805 = vmul.f32 %v3556, %v3799
    %v3806 = vmul.f32 %v3559, %v3799
    %v3807 = vmul.f32 %v3564, %v3799
    %v3808 = vmul.f32 %v3567, %v3799
    %v3809 = vmul.f32 %v3572, %v3799
    %v3810 = vmul.f32 %v3575, %v3799
    %v3811 = vmul.f32 %v3580, %v3799
    %v3812 = vmul.f32 %v3583, %v3799
    %v3813 = vmul.f32 %v3588, %v3799
    %v3814 = vmul.f32 %v3591, %v3799
    %v3815 = vmul.f32 %v3596, %v3799
    %v3816 = vmul.f32 %v3599, %v3799
    %v3817 = vmul.f32 %v3604, %v3799
    %v3818 = vmul.f32 %v3607, %v3799
    %v3819 = vmul.f32 %v3612, %v3799
    %v3820 = vmul.f32 %v3615, %v3799
    %v3821 = vmul.f32 %v3620, %v3799
    %v3822 = vmul.f32 %v3623, %v3799
    %v3823 = vmul.f32 %v3628, %v3799
    %v3824 = vmul.f32 %v3631, %v3799
    %v3825 = vmul.f32 %v3636, %v3799
    %v3826 = vmul.f32 %v3639, %v3799
    %v3827 = vmul.f32 %v3644, %v3799
    %v3828 = vmul.f32 %v3647, %v3799
    %v3829 = vmul.f32 %v3652, %v3799
    %v3830 = vmul.f32 %v3655, %v3799
    %v3831 = vmul.f32 %v3660, %v3799
    %v3832 = vmul.f32 %v3663, %v3799
    %v3833 = vmul.f32 %v3668, %v3799
    %v3834 = vmul.f32 %v3671, %v3799
    %v3835 = vmul.f32 %v3676, %v3799
    %v3836 = vmul.f32 %v3679, %v3799
    %v3837 = vmul.f32 %v3684, %v3799
    %v3838 = vmul.f32 %v3687, %v3799
    %v3839 = vmul.f32 %v3692, %v3799
    %v3840 = vmul.f32 %v3695, %v3799
    %v3841 = vmul.f32 %v3700, %v3799
    %v3842 = vmul.f32 %v3703, %v3799
    %v3843 = vmul.f32 %v3708, %v3799
    %v3844 = vmul.f32 %v3711, %v3799
    %v3845 = vmul.f32 %v3716, %v3799
    %v3846 = vmul.f32 %v3719, %v3799
    %v3847 = vmul.f32 %v3724, %v3799
    %v3848 = vmul.f32 %v3727, %v3799
    %v3849 = vmul.f32 %v3732, %v3799
    %v3850 = vmul.f32 %v3735, %v3799
    %v3851 = vmul.f32 %v3740, %v3799
    %v3852 = vmul.f32 %v3743, %v3799
    %v3853 = vmul.f32 %v3748, %v3799
    %v3854 = vmul.f32 %v3751, %v3799
    %v3855 = vmul.f32 %v3756, %v3799
    %v3856 = vmul.f32 %v3759, %v3799
    %v3857 = vmul.f32 %v3764, %v3799
    %v3858 = vmul.f32 %v3767, %v3799
    %v3859 = vmul.f32 %v3772, %v3799
    %v3860 = vmul.f32 %v3775, %v3799
    %v3861 = vmul.f32 %v3780, %v3799
    %v3862 = vmul.f32 %v3783, %v3799
    %v3863 = vmul.f32 %v3788, %v3799
    %v3864 = vmul.f32 %v3791, %v3799
    %v3865 = vld [vmem:[#allocation13] sm:$0x1]
    %v3867 = vlaneseq
    %v3868 = vshrl.u32 %v3867, 7
    %v3869 = vsub.s32 0, %v3868
    %v3870 = vrot.slane %v3865, %v3869
    %v3872 = vadd.f32 %v3801, %v3870
    %v3873 = vadd.f32 %v3802, %v3870
    %v3874 = vadd.f32 %v3803, %v3870
    %v3875 = vadd.f32 %v3804, %v3870
    %v3876 = vadd.f32 %v3805, %v3870
    %v3877 = vadd.f32 %v3806, %v3870
    %v3878 = vadd.f32 %v3807, %v3870
    %v3879 = vadd.f32 %v3808, %v3870
    %v3880 = vadd.f32 %v3809, %v3870
    %v3881 = vadd.f32 %v3810, %v3870
    %v3882 = vadd.f32 %v3811, %v3870
    %v3883 = vadd.f32 %v3812, %v3870
    %v3884 = vadd.f32 %v3813, %v3870
    %v3885 = vadd.f32 %v3814, %v3870
    %v3886 = vadd.f32 %v3815, %v3870
    %v3887 = vadd.f32 %v3816, %v3870
    %v3888 = vadd.f32 %v3817, %v3870
    %v3889 = vadd.f32 %v3818, %v3870
    %v3890 = vadd.f32 %v3819, %v3870
    %v3891 = vadd.f32 %v3820, %v3870
    %v3892 = vadd.f32 %v3821, %v3870
    %v3893 = vadd.f32 %v3822, %v3870
    %v3894 = vadd.f32 %v3823, %v3870
    %v3895 = vadd.f32 %v3824, %v3870
    %v3896 = vadd.f32 %v3825, %v3870
    %v3897 = vadd.f32 %v3826, %v3870
    %v3898 = vadd.f32 %v3827, %v3870
    %v3899 = vadd.f32 %v3828, %v3870
    %v3900 = vadd.f32 %v3829, %v3870
    %v3901 = vadd.f32 %v3830, %v3870
    %v3902 = vadd.f32 %v3831, %v3870
    %v3903 = vadd.f32 %v3832, %v3870
    %v3904 = vadd.f32 %v3833, %v3870
    %v3905 = vadd.f32 %v3834, %v3870
    %v3906 = vadd.f32 %v3835, %v3870
    %v3907 = vadd.f32 %v3836, %v3870
    %v3908 = vadd.f32 %v3837, %v3870
    %v3909 = vadd.f32 %v3838, %v3870
    %v3910 = vadd.f32 %v3839, %v3870
    %v3911 = vadd.f32 %v3840, %v3870
    %v3912 = vadd.f32 %v3841, %v3870
    %v3913 = vadd.f32 %v3842, %v3870
    %v3914 = vadd.f32 %v3843, %v3870
    %v3915 = vadd.f32 %v3844, %v3870
    %v3916 = vadd.f32 %v3845, %v3870
    %v3917 = vadd.f32 %v3846, %v3870
    %v3918 = vadd.f32 %v3847, %v3870
    %v3919 = vadd.f32 %v3848, %v3870
    %v3920 = vadd.f32 %v3849, %v3870
    %v3921 = vadd.f32 %v3850, %v3870
    %v3922 = vadd.f32 %v3851, %v3870
    %v3923 = vadd.f32 %v3852, %v3870
    %v3924 = vadd.f32 %v3853, %v3870
    %v3925 = vadd.f32 %v3854, %v3870
    %v3926 = vadd.f32 %v3855, %v3870
    %v3927 = vadd.f32 %v3856, %v3870
    %v3928 = vadd.f32 %v3857, %v3870
    %v3929 = vadd.f32 %v3858, %v3870
    %v3930 = vadd.f32 %v3859, %v3870
    %v3931 = vadd.f32 %v3860, %v3870
    %v3932 = vadd.f32 %v3861, %v3870
    %v3933 = vadd.f32 %v3862, %v3870
    %v3934 = vadd.f32 %v3863, %v3870
    %v3935 = vadd.f32 %v3864, %v3870
    %v3936 = vmax.f32 %v3872, 0.0
    %v3937 = vmax.f32 %v3873, 0.0
    %v3938 = vmax.f32 %v3874, 0.0
    %v3939 = vmax.f32 %v3875, 0.0
    %v3940 = vmax.f32 %v3876, 0.0
    %v3941 = vmax.f32 %v3877, 0.0
    %v3942 = vmax.f32 %v3878, 0.0
    %v3943 = vmax.f32 %v3879, 0.0
    %v3944 = vmax.f32 %v3880, 0.0
    %v3945 = vmax.f32 %v3881, 0.0
    %v3946 = vmax.f32 %v3882, 0.0
    %v3947 = vmax.f32 %v3883, 0.0
    %v3948 = vmax.f32 %v3884, 0.0
    %v3949 = vmax.f32 %v3885, 0.0
    %v3950 = vmax.f32 %v3886, 0.0
    %v3951 = vmax.f32 %v3887, 0.0
    %v3952 = vmax.f32 %v3888, 0.0
    %v3953 = vmax.f32 %v3889, 0.0
    %v3954 = vmax.f32 %v3890, 0.0
    %v3955 = vmax.f32 %v3891, 0.0
    %v3956 = vmax.f32 %v3892, 0.0
    %v3957 = vmax.f32 %v3893, 0.0
    %v3958 = vmax.f32 %v3894, 0.0
    %v3959 = vmax.f32 %v3895, 0.0
    %v3960 = vmax.f32 %v3896, 0.0
    %v3961 = vmax.f32 %v3897, 0.0
    %v3962 = vmax.f32 %v3898, 0.0
    %v3963 = vmax.f32 %v3899, 0.0
    %v3964 = vmax.f32 %v3900, 0.0
    %v3965 = vmax.f32 %v3901, 0.0
    %v3966 = vmax.f32 %v3902, 0.0
    %v3967 = vmax.f32 %v3903, 0.0
    %v3968 = vmax.f32 %v3904, 0.0
    %v3969 = vmax.f32 %v3905, 0.0
    %v3970 = vmax.f32 %v3906, 0.0
    %v3971 = vmax.f32 %v3907, 0.0
    %v3972 = vmax.f32 %v3908, 0.0
    %v3973 = vmax.f32 %v3909, 0.0
    %v3974 = vmax.f32 %v3910, 0.0
    %v3975 = vmax.f32 %v3911, 0.0
    %v3976 = vmax.f32 %v3912, 0.0
    %v3977 = vmax.f32 %v3913, 0.0
    %v3978 = vmax.f32 %v3914, 0.0
    %v3979 = vmax.f32 %v3915, 0.0
    %v3980 = vmax.f32 %v3916, 0.0
    %v3981 = vmax.f32 %v3917, 0.0
    %v3982 = vmax.f32 %v3918, 0.0
    %v3983 = vmax.f32 %v3919, 0.0
    %v3984 = vmax.f32 %v3920, 0.0
    %v3985 = vmax.f32 %v3921, 0.0
    %v3986 = vmax.f32 %v3922, 0.0
    %v3987 = vmax.f32 %v3923, 0.0
    %v3988 = vmax.f32 %v3924, 0.0
    %v3989 = vmax.f32 %v3925, 0.0
    %v3990 = vmax.f32 %v3926, 0.0
    %v3991 = vmax.f32 %v3927, 0.0
    %v3992 = vmax.f32 %v3928, 0.0
    %v3993 = vmax.f32 %v3929, 0.0
    %v3994 = vmax.f32 %v3930, 0.0
    %v3995 = vmax.f32 %v3931, 0.0
    %v3996 = vmax.f32 %v3932, 0.0
    %v3997 = vmax.f32 %v3933, 0.0
    %v3998 = vmax.f32 %v3934, 0.0
    %v3999 = vmax.f32 %v3935, 0.0
    %v4000 = vpack.c.bf16 %v3937, %v3936
    %v4001 = vpack.c.bf16 %v3939, %v3938
    %v4002 = vpack.c.bf16 %v3941, %v3940
    %v4003 = vpack.c.bf16 %v3943, %v3942
    %v4004 = vpack.c.bf16 %v3945, %v3944
    %v4005 = vpack.c.bf16 %v3947, %v3946
    %v4006 = vpack.c.bf16 %v3949, %v3948
    %v4007 = vpack.c.bf16 %v3951, %v3950
    %v4008 = vpack.c.bf16 %v3953, %v3952
    %v4009 = vpack.c.bf16 %v3955, %v3954
    %v4010 = vpack.c.bf16 %v3957, %v3956
    %v4011 = vpack.c.bf16 %v3959, %v3958
    %v4012 = vpack.c.bf16 %v3961, %v3960
    %v4013 = vpack.c.bf16 %v3963, %v3962
    %v4014 = vpack.c.bf16 %v3965, %v3964
    %v4015 = vpack.c.bf16 %v3967, %v3966
    %v4016 = vpack.c.bf16 %v3969, %v3968
    %v4017 = vpack.c.bf16 %v3971, %v3970
    %v4018 = vpack.c.bf16 %v3973, %v3972
    %v4019 = vpack.c.bf16 %v3975, %v3974
    %v4020 = vpack.c.bf16 %v3977, %v3976
    %v4021 = vpack.c.bf16 %v3979, %v3978
    %v4022 = vpack.c.bf16 %v3981, %v3980
    %v4023 = vpack.c.bf16 %v3983, %v3982
    %v4024 = vpack.c.bf16 %v3985, %v3984
    %v4025 = vpack.c.bf16 %v3987, %v3986
    %v4026 = vpack.c.bf16 %v3989, %v3988
    %v4027 = vpack.c.bf16 %v3991, %v3990
    %v4028 = vpack.c.bf16 %v3993, %v3992
    %v4029 = vpack.c.bf16 %v3995, %v3994
    %v4030 = vpack.c.bf16 %v3997, %v3996
    %v4031 = vpack.c.bf16 %v3999, %v3998
    %v4032 = vld [vmem:[#allocation14] sm:$0xf]
    %v4033 = vld [vmem:[#allocation14 + $0x4] sm:$0xf]
    %v4034 = vld [vmem:[#allocation14 + $0x8] sm:$0xf]
    %v4035 = vld [vmem:[#allocation14 + $0xc] sm:$0xf]
    %v4036 = vld [vmem:[#allocation14 + $0x10] sm:$0xf]
    %v4037 = vld [vmem:[#allocation14 + $0x14] sm:$0xf]
    %v4038 = vld [vmem:[#allocation14 + $0x18] sm:$0xf]
    %v4039 = vld [vmem:[#allocation14 + $0x1c] sm:$0xf]
    %v4040 = vld [vmem:[#allocation14 + $0x20] sm:$0xf]
    %v4041 = vld [vmem:[#allocation14 + $0x24] sm:$0xf]
    %v4042 = vld [vmem:[#allocation14 + $0x28] sm:$0xf]
    %v4043 = vld [vmem:[#allocation14 + $0x2c] sm:$0xf]
    %v4044 = vld [vmem:[#allocation14 + $0x30] sm:$0xf]
    %v4045 = vld [vmem:[#allocation14 + $0x34] sm:$0xf]
    %v4046 = vld [vmem:[#allocation14 + $0x38] sm:$0xf]
    %v4047 = vld [vmem:[#allocation14 + $0x3c] sm:$0xf]
    %v4064 = vunpack.c.l.b16 %v4032
    %v4065 = vunpack.c.l.b16 %v4033
    %v4066 = vunpack.c.l.b16 %v4034
    %v4067 = vunpack.c.l.b16 %v4035
    %v4068 = vunpack.c.l.b16 %v4036
    %v4069 = vunpack.c.l.b16 %v4037
    %v4070 = vunpack.c.l.b16 %v4038
    %v4071 = vunpack.c.l.b16 %v4039
    %v4072 = vunpack.c.l.b16 %v4040
    %v4073 = vunpack.c.l.b16 %v4041
    %v4074 = vunpack.c.l.b16 %v4042
    %v4075 = vunpack.c.l.b16 %v4043
    %v4076 = vunpack.c.l.b16 %v4044
    %v4077 = vunpack.c.l.b16 %v4045
    %v4078 = vunpack.c.l.b16 %v4046
    %v4079 = vunpack.c.l.b16 %v4047
    %v4080 = vpack.c.b16 %v4065, %v4064
    %v4081 = vpack.c.b16 %v4067, %v4066
    %v4082 = vpack.c.b16 %v4069, %v4068
    %v4083 = vpack.c.b16 %v4071, %v4070
    %v4084 = vpack.c.b16 %v4073, %v4072
    %v4085 = vpack.c.b16 %v4075, %v4074
    %v4086 = vpack.c.b16 %v4077, %v4076
    %v4087 = vpack.c.b16 %v4079, %v4078
    %4096 = vmatprep.subr.bf16.mxu0 0
    %4097 = vmatpush1.bf16.msra.mxu0 %v4080
    %4098 = vmatprep.subr.bf16.mxu0 0
    %4099 = vmatpush1.bf16.msra.mxu0 %v4081
    %4100 = vmatprep.subr.bf16.mxu0 0
    %4101 = vmatpush1.bf16.msra.mxu0 %v4082
    %4102 = vmatprep.subr.bf16.mxu0 0
    %4103 = vmatpush1.bf16.msra.mxu0 %v4083
    %4104 = vmatprep.subr.bf16.mxu0 0
    %4105 = vmatpush1.bf16.msra.mxu0 %v4084
    %4106 = vmatprep.subr.bf16.mxu0 0
    %4107 = vmatpush1.bf16.msra.mxu0 %v4085
    %4108 = vmatprep.subr.bf16.mxu0 0
    %4109 = vmatpush1.bf16.msra.mxu0 %v4086
    %4110 = vmatprep.subr.bf16.mxu0 0
    %4111 = vmatpush1.bf16.msra.mxu0 %v4087
    %4112 = vmatprep.subr.bf16.mxu0 0
    %4113 = vmatpush1.bf16.msra.mxu0 0
    %4114 = vmatprep.subr.bf16.mxu0 0
    %4115 = vmatpush1.bf16.msra.mxu0 0
    %4116 = vmatprep.subr.bf16.mxu0 0
    %4117 = vmatpush1.bf16.msra.mxu0 0
    %4118 = vmatprep.subr.bf16.mxu0 0
    %4119 = vmatpush1.bf16.msra.mxu0 0
    %4120 = vmatprep.subr.bf16.mxu0 0
    %4121 = vmatpush1.bf16.msra.mxu0 0
    %4122 = vmatprep.subr.bf16.mxu0 0
    %4123 = vmatpush1.bf16.msra.mxu0 0
    %4124 = vmatprep.subr.bf16.mxu0 0
    %4125 = vmatpush1.bf16.msra.mxu0 0
    %4126 = vmatprep.subr.bf16.mxu0 0
    %4127 = vmatpush1.bf16.msra.mxu0 0
    %4128 = vmatprep.mubr.bf16.mxu0 0
    %4129 = vmatmul.mubr.bf16.gmra.mrb[0].mxu0 %v4000
    %v4130 = vpop.f32.mrb[0].mxu0
    %v4131 = vadd.f32 0.0, %v4130
    %v4132 = vpop.f32.mrb[0].mxu0
    %v4133 = vpop.f32.mrb[0].mxu0
    %v4134 = vadd.f32 0.0, %v4133
    %v4135 = vpop.f32.mrb[0].mxu0
    %4136 = vmatprep.mubr.bf16.mxu0 0
    %4137 = vmatmul.mubr.bf16.gmra.mrb[0].mxu0 %v4001
    %v4138 = vpop.f32.mrb[0].mxu0
    %v4139 = vadd.f32 0.0, %v4138
    %v4140 = vpop.f32.mrb[0].mxu0
    %v4141 = vpop.f32.mrb[0].mxu0
    %v4142 = vadd.f32 0.0, %v4141
    %v4143 = vpop.f32.mrb[0].mxu0
    %4144 = vmatprep.mubr.bf16.mxu0 0
    %4145 = vmatmul.mubr.bf16.gmra.mrb[0].mxu0 %v4002
    %v4146 = vpop.f32.mrb[0].mxu0
    %v4147 = vadd.f32 0.0, %v4146
    %v4148 = vpop.f32.mrb[0].mxu0
    %v4149 = vpop.f32.mrb[0].mxu0
    %v4150 = vadd.f32 0.0, %v4149
    %v4151 = vpop.f32.mrb[0].mxu0
    %4152 = vmatprep.mubr.bf16.mxu0 0
    %4153 = vmatmul.mubr.bf16.gmra.mrb[0].mxu0 %v4003
    %v4154 = vpop.f32.mrb[0].mxu0
    %v4155 = vadd.f32 0.0, %v4154
    %v4156 = vpop.f32.mrb[0].mxu0
    %v4157 = vpop.f32.mrb[0].mxu0
    %v4158 = vadd.f32 0.0, %v4157
    %v4159 = vpop.f32.mrb[0].mxu0
    %4160 = vmatprep.mubr.bf16.mxu0 0
    %4161 = vmatmul.mubr.bf16.gmra.mrb[0].mxu0 %v4004
    %v4162 = vpop.f32.mrb[0].mxu0
    %v4163 = vadd.f32 0.0, %v4162
    %v4164 = vpop.f32.mrb[0].mxu0
    %v4165 = vpop.f32.mrb[0].mxu0
    %v4166 = vadd.f32 0.0, %v4165
    %v4167 = vpop.f32.mrb[0].mxu0
    %4168 = vmatprep.mubr.bf16.mxu0 0
    %4169 = vmatmul.mubr.bf16.gmra.mrb[0].mxu0 %v4005
    %v4170 = vpop.f32.mrb[0].mxu0
    %v4171 = vadd.f32 0.0, %v4170
    %v4172 = vpop.f32.mrb[0].mxu0
    %v4173 = vpop.f32.mrb[0].mxu0
    %v4174 = vadd.f32 0.0, %v4173
    %v4175 = vpop.f32.mrb[0].mxu0
    %4176 = vmatprep.mubr.bf16.mxu0 0
    %4177 = vmatmul.mubr.bf16.gmra.mrb[0].mxu0 %v4006
    %v4178 = vpop.f32.mrb[0].mxu0
    %v4179 = vadd.f32 0.0, %v4178
    %v4180 = vpop.f32.mrb[0].mxu0
    %v4181 = vpop.f32.mrb[0].mxu0
    %v4182 = vadd.f32 0.0, %v4181
    %v4183 = vpop.f32.mrb[0].mxu0
    %4184 = vmatprep.mubr.bf16.mxu0 0
    %4185 = vmatmul.mubr.bf16.gmra.mrb[0].mxu0 %v4007
    %v4186 = vpop.f32.mrb[0].mxu0
    %v4187 = vadd.f32 0.0, %v4186
    %v4188 = vpop.f32.mrb[0].mxu0
    %v4189 = vpop.f32.mrb[0].mxu0
    %v4190 = vadd.f32 0.0, %v4189
    %v4191 = vpop.f32.mrb[0].mxu0
    %4192 = vmatprep.mubr.bf16.mxu0 0
    %4193 = vmatmul.mubr.bf16.gmra.mrb[0].mxu0 %v4008
    %v4194 = vpop.f32.mrb[0].mxu0
    %v4195 = vadd.f32 0.0, %v4194
    %v4196 = vpop.f32.mrb[0].mxu0
    %v4197 = vpop.f32.mrb[0].mxu0
    %v4198 = vadd.f32 0.0, %v4197
    %v4199 = vpop.f32.mrb[0].mxu0
    %4200 = vmatprep.mubr.bf16.mxu0 0
    %4201 = vmatmul.mubr.bf16.gmra.mrb[0].mxu0 %v4009
    %v4202 = vpop.f32.mrb[0].mxu0
    %v4203 = vadd.f32 0.0, %v4202
    %v4204 = vpop.f32.mrb[0].mxu0
    %v4205 = vpop.f32.mrb[0].mxu0
    %v4206 = vadd.f32 0.0, %v4205
    %v4207 = vpop.f32.mrb[0].mxu0
    %4208 = vmatprep.mubr.bf16.mxu0 0
    %4209 = vmatmul.mubr.bf16.gmra.mrb[0].mxu0 %v4010
    %v4210 = vpop.f32.mrb[0].mxu0
    %v4211 = vadd.f32 0.0, %v4210
    %v4212 = vpop.f32.mrb[0].mxu0
    %v4213 = vpop.f32.mrb[0].mxu0
    %v4214 = vadd.f32 0.0, %v4213
    %v4215 = vpop.f32.mrb[0].mxu0
    %4216 = vmatprep.mubr.bf16.mxu0 0
    %4217 = vmatmul.mubr.bf16.gmra.mrb[0].mxu0 %v4011
    %v4218 = vpop.f32.mrb[0].mxu0
    %v4219 = vadd.f32 0.0, %v4218
    %v4220 = vpop.f32.mrb[0].mxu0
    %v4221 = vpop.f32.mrb[0].mxu0
    %v4222 = vadd.f32 0.0, %v4221
    %v4223 = vpop.f32.mrb[0].mxu0
    %4224 = vmatprep.mubr.bf16.mxu0 0
    %4225 = vmatmul.mubr.bf16.gmra.mrb[0].mxu0 %v4012
    %v4226 = vpop.f32.mrb[0].mxu0
    %v4227 = vadd.f32 0.0, %v4226
    %v4228 = vpop.f32.mrb[0].mxu0
    %v4229 = vpop.f32.mrb[0].mxu0
    %v4230 = vadd.f32 0.0, %v4229
    %v4231 = vpop.f32.mrb[0].mxu0
    %4232 = vmatprep.mubr.bf16.mxu0 0
    %4233 = vmatmul.mubr.bf16.gmra.mrb[0].mxu0 %v4013
    %v4234 = vpop.f32.mrb[0].mxu0
    %v4235 = vadd.f32 0.0, %v4234
    %v4236 = vpop.f32.mrb[0].mxu0
    %v4237 = vpop.f32.mrb[0].mxu0
    %v4238 = vadd.f32 0.0, %v4237
    %v4239 = vpop.f32.mrb[0].mxu0
    %4240 = vmatprep.mubr.bf16.mxu0 0
    %4241 = vmatmul.mubr.bf16.gmra.mrb[0].mxu0 %v4014
    %v4242 = vpop.f32.mrb[0].mxu0
    %v4243 = vadd.f32 0.0, %v4242
    %v4244 = vpop.f32.mrb[0].mxu0
    %v4245 = vpop.f32.mrb[0].mxu0
    %v4246 = vadd.f32 0.0, %v4245
    %v4247 = vpop.f32.mrb[0].mxu0
    %4248 = vmatprep.mubr.bf16.mxu0 0
    %4249 = vmatmul.mubr.bf16.gmra.mrb[0].mxu0 %v4015
    %v4250 = vpop.f32.mrb[0].mxu0
    %v4251 = vadd.f32 0.0, %v4250
    %v4252 = vpop.f32.mrb[0].mxu0
    %v4253 = vpop.f32.mrb[0].mxu0
    %v4254 = vadd.f32 0.0, %v4253
    %v4255 = vpop.f32.mrb[0].mxu0
    %4256 = vmatprep.mubr.bf16.mxu0 0
    %4257 = vmatmul.mubr.bf16.gmra.mrb[0].mxu0 %v4016
    %v4258 = vpop.f32.mrb[0].mxu0
    %v4259 = vadd.f32 0.0, %v4258
    %v4260 = vpop.f32.mrb[0].mxu0
    %v4261 = vpop.f32.mrb[0].mxu0
    %v4262 = vadd.f32 0.0, %v4261
    %v4263 = vpop.f32.mrb[0].mxu0
    %4264 = vmatprep.mubr.bf16.mxu0 0
    %4265 = vmatmul.mubr.bf16.gmra.mrb[0].mxu0 %v4017
    %v4266 = vpop.f32.mrb[0].mxu0
    %v4267 = vadd.f32 0.0, %v4266
    %v4268 = vpop.f32.mrb[0].mxu0
    %v4269 = vpop.f32.mrb[0].mxu0
    %v4270 = vadd.f32 0.0, %v4269
    %v4271 = vpop.f32.mrb[0].mxu0
    %4272 = vmatprep.mubr.bf16.mxu0 0
    %4273 = vmatmul.mubr.bf16.gmra.mrb[0].mxu0 %v4018
    %v4274 = vpop.f32.mrb[0].mxu0
    %v4275 = vadd.f32 0.0, %v4274
    %v4276 = vpop.f32.mrb[0].mxu0
    %v4277 = vpop.f32.mrb[0].mxu0
    %v4278 = vadd.f32 0.0, %v4277
    %v4279 = vpop.f32.mrb[0].mxu0
    %4280 = vmatprep.mubr.bf16.mxu0 0
    %4281 = vmatmul.mubr.bf16.gmra.mrb[0].mxu0 %v4019
    %v4282 = vpop.f32.mrb[0].mxu0
    %v4283 = vadd.f32 0.0, %v4282
    %v4284 = vpop.f32.mrb[0].mxu0
    %v4285 = vpop.f32.mrb[0].mxu0
    %v4286 = vadd.f32 0.0, %v4285
    %v4287 = vpop.f32.mrb[0].mxu0
    %4288 = vmatprep.mubr.bf16.mxu0 0
    %4289 = vmatmul.mubr.bf16.gmra.mrb[0].mxu0 %v4020
    %v4290 = vpop.f32.mrb[0].mxu0
    %v4291 = vadd.f32 0.0, %v4290
    %v4292 = vpop.f32.mrb[0].mxu0
    %v4293 = vpop.f32.mrb[0].mxu0
    %v4294 = vadd.f32 0.0, %v4293
    %v4295 = vpop.f32.mrb[0].mxu0
    %4296 = vmatprep.mubr.bf16.mxu0 0
    %4297 = vmatmul.mubr.bf16.gmra.mrb[0].mxu0 %v4021
    %v4298 = vpop.f32.mrb[0].mxu0
    %v4299 = vadd.f32 0.0, %v4298
    %v4300 = vpop.f32.mrb[0].mxu0
    %v4301 = vpop.f32.mrb[0].mxu0
    %v4302 = vadd.f32 0.0, %v4301
    %v4303 = vpop.f32.mrb[0].mxu0
    %4304 = vmatprep.mubr.bf16.mxu0 0
    %4305 = vmatmul.mubr.bf16.gmra.mrb[0].mxu0 %v4022
    %v4306 = vpop.f32.mrb[0].mxu0
    %v4307 = vadd.f32 0.0, %v4306
    %v4308 = vpop.f32.mrb[0].mxu0
    %v4309 = vpop.f32.mrb[0].mxu0
    %v4310 = vadd.f32 0.0, %v4309
    %v4311 = vpop.f32.mrb[0].mxu0
    %4312 = vmatprep.mubr.bf16.mxu0 0
    %4313 = vmatmul.mubr.bf16.gmra.mrb[0].mxu0 %v4023
    %v4314 = vpop.f32.mrb[0].mxu0
    %v4315 = vadd.f32 0.0, %v4314
    %v4316 = vpop.f32.mrb[0].mxu0
    %v4317 = vpop.f32.mrb[0].mxu0
    %v4318 = vadd.f32 0.0, %v4317
    %v4319 = vpop.f32.mrb[0].mxu0
    %4320 = vmatprep.mubr.bf16.mxu0 0
    %4321 = vmatmul.mubr.bf16.gmra.mrb[0].mxu0 %v4024
    %v4322 = vpop.f32.mrb[0].mxu0
    %v4323 = vadd.f32 0.0, %v4322
    %v4324 = vpop.f32.mrb[0].mxu0
    %v4325 = vpop.f32.mrb[0].mxu0
    %v4326 = vadd.f32 0.0, %v4325
    %v4327 = vpop.f32.mrb[0].mxu0
    %4328 = vmatprep.mubr.bf16.mxu0 0
    %4329 = vmatmul.mubr.bf16.gmra.mrb[0].mxu0 %v4025
    %v4330 = vpop.f32.mrb[0].mxu0
    %v4331 = vadd.f32 0.0, %v4330
    %v4332 = vpop.f32.mrb[0].mxu0
    %v4333 = vpop.f32.mrb[0].mxu0
    %v4334 = vadd.f32 0.0, %v4333
    %v4335 = vpop.f32.mrb[0].mxu0
    %4336 = vmatprep.mubr.bf16.mxu0 0
    %4337 = vmatmul.mubr.bf16.gmra.mrb[0].mxu0 %v4026
    %v4338 = vpop.f32.mrb[0].mxu0
    %v4339 = vadd.f32 0.0, %v4338
    %v4340 = vpop.f32.mrb[0].mxu0
    %v4341 = vpop.f32.mrb[0].mxu0
    %v4342 = vadd.f32 0.0, %v4341
    %v4343 = vpop.f32.mrb[0].mxu0
    %4344 = vmatprep.mubr.bf16.mxu0 0
    %4345 = vmatmul.mubr.bf16.gmra.mrb[0].mxu0 %v4027
    %v4346 = vpop.f32.mrb[0].mxu0
    %v4347 = vadd.f32 0.0, %v4346
    %v4348 = vpop.f32.mrb[0].mxu0
    %v4349 = vpop.f32.mrb[0].mxu0
    %v4350 = vadd.f32 0.0, %v4349
    %v4351 = vpop.f32.mrb[0].mxu0
    %4352 = vmatprep.mubr.bf16.mxu0 0
    %4353 = vmatmul.mubr.bf16.gmra.mrb[0].mxu0 %v4028
    %v4354 = vpop.f32.mrb[0].mxu0
    %v4355 = vadd.f32 0.0, %v4354
    %v4356 = vpop.f32.mrb[0].mxu0
    %v4357 = vpop.f32.mrb[0].mxu0
    %v4358 = vadd.f32 0.0, %v4357
    %v4359 = vpop.f32.mrb[0].mxu0
    %4360 = vmatprep.mubr.bf16.mxu0 0
    %4361 = vmatmul.mubr.bf16.gmra.mrb[0].mxu0 %v4029
    %v4362 = vpop.f32.mrb[0].mxu0
    %v4363 = vadd.f32 0.0, %v4362
    %v4364 = vpop.f32.mrb[0].mxu0
    %v4365 = vpop.f32.mrb[0].mxu0
    %v4366 = vadd.f32 0.0, %v4365
    %v4367 = vpop.f32.mrb[0].mxu0
    %4368 = vmatprep.mubr.bf16.mxu0 0
    %4369 = vmatmul.mubr.bf16.gmra.mrb[0].mxu0 %v4030
    %v4370 = vpop.f32.mrb[0].mxu0
    %v4371 = vadd.f32 0.0, %v4370
    %v4372 = vpop.f32.mrb[0].mxu0
    %v4373 = vpop.f32.mrb[0].mxu0
    %v4374 = vadd.f32 0.0, %v4373
    %v4375 = vpop.f32.mrb[0].mxu0
    %4376 = vmatprep.mubr.bf16.mxu0 0
    %4377 = vmatmul.mubr.bf16.gmra.mrb[0].mxu0 %v4031
    %v4378 = vpop.f32.mrb[0].mxu0
    %v4379 = vadd.f32 0.0, %v4378
    %v4380 = vpop.f32.mrb[0].mxu0
    %v4381 = vpop.f32.mrb[0].mxu0
    %v4382 = vadd.f32 0.0, %v4381
    %v4383 = vpop.f32.mrb[0].mxu0
    %4384 = vdwg.mxu0
    %v4385 = vld [vmem:[#allocation16] sm:$0x1]
    %v4387 = vlaneseq
    %v4388 = vshrl.u32 %v4387, 7
    %v4389 = vsub.s32 0, %v4388
    %v4390 = vrot.slane %v4385, %v4389
    %v4392 = vmul.f32 %v4131, %v4390
    %v4393 = vmul.f32 %v4134, %v4390
    %v4394 = vmul.f32 %v4139, %v4390
    %v4395 = vmul.f32 %v4142, %v4390
    %v4396 = vmul.f32 %v4147, %v4390
    %v4397 = vmul.f32 %v4150, %v4390
    %v4398 = vmul.f32 %v4155, %v4390
    %v4399 = vmul.f32 %v4158, %v4390
    %v4400 = vmul.f32 %v4163, %v4390
    %v4401 = vmul.f32 %v4166, %v4390
    %v4402 = vmul.f32 %v4171, %v4390
    %v4403 = vmul.f32 %v4174, %v4390
    %v4404 = vmul.f32 %v4179, %v4390
    %v4405 = vmul.f32 %v4182, %v4390
    %v4406 = vmul.f32 %v4187, %v4390
    %v4407 = vmul.f32 %v4190, %v4390
    %v4408 = vmul.f32 %v4195, %v4390
    %v4409 = vmul.f32 %v4198, %v4390
    %v4410 = vmul.f32 %v4203, %v4390
    %v4411 = vmul.f32 %v4206, %v4390
    %v4412 = vmul.f32 %v4211, %v4390
    %v4413 = vmul.f32 %v4214, %v4390
    %v4414 = vmul.f32 %v4219, %v4390
    %v4415 = vmul.f32 %v4222, %v4390
    %v4416 = vmul.f32 %v4227, %v4390
    %v4417 = vmul.f32 %v4230, %v4390
    %v4418 = vmul.f32 %v4235, %v4390
    %v4419 = vmul.f32 %v4238, %v4390
    %v4420 = vmul.f32 %v4243, %v4390
    %v4421 = vmul.f32 %v4246, %v4390
    %v4422 = vmul.f32 %v4251, %v4390
    %v4423 = vmul.f32 %v4254, %v4390
    %v4424 = vmul.f32 %v4259, %v4390
    %v4425 = vmul.f32 %v4262, %v4390
    %v4426 = vmul.f32 %v4267, %v4390
    %v4427 = vmul.f32 %v4270, %v4390
    %v4428 = vmul.f32 %v4275, %v4390
    %v4429 = vmul.f32 %v4278, %v4390
    %v4430 = vmul.f32 %v4283, %v4390
    %v4431 = vmul.f32 %v4286, %v4390
    %v4432 = vmul.f32 %v4291, %v4390
    %v4433 = vmul.f32 %v4294, %v4390
    %v4434 = vmul.f32 %v4299, %v4390
    %v4435 = vmul.f32 %v4302, %v4390
    %v4436 = vmul.f32 %v4307, %v4390
    %v4437 = vmul.f32 %v4310, %v4390
    %v4438 = vmul.f32 %v4315, %v4390
    %v4439 = vmul.f32 %v4318, %v4390
    %v4440 = vmul.f32 %v4323, %v4390
    %v4441 = vmul.f32 %v4326, %v4390
    %v4442 = vmul.f32 %v4331, %v4390
    %v4443 = vmul.f32 %v4334, %v4390
    %v4444 = vmul.f32 %v4339, %v4390
    %v4445 = vmul.f32 %v4342, %v4390
    %v4446 = vmul.f32 %v4347, %v4390
    %v4447 = vmul.f32 %v4350, %v4390
    %v4448 = vmul.f32 %v4355, %v4390
    %v4449 = vmul.f32 %v4358, %v4390
    %v4450 = vmul.f32 %v4363, %v4390
    %v4451 = vmul.f32 %v4366, %v4390
    %v4452 = vmul.f32 %v4371, %v4390
    %v4453 = vmul.f32 %v4374, %v4390
    %v4454 = vmul.f32 %v4379, %v4390
    %v4455 = vmul.f32 %v4382, %v4390
    %v4456 = vld [vmem:[#allocation17] sm:$0x1]
    %v4458 = vlaneseq
    %v4459 = vshrl.u32 %v4458, 7
    %v4460 = vsub.s32 0, %v4459
    %v4461 = vrot.slane %v4456, %v4460
    %v4463 = vadd.f32 %v4392, %v4461
    %v4464 = vadd.f32 %v4393, %v4461
    %v4465 = vadd.f32 %v4394, %v4461
    %v4466 = vadd.f32 %v4395, %v4461
    %v4467 = vadd.f32 %v4396, %v4461
    %v4468 = vadd.f32 %v4397, %v4461
    %v4469 = vadd.f32 %v4398, %v4461
    %v4470 = vadd.f32 %v4399, %v4461
    %v4471 = vadd.f32 %v4400, %v4461
    %v4472 = vadd.f32 %v4401, %v4461
    %v4473 = vadd.f32 %v4402, %v4461
    %v4474 = vadd.f32 %v4403, %v4461
    %v4475 = vadd.f32 %v4404, %v4461
    %v4476 = vadd.f32 %v4405, %v4461
    %v4477 = vadd.f32 %v4406, %v4461
    %v4478 = vadd.f32 %v4407, %v4461
    %v4479 = vadd.f32 %v4408, %v4461
    %v4480 = vadd.f32 %v4409, %v4461
    %v4481 = vadd.f32 %v4410, %v4461
    %v4482 = vadd.f32 %v4411, %v4461
    %v4483 = vadd.f32 %v4412, %v4461
    %v4484 = vadd.f32 %v4413, %v4461
    %v4485 = vadd.f32 %v4414, %v4461
    %v4486 = vadd.f32 %v4415, %v4461
    %v4487 = vadd.f32 %v4416, %v4461
    %v4488 = vadd.f32 %v4417, %v4461
    %v4489 = vadd.f32 %v4418, %v4461
    %v4490 = vadd.f32 %v4419, %v4461
    %v4491 = vadd.f32 %v4420, %v4461
    %v4492 = vadd.f32 %v4421, %v4461
    %v4493 = vadd.f32 %v4422, %v4461
    %v4494 = vadd.f32 %v4423, %v4461
    %v4495 = vadd.f32 %v4424, %v4461
    %v4496 = vadd.f32 %v4425, %v4461
    %v4497 = vadd.f32 %v4426, %v4461
    %v4498 = vadd.f32 %v4427, %v4461
    %v4499 = vadd.f32 %v4428, %v4461
    %v4500 = vadd.f32 %v4429, %v4461
    %v4501 = vadd.f32 %v4430, %v4461
    %v4502 = vadd.f32 %v4431, %v4461
    %v4503 = vadd.f32 %v4432, %v4461
    %v4504 = vadd.f32 %v4433, %v4461
    %v4505 = vadd.f32 %v4434, %v4461
    %v4506 = vadd.f32 %v4435, %v4461
    %v4507 = vadd.f32 %v4436, %v4461
    %v4508 = vadd.f32 %v4437, %v4461
    %v4509 = vadd.f32 %v4438, %v4461
    %v4510 = vadd.f32 %v4439, %v4461
    %v4511 = vadd.f32 %v4440, %v4461
    %v4512 = vadd.f32 %v4441, %v4461
    %v4513 = vadd.f32 %v4442, %v4461
    %v4514 = vadd.f32 %v4443, %v4461
    %v4515 = vadd.f32 %v4444, %v4461
    %v4516 = vadd.f32 %v4445, %v4461
    %v4517 = vadd.f32 %v4446, %v4461
    %v4518 = vadd.f32 %v4447, %v4461
    %v4519 = vadd.f32 %v4448, %v4461
    %v4520 = vadd.f32 %v4449, %v4461
    %v4521 = vadd.f32 %v4450, %v4461
    %v4522 = vadd.f32 %v4451, %v4461
    %v4523 = vadd.f32 %v4452, %v4461
    %v4524 = vadd.f32 %v4453, %v4461
    %v4525 = vadd.f32 %v4454, %v4461
    %v4526 = vadd.f32 %v4455, %v4461
    %v4527 = vadd.f32 %v4463, %v161
    %v4528 = vadd.f32 %v4464, %v162
    %v4529 = vadd.f32 %v4465, %v163
    %v4530 = vadd.f32 %v4466, %v164
    %v4531 = vadd.f32 %v4467, %v165
    %v4532 = vadd.f32 %v4468, %v166
    %v4533 = vadd.f32 %v4469, %v167
    %v4534 = vadd.f32 %v4470, %v168
    %v4535 = vadd.f32 %v4471, %v169
    %v4536 = vadd.f32 %v4472, %v170
    %v4537 = vadd.f32 %v4473, %v171
    %v4538 = vadd.f32 %v4474, %v172
    %v4539 = vadd.f32 %v4475, %v173
    %v4540 = vadd.f32 %v4476, %v174
    %v4541 = vadd.f32 %v4477, %v175
    %v4542 = vadd.f32 %v4478, %v176
    %v4543 = vadd.f32 %v4479, %v177
    %v4544 = vadd.f32 %v4480, %v178
    %v4545 = vadd.f32 %v4481, %v179
    %v4546 = vadd.f32 %v4482, %v180
    %v4547 = vadd.f32 %v4483, %v181
    %v4548 = vadd.f32 %v4484, %v182
    %v4549 = vadd.f32 %v4485, %v183
    %v4550 = vadd.f32 %v4486, %v184
    %v4551 = vadd.f32 %v4487, %v185
    %v4552 = vadd.f32 %v4488, %v186
    %v4553 = vadd.f32 %v4489, %v187
    %v4554 = vadd.f32 %v4490, %v188
    %v4555 = vadd.f32 %v4491, %v189
    %v4556 = vadd.f32 %v4492, %v190
    %v4557 = vadd.f32 %v4493, %v191
    %v4558 = vadd.f32 %v4494, %v192
    %v4559 = vadd.f32 %v4495, %v193
    %v4560 = vadd.f32 %v4496, %v194
    %v4561 = vadd.f32 %v4497, %v195
    %v4562 = vadd.f32 %v4498, %v196
    %v4563 = vadd.f32 %v4499, %v197
    %v4564 = vadd.f32 %v4500, %v198
    %v4565 = vadd.f32 %v4501, %v199
    %v4566 = vadd.f32 %v4502, %v200
    %v4567 = vadd.f32 %v4503, %v201
    %v4568 = vadd.f32 %v4504, %v202
    %v4569 = vadd.f32 %v4505, %v203
    %v4570 = vadd.f32 %v4506, %v204
    %v4571 = vadd.f32 %v4507, %v205
    %v4572 = vadd.f32 %v4508, %v206
    %v4573 = vadd.f32 %v4509, %v207
    %v4574 = vadd.f32 %v4510, %v208
    %v4575 = vadd.f32 %v4511, %v209
    %v4576 = vadd.f32 %v4512, %v210
    %v4577 = vadd.f32 %v4513, %v211
    %v4578 = vadd.f32 %v4514, %v212
    %v4579 = vadd.f32 %v4515, %v213
    %v4580 = vadd.f32 %v4516, %v214
    %v4581 = vadd.f32 %v4517, %v215
    %v4582 = vadd.f32 %v4518, %v216
    %v4583 = vadd.f32 %v4519, %v217
    %v4584 = vadd.f32 %v4520, %v218
    %v4585 = vadd.f32 %v4521, %v219
    %v4586 = vadd.f32 %v4522, %v220
    %v4587 = vadd.f32 %v4523, %v221
    %v4588 = vadd.f32 %v4524, %v222
    %v4589 = vadd.f32 %v4525, %v223
    %v4590 = vadd.f32 %v4526, %v224
    %v4591 = vmax.f32 %v4527, 0.0
    %v4592 = vmax.f32 %v4528, 0.0
    %v4593 = vmax.f32 %v4529, 0.0
    %v4594 = vmax.f32 %v4530, 0.0
    %v4595 = vmax.f32 %v4531, 0.0
    %v4596 = vmax.f32 %v4532, 0.0
    %v4597 = vmax.f32 %v4533, 0.0
    %v4598 = vmax.f32 %v4534, 0.0
    %v4599 = vmax.f32 %v4535, 0.0
    %v4600 = vmax.f32 %v4536, 0.0
    %v4601 = vmax.f32 %v4537, 0.0
    %v4602 = vmax.f32 %v4538, 0.0
    %v4603 = vmax.f32 %v4539, 0.0
    %v4604 = vmax.f32 %v4540, 0.0
    %v4605 = vmax.f32 %v4541, 0.0
    %v4606 = vmax.f32 %v4542, 0.0
    %v4607 = vmax.f32 %v4543, 0.0
    %v4608 = vmax.f32 %v4544, 0.0
    %v4609 = vmax.f32 %v4545, 0.0
    %v4610 = vmax.f32 %v4546, 0.0
    %v4611 = vmax.f32 %v4547, 0.0
    %v4612 = vmax.f32 %v4548, 0.0
    %v4613 = vmax.f32 %v4549, 0.0
    %v4614 = vmax.f32 %v4550, 0.0
    %v4615 = vmax.f32 %v4551, 0.0
    %v4616 = vmax.f32 %v4552, 0.0
    %v4617 = vmax.f32 %v4553, 0.0
    %v4618 = vmax.f32 %v4554, 0.0
    %v4619 = vmax.f32 %v4555, 0.0
    %v4620 = vmax.f32 %v4556, 0.0
    %v4621 = vmax.f32 %v4557, 0.0
    %v4622 = vmax.f32 %v4558, 0.0
    %v4623 = vmax.f32 %v4559, 0.0
    %v4624 = vmax.f32 %v4560, 0.0
    %v4625 = vmax.f32 %v4561, 0.0
    %v4626 = vmax.f32 %v4562, 0.0
    %v4627 = vmax.f32 %v4563, 0.0
    %v4628 = vmax.f32 %v4564, 0.0
    %v4629 = vmax.f32 %v4565, 0.0
    %v4630 = vmax.f32 %v4566, 0.0
    %v4631 = vmax.f32 %v4567, 0.0
    %v4632 = vmax.f32 %v4568, 0.0
    %v4633 = vmax.f32 %v4569, 0.0
    %v4634 = vmax.f32 %v4570, 0.0
    %v4635 = vmax.f32 %v4571, 0.0
    %v4636 = vmax.f32 %v4572, 0.0
    %v4637 = vmax.f32 %v4573, 0.0
    %v4638 = vmax.f32 %v4574, 0.0
    %v4639 = vmax.f32 %v4575, 0.0
    %v4640 = vmax.f32 %v4576, 0.0
    %v4641 = vmax.f32 %v4577, 0.0
    %v4642 = vmax.f32 %v4578, 0.0
    %v4643 = vmax.f32 %v4579, 0.0
    %v4644 = vmax.f32 %v4580, 0.0
    %v4645 = vmax.f32 %v4581, 0.0
    %v4646 = vmax.f32 %v4582, 0.0
    %v4647 = vmax.f32 %v4583, 0.0
    %v4648 = vmax.f32 %v4584, 0.0
    %v4649 = vmax.f32 %v4585, 0.0
    %v4650 = vmax.f32 %v4586, 0.0
    %v4651 = vmax.f32 %v4587, 0.0
    %v4652 = vmax.f32 %v4588, 0.0
    %v4653 = vmax.f32 %v4589, 0.0
    %v4654 = vmax.f32 %v4590, 0.0
    %4655 = vst [vmem:[#allocation19] sm:$0xff] %v4591
    %4656 = vst [vmem:[#allocation19 + $0x8] sm:$0xff] %v4592
    %4657 = vst [vmem:[#allocation19 + $0x10] sm:$0xff] %v4593
    %4658 = vst [vmem:[#allocation19 + $0x18] sm:$0xff] %v4594
    %4659 = vst [vmem:[#allocation19 + $0x20] sm:$0xff] %v4595
    %4660 = vst [vmem:[#allocation19 + $0x28] sm:$0xff] %v4596
    %4661 = vst [vmem:[#allocation19 + $0x30] sm:$0xff] %v4597
    %4662 = vst [vmem:[#allocation19 + $0x38] sm:$0xff] %v4598
    %4663 = vst [vmem:[#allocation19 + $0x40] sm:$0xff] %v4599
    %4664 = vst [vmem:[#allocation19 + $0x48] sm:$0xff] %v4600
    %4665 = vst [vmem:[#allocation19 + $0x50] sm:$0xff] %v4601
    %4666 = vst [vmem:[#allocation19 + $0x58] sm:$0xff] %v4602
    %4667 = vst [vmem:[#allocation19 + $0x60] sm:$0xff] %v4603
    %4668 = vst [vmem:[#allocation19 + $0x68] sm:$0xff] %v4604
    %4669 = vst [vmem:[#allocation19 + $0x70] sm:$0xff] %v4605
    %4670 = vst [vmem:[#allocation19 + $0x78] sm:$0xff] %v4606
    %4671 = vst [vmem:[#allocation19 + $0x80] sm:$0xff] %v4607
    %4672 = vst [vmem:[#allocation19 + $0x88] sm:$0xff] %v4608
    %4673 = vst [vmem:[#allocation19 + $0x90] sm:$0xff] %v4609
    %4674 = vst [vmem:[#allocation19 + $0x98] sm:$0xff] %v4610
    %4675 = vst [vmem:[#allocation19 + $0xa0] sm:$0xff] %v4611
    %4676 = vst [vmem:[#allocation19 + $0xa8] sm:$0xff] %v4612
    %4677 = vst [vmem:[#allocation19 + $0xb0] sm:$0xff] %v4613
    %4678 = vst [vmem:[#allocation19 + $0xb8] sm:$0xff] %v4614
    %4679 = vst [vmem:[#allocation19 + $0xc0] sm:$0xff] %v4615
    %4680 = vst [vmem:[#allocation19 + $0xc8] sm:$0xff] %v4616
    %4681 = vst [vmem:[#allocation19 + $0xd0] sm:$0xff] %v4617
    %4682 = vst [vmem:[#allocation19 + $0xd8] sm:$0xff] %v4618
    %4683 = vst [vmem:[#allocation19 + $0xe0] sm:$0xff] %v4619
    %4684 = vst [vmem:[#allocation19 + $0xe8] sm:$0xff] %v4620
    %4685 = vst [vmem:[#allocation19 + $0xf0] sm:$0xff] %v4621
    %4686 = vst [vmem:[#allocation19 + $0xf8] sm:$0xff] %v4622
    %4687 = vst [vmem:[#allocation19 + $0x100] sm:$0xff] %v4623
    %4688 = vst [vmem:[#allocation19 + $0x108] sm:$0xff] %v4624
    %4689 = vst [vmem:[#allocation19 + $0x110] sm:$0xff] %v4625
    %4690 = vst [vmem:[#allocation19 + $0x118] sm:$0xff] %v4626
    %4691 = vst [vmem:[#allocation19 + $0x120] sm:$0xff] %v4627
    %4692 = vst [vmem:[#allocation19 + $0x128] sm:$0xff] %v4628
    %4693 = vst [vmem:[#allocation19 + $0x130] sm:$0xff] %v4629
    %4694 = vst [vmem:[#allocation19 + $0x138] sm:$0xff] %v4630
    %4695 = vst [vmem:[#allocation19 + $0x140] sm:$0xff] %v4631
    %4696 = vst [vmem:[#allocation19 + $0x148] sm:$0xff] %v4632
    %4697 = vst [vmem:[#allocation19 + $0x150] sm:$0xff] %v4633
    %4698 = vst [vmem:[#allocation19 + $0x158] sm:$0xff] %v4634
    %4699 = vst [vmem:[#allocation19 + $0x160] sm:$0xff] %v4635
    %4700 = vst [vmem:[#allocation19 + $0x168] sm:$0xff] %v4636
    %4701 = vst [vmem:[#allocation19 + $0x170] sm:$0xff] %v4637
    %4702 = vst [vmem:[#allocation19 + $0x178] sm:$0xff] %v4638
    %4703 = vst [vmem:[#allocation19 + $0x180] sm:$0xff] %v4639
    %4704 = vst [vmem:[#allocation19 + $0x188] sm:$0xff] %v4640
    %4705 = vst [vmem:[#allocation19 + $0x190] sm:$0xff] %v4641
    %4706 = vst [vmem:[#allocation19 + $0x198] sm:$0xff] %v4642
    %4707 = vst [vmem:[#allocation19 + $0x1a0] sm:$0xff] %v4643
    %4708 = vst [vmem:[#allocation19 + $0x1a8] sm:$0xff] %v4644
    %4709 = vst [vmem:[#allocation19 + $0x1b0] sm:$0xff] %v4645
    %4710 = vst [vmem:[#allocation19 + $0x1b8] sm:$0xff] %v4646
    %4711 = vst [vmem:[#allocation19 + $0x1c0] sm:$0xff] %v4647
    %4712 = vst [vmem:[#allocation19 + $0x1c8] sm:$0xff] %v4648
    %4713 = vst [vmem:[#allocation19 + $0x1d0] sm:$0xff] %v4649
    %4714 = vst [vmem:[#allocation19 + $0x1d8] sm:$0xff] %v4650
    %4715 = vst [vmem:[#allocation19 + $0x1e0] sm:$0xff] %v4651
    %4716 = vst [vmem:[#allocation19 + $0x1e8] sm:$0xff] %v4652
    %4717 = vst [vmem:[#allocation19 + $0x1f0] sm:$0xff] %v4653
    %4718 = vst [vmem:[#allocation19 + $0x1f8] sm:$0xff] %v4654
    // Predicated region
    $region82: #{tpu_custom_call.1} parent=1 // pred_check
      _
    $region83: #{tpu_custom_call.1} parent=1 // pred_check_branch
      %4720 = sbr.rel (0) target = $region85
    $region84: #{tpu_custom_call.1} parent=1 // pred_region
      %s4722 = ssub.s32 8192, 8192
      %4723 = vsyncadd [#allocation4], %s4722
      %s4724 = sshll.u32 [#allocation19], 4
      %s4725 = int_to_ptr.vmem [resolvable:$true] %s4724
      %4730 = dma.vmem_to_hbm [thread:$0]  %s4725, 8192, %s10, [#allocation4], 128, 128, 8
    $region85: #{tpu_custom_call.1} parent=1 // pred_fallthru
      _
    // Predicated region
    $region86: #{tpu_custom_call.1} parent=1 // pred_check
      _
    $region87: #{tpu_custom_call.1} parent=1 // pred_check_branch
      %4732 = sbr.rel (0) target = $region89
    $region88: #{tpu_custom_call.1} parent=1 // pred_region
      %4733 = dma.done [#allocation4], 8192
    $region89: #{tpu_custom_call.1} parent=1 // pred_fallthru
      _
    %4734 = vsyncpa [#allocation3], 1
    %4735 = vsyncpa [#allocation6], 1
    %4736 = vsyncpa [#allocation9], 1
    %4737 = vsyncpa [#allocation12], 1
    %4738 = vsyncpa [#allocation15], 1
    %4739 = vsyncpa [#allocation18], 1
    %4740 = vsyncpa [#allocation4], 1

</llo_original>
